<compile_context>
chip_gen: v5e
topology: v5e:2x2
jax: 0.10.0
libtpu: 0.0.40
codegen_flags: <defaults>
</compile_context>

<pallas_src>
import functools

import jax
import jax.numpy as jnp
from jax.experimental import pallas as pl
from jax.experimental.pallas import tpu as pltpu


# --------------------------------------------------------------------------
# Pallas kernel: tiled matmul with f32 accumulation + fused bias / ReLU
# --------------------------------------------------------------------------
def _round_up(x, m):
    return (x + m - 1) // m * m


def _matmul_bias_act_kernel(a_ref, b_ref, bias_ref, o_ref, acc_ref, *, relu):
    k = pl.program_id(2)

    @pl.when(k == 0)
    def _():
        acc_ref[...] = jnp.zeros_like(acc_ref)

    acc_ref[...] += jnp.dot(a_ref[...], b_ref[...],
                            preferred_element_type=jnp.float32)

    @pl.when(k == pl.num_programs(2) - 1)
    def _():
        out = acc_ref[...] + bias_ref[...]          # bias broadcast (1, tn)
        if relu:
            out = jnp.maximum(out, 0.0)
        o_ref[...] = out.astype(o_ref.dtype)


def pallas_matmul(a, b, bias, relu=False, out_dtype=jnp.float32):
    """a: (M, K), b: (K, N), bias: (N,) -> (M, N) in out_dtype.

    Operands are cast to bf16 (halves HBM->VMEM traffic, full MXU rate on
    v6e/v7x); accumulation and the bias/ReLU epilogue stay in f32.
    All dims are padded to tile multiples; N is padded to a lane-dense 128
    multiple so stores are unmasked full-width vst.
    """
    M, K = a.shape
    K2, N = b.shape
    assert K == K2
    tn = 128
    tm = min(512, _round_up(M, 16))        # 16-multiple: safe for bf16 sublane packing
    tk = min(512, _round_up(K, 128))
    Mp, Kp, Np = _round_up(M, tm), _round_up(K, tk), _round_up(N, tn)

    a_p = jnp.pad(a.astype(jnp.bfloat16), ((0, Mp - M), (0, Kp - K)))
    b_p = jnp.pad(b.astype(jnp.bfloat16), ((0, Kp - K), (0, Np - N)))
    bias_p = jnp.pad(bias.astype(jnp.float32), (0, Np - N)).reshape(1, Np)

    grid = (Mp // tm, Np // tn, Kp // tk)
    kernel = functools.partial(_matmul_bias_act_kernel, relu=relu)

    out_itemsize = jnp.dtype(out_dtype).itemsize
    cost = pl.CostEstimate(
        flops=2 * M * N * K,
        transcendentals=0,
        bytes_accessed=int((Mp * Kp + Kp * Np) * 2 + Np * 4 + Mp * Np * out_itemsize),
    )

    out = pl.pallas_call(
        kernel,
        out_shape=jax.ShapeDtypeStruct((Mp, Np), out_dtype),
        grid_spec=pltpu.PrefetchScalarGridSpec(
            num_scalar_prefetch=0,
            grid=grid,
            in_specs=[
                pl.BlockSpec((tm, tk), lambda i, j, k: (i, k)),
                pl.BlockSpec((tk, tn), lambda i, j, k: (k, j)),
                pl.BlockSpec((1, tn), lambda i, j, k: (0, j)),
            ],
            out_specs=pl.BlockSpec((tm, tn), lambda i, j, k: (i, j)),
            scratch_shapes=[pltpu.VMEM((tm, tn), jnp.float32)],
        ),
        compiler_params=pltpu.CompilerParams(
            dimension_semantics=("parallel", "parallel", "arbitrary")),
        cost_estimate=cost,
    )(a_p, b_p, bias_p)
    return out[:M, :N]


# --------------------------------------------------------------------------
# Layout plumbing: im2col, conv-as-matmul, fused upsample+pad gather
# --------------------------------------------------------------------------
def im2col(x_nhwc, kh, kw, stride, padding):
    if padding:
        x = jnp.pad(x_nhwc, ((0, 0), (padding, padding), (padding, padding), (0, 0)))
    else:
        x = x_nhwc
    n, h, w, c = x.shape
    oh = (h - kh) // stride + 1
    ow = (w - kw) // stride + 1
    patches = []
    for i in range(kh):
        for j in range(kw):
            patches.append(x[:, i:i + stride * oh:stride, j:j + stride * ow:stride, :])
    cols = jnp.concatenate(patches, axis=-1)          # (n, oh, ow, kh*kw*c)
    return cols.reshape(n * oh * ow, kh * kw * c), oh, ow


def conv2d(x_nhwc, w_oihw, bias, stride, padding, relu, out_dtype=jnp.bfloat16):
    """Conv2d (PyTorch OIHW weights) via im2col + tiled Pallas fused matmul."""
    cout, cin, kh, kw = w_oihw.shape
    cols, oh, ow = im2col(x_nhwc, kh, kw, stride, padding)
    # reorder weight to match patch flattening order (kh, kw, cin) -> cout
    w_mat = jnp.transpose(w_oihw, (2, 3, 1, 0)).reshape(kh * kw * cin, cout)
    out = pallas_matmul(cols, w_mat, bias, relu=relu, out_dtype=out_dtype)
    n = x_nhwc.shape[0]
    return out.reshape(n, oh, ow, cout)


def _up2x_pad_index(s):
    # index into a 1-zero-padded source of length s+2, producing the rows/cols
    # of a nearest-2x-upsampled THEN 1-zero-padded tensor of length 2s+2.
    r = jnp.arange(2 * s + 2)
    return jnp.where(r == 0, 0, jnp.where(r == 2 * s + 1, s + 1, (r - 1) // 2 + 1))


def upsample_nearest2x_padded(x_nhwc):
    """Nearest-2x upsample + 1-pixel zero pad in ONE gather (equivalent to
    jnp.repeat(2)x2 followed by pad=1, without the 4x HBM intermediate)."""
    n, h, w, c = x_nhwc.shape
    xp = jnp.pad(x_nhwc, ((0, 0), (1, 1), (1, 1), (0, 0)))
    xup = jnp.take(xp, _up2x_pad_index(h), axis=1)
    return jnp.take(xup, _up2x_pad_index(w), axis=2)


# --------------------------------------------------------------------------
# Deterministic parameters (kaiming-normal fan_out, zero bias; BN folded with
# init statistics gamma=1, beta=0, mean=0, var=1 -> scale 1/sqrt(1+eps)).
# --------------------------------------------------------------------------
_BN_EPS = 1e-5


def _conv_params(key, cin, cout, k, fold_bn):
    fan_out = cout * k * k
    std = (2.0 / fan_out) ** 0.5
    w = std * jax.random.normal(key, (cout, cin, k, k), dtype=jnp.float32)
    b = jnp.zeros((cout,), dtype=jnp.float32)
    if fold_bn:
        scale = 1.0 / jnp.sqrt(1.0 + _BN_EPS)
        w = w * scale
        b = b * scale
    return w, b


def _linear_params(key, din, dout):
    std = (2.0 / dout) ** 0.5
    w = std * jax.random.normal(key, (dout, din), dtype=jnp.float32)  # torch (out,in)
    b = jnp.zeros((dout,), dtype=jnp.float32)
    return w, b


def build_params(in_channels, encoded_dim, channels_expand_ratio, ch,
                 enc_h, enc_w, if_add_plate_infor, seed=0):
    key = jax.random.PRNGKey(seed)
    keys = jax.random.split(key, 12)
    c1 = int(8 * channels_expand_ratio)
    c2 = 2 * c1
    c3 = 4 * c1
    p = {}
    # Encoder: 3x (conv3x3 stride2 + BN + ReLU) then Linear -> encoded_dim
    p["e_conv1"] = _conv_params(keys[0], in_channels, c1, 3, fold_bn=True)
    p["e_conv2"] = _conv_params(keys[1], c1, c2, 3, fold_bn=True)
    p["e_conv3"] = _conv_params(keys[2], c2, c3, 3, fold_bn=True)
    p["e_fc"] = _linear_params(keys[3], c3 * enc_h * enc_w, encoded_dim)
    # Decoder: Linear -> ch*enc_h*enc_w, 3x (upsample2x + conv3x3 + BN + ReLU),
    # final conv3x3 -> in_channels
    dec_in = encoded_dim + (1 if if_add_plate_infor else 0)
    p["d_fc"] = _linear_params(keys[4], dec_in, ch * enc_h * enc_w)
    p["d_conv1"] = _conv_params(keys[5], ch, ch, 3, fold_bn=True)
    p["d_conv2"] = _conv_params(keys[6], ch, ch, 3, fold_bn=True)
    p["d_conv3"] = _conv_params(keys[7], ch, ch, 3, fold_bn=True)
    p["d_out"] = _conv_params(keys[8], ch, in_channels, 3, fold_bn=False)
    p["dims"] = (c1, c2, c3, ch, enc_h, enc_w)
    return p


# --------------------------------------------------------------------------
# Encoder / Decoder forward — all matmuls run in the tiled Pallas kernel
# --------------------------------------------------------------------------
def encoder_forward(params, x_nhwc):
    x = conv2d(x_nhwc, *params["e_conv1"], stride=2, padding=1, relu=True)
    x = conv2d(x, *params["e_conv2"], stride=2, padding=1, relu=True)
    x = conv2d(x, *params["e_conv3"], stride=2, padding=1, relu=True)
    n = x.shape[0]
    # PyTorch flattens in CHW order -> transpose NHWC->NCHW before reshape.
    flat = jnp.transpose(x, (0, 3, 1, 2)).reshape(n, -1)
    w, b = params["e_fc"]
    return pallas_matmul(flat, w.T, b, relu=False, out_dtype=jnp.float32)


def decoder_forward(params, encoded, plates):
    _, _, _, ch, enc_h, enc_w = params["dims"]
    n = encoded.shape[0]
    if plates is not None:
        encoded = jnp.concatenate([encoded, plates.astype(jnp.float32)], axis=-1)
    w, b = params["d_fc"]
    x = pallas_matmul(encoded, w.T, b, relu=True, out_dtype=jnp.bfloat16)
    # PyTorch reshapes in CHW order -> reshape (n, ch, h, w) then NCHW->NHWC.
    x = jnp.transpose(x.reshape(n, ch, enc_h, enc_w), (0, 2, 3, 1))
    x = upsample_nearest2x_padded(x)
    x = conv2d(x, *params["d_conv1"], stride=1, padding=0, relu=True)
    x = upsample_nearest2x_padded(x)
    x = conv2d(x, *params["d_conv2"], stride=1, padding=0, relu=True)
    x = upsample_nearest2x_padded(x)
    x = conv2d(x, *params["d_conv3"], stride=1, padding=0, relu=True)
    x = conv2d(x, *params["d_out"], stride=1, padding=1, relu=False,
               out_dtype=jnp.float32)
    return x                                                 # (n, H, W, in_channels)


def encoder_decoder_forward(params, img_nchw, plates_infor, split_size=None):
    """Mirrors EncoderDecoderMultiGPUs.forward. On a single TPU the per-chunk
    (split_size) device pipeline is a purely sequential loop; since the
    encoder/decoder are pure functions (inference-folded BN), running the full
    batch at once is semantically identical to split->encode->decode->concat
    and keeps the MXU / DMA pipeline full."""
    del split_size
    img_nhwc = jnp.transpose(img_nchw, (0, 2, 3, 1))
    plates = None if plates_infor is None else plates_infor[:, None]  # unsqueeze(-1)
    enc = encoder_forward(params, img_nhwc)
    dec = decoder_forward(params, enc, plates)
    return jnp.transpose(dec, (0, 3, 1, 2))                  # back to NCHW


# --------------------------------------------------------------------------
if __name__ == "__main__":
    # Small shapes: batch=4, inChannels=4, H=W=16 -> encoderImgHeight/Width = 2
    batch, in_channels, H, W = 4, 4, 16, 16
    encoded_dim = 32
    split_size = 2
    ch = 8
    enc_h, enc_w = H // 8, W // 8

    params = build_params(in_channels, encoded_dim, channels_expand_ratio=1.0,
                          ch=ch, enc_h=enc_h, enc_w=enc_w,
                          if_add_plate_infor=True, seed=0)

    key = jax.random.PRNGKey(0)
    k_img, k_pl = jax.random.split(key)
    img = jax.random.normal(k_img, (batch, in_channels, H, W), dtype=jnp.float32)
    plates = jax.random.randint(k_pl, (batch,), 0, 10).astype(jnp.float32)

    @jax.jit
    def fwd(img_, plates_):
        return encoder_decoder_forward(params, img_, plates_, split_size)

    out = jax.block_until_ready(fwd(img, plates))
    assert out.shape == (batch, in_channels, H, W), out.shape
    assert bool(jnp.all(jnp.isfinite(out)))
    print("KERNEL_OK")
</pallas_src>

<mosaic_0001>
module attributes {stable_mosaic.version = 11 : i64} {
  func.func @_matmul_bias_act_kernel(%arg0: i32, %arg1: i32, %arg2: i32, %arg3: memref<256x128xbf16, #tpu.memory_space<vmem>>, %arg4: memref<128x128xbf16, #tpu.memory_space<vmem>>, %arg5: memref<1x128xf32, #tpu.memory_space<vmem>>, %arg6: memref<256x128xbf16, #tpu.memory_space<vmem>>, %arg7: memref<256x128xf32, #tpu.memory_space<vmem>>) attributes {dimension_semantics = [#tpu.dimension_semantics<parallel>, #tpu.dimension_semantics<parallel>, #tpu.dimension_semantics<arbitrary>], iteration_bounds = array<i64: 1, 1, 1>, scalar_prefetch = 0 : i64, scratch_operands = 1 : i64, tpu.core_type = #tpu.core_type<tc>, window_params = [{transform_indices = @transform_0, window_bounds = array<i64: 256, 128>}, {transform_indices = @transform_1, window_bounds = array<i64: 128, 128>}, {transform_indices = @transform_2, window_bounds = array<i64: 1, 128>}, {transform_indices = @transform_3, window_bounds = array<i64: 256, 128>}]} {
    %c0_i32 = arith.constant 0 : i32
    %0 = arith.cmpi eq, %arg2, %c0_i32 : i32
    %1 = arith.extui %0 : i1 to i32
    %c0_i32_0 = arith.constant 0 : i32
    %2 = arith.cmpi ne, %1, %c0_i32_0 : i32
    scf.if %2 {
      %cst_10 = arith.constant 0.000000e+00 : f32
      %12 = vector.broadcast %cst_10 : f32 to vector<256x128xf32>
      %c0_11 = arith.constant 0 : index
      %c0_12 = arith.constant 0 : index
      %13 = vector.load %arg7[%c0_11, %c0_12] : memref<256x128xf32, #tpu.memory_space<vmem>>, vector<256x128xf32>
      tpu.vector_store %arg7[%c0_11, %c0_12], %12 {strides = array<i32>} : memref<256x128xf32, #tpu.memory_space<vmem>>, vector<256x128xf32>,
    } else {
    }
    %c0 = arith.constant 0 : index
    %c0_1 = arith.constant 0 : index
    %3 = vector.load %arg7[%c0, %c0_1] : memref<256x128xf32, #tpu.memory_space<vmem>>, vector<256x128xf32>
    %c0_2 = arith.constant 0 : index
    %c0_3 = arith.constant 0 : index
    %4 = vector.load %arg3[%c0_2, %c0_3] : memref<256x128xbf16, #tpu.memory_space<vmem>>, vector<256x128xbf16>
    %c0_4 = arith.constant 0 : index
    %c0_5 = arith.constant 0 : index
    %5 = vector.load %arg4[%c0_4, %c0_5] : memref<128x128xbf16, #tpu.memory_space<vmem>>, vector<128x128xbf16>
    %cst = arith.constant dense<0.000000e+00> : vector<256x128xf32>
    %6 = tpu.matmul %4, %5, %cst {dimension_numbers = #tpu.dot_dimension_numbers<[1], [0], [0], [1], [0, 0, 1, 1], [], []>} : vector<256x128xbf16>, vector<128x128xbf16>, vector<256x128xf32> -> vector<256x128xf32>
    %7 = arith.addf %3, %6 : vector<256x128xf32>
    %c0_6 = arith.constant 0 : index
    %c0_7 = arith.constant 0 : index
    %8 = vector.load %arg7[%c0_6, %c0_7] : memref<256x128xf32, #tpu.memory_space<vmem>>, vector<256x128xf32>
    tpu.vector_store %arg7[%c0_6, %c0_7], %7 {strides = array<i32>} : memref<256x128xf32, #tpu.memory_space<vmem>>, vector<256x128xf32>,
    %c0_i32_8 = arith.constant 0 : i32
    %9 = arith.cmpi eq, %arg2, %c0_i32_8 : i32
    %10 = arith.extui %9 : i1 to i32
    %c0_i32_9 = arith.constant 0 : i32
    %11 = arith.cmpi ne, %10, %c0_i32_9 : i32
    scf.if %11 {
      %c0_10 = arith.constant 0 : index
      %c0_11 = arith.constant 0 : index
      %12 = vector.load %arg7[%c0_10, %c0_11] : memref<256x128xf32, #tpu.memory_space<vmem>>, vector<256x128xf32>
      %c0_12 = arith.constant 0 : index
      %c0_13 = arith.constant 0 : index
      %13 = vector.load %arg5[%c0_12, %c0_13] : memref<1x128xf32, #tpu.memory_space<vmem>>, vector<1x128xf32>
      %14 = vector.broadcast %13 : vector<1x128xf32> to vector<256x128xf32>
      %15 = arith.addf %12, %14 : vector<256x128xf32>
      %cst_14 = arith.constant 0.000000e+00 : f32
      %16 = vector.broadcast %cst_14 : f32 to vector<256x128xf32>
      %17 = arith.maximumf %15, %16 : vector<256x128xf32>
      %18 = arith.truncf %17 : vector<256x128xf32> to vector<256x128xbf16>
      %c0_15 = arith.constant 0 : index
      %c0_16 = arith.constant 0 : index
      %19 = vector.load %arg6[%c0_15, %c0_16] : memref<256x128xbf16, #tpu.memory_space<vmem>>, vector<256x128xbf16>
      tpu.vector_store %arg6[%c0_15, %c0_16], %18 {strides = array<i32>} : memref<256x128xbf16, #tpu.memory_space<vmem>>, vector<256x128xbf16>,
    } else {
    }
    return
  }
  func.func @transform_0(%arg0: i32, %arg1: i32, %arg2: i32) -> (i32, i32) {
    %c0_i32 = arith.constant 0 : i32
    return %arg0, %arg2 : i32, i32
  }
  func.func @transform_1(%arg0: i32, %arg1: i32, %arg2: i32) -> (i32, i32) {
    %c0_i32 = arith.constant 0 : i32
    return %arg2, %arg1 : i32, i32
  }
  func.func @transform_2(%arg0: i32, %arg1: i32, %arg2: i32) -> (i32, i32) {
    %c0_i32 = arith.constant 0 : i32
    %c0_i32_0 = arith.constant 0 : i32
    return %c0_i32, %arg1 : i32, i32
  }
  func.func @transform_3(%arg0: i32, %arg1: i32, %arg2: i32) -> (i32, i32) {
    %c0_i32 = arith.constant 0 : i32
    return %arg0, %arg1 : i32, i32
  }
}

module attributes {stable_mosaic.version = 11 : i64} {
  func.func @_matmul_bias_act_kernel(%arg0: i32, %arg1: i32, %arg2: i32, %arg3: memref<64x128xbf16, #tpu.memory_space<vmem>>, %arg4: memref<128x128xbf16, #tpu.memory_space<vmem>>, %arg5: memref<1x128xf32, #tpu.memory_space<vmem>>, %arg6: memref<64x128xbf16, #tpu.memory_space<vmem>>, %arg7: memref<64x128xf32, #tpu.memory_space<vmem>>) attributes {dimension_semantics = [#tpu.dimension_semantics<parallel>, #tpu.dimension_semantics<parallel>, #tpu.dimension_semantics<arbitrary>], iteration_bounds = array<i64: 1, 1, 1>, scalar_prefetch = 0 : i64, scratch_operands = 1 : i64, tpu.core_type = #tpu.core_type<tc>, window_params = [{transform_indices = @transform_0, window_bounds = array<i64: 64, 128>}, {transform_indices = @transform_1, window_bounds = array<i64: 128, 128>}, {transform_indices = @transform_2, window_bounds = array<i64: 1, 128>}, {transform_indices = @transform_3, window_bounds = array<i64: 64, 128>}]} {
    %c0_i32 = arith.constant 0 : i32
    %0 = arith.cmpi eq, %arg2, %c0_i32 : i32
    %1 = arith.extui %0 : i1 to i32
    %c0_i32_0 = arith.constant 0 : i32
    %2 = arith.cmpi ne, %1, %c0_i32_0 : i32
    scf.if %2 {
      %cst_10 = arith.constant 0.000000e+00 : f32
      %12 = vector.broadcast %cst_10 : f32 to vector<64x128xf32>
      %c0_11 = arith.constant 0 : index
      %c0_12 = arith.constant 0 : index
      %13 = vector.load %arg7[%c0_11, %c0_12] : memref<64x128xf32, #tpu.memory_space<vmem>>, vector<64x128xf32>
      tpu.vector_store %arg7[%c0_11, %c0_12], %12 {strides = array<i32>} : memref<64x128xf32, #tpu.memory_space<vmem>>, vector<64x128xf32>,
    } else {
    }
    %c0 = arith.constant 0 : index
    %c0_1 = arith.constant 0 : index
    %3 = vector.load %arg7[%c0, %c0_1] : memref<64x128xf32, #tpu.memory_space<vmem>>, vector<64x128xf32>
    %c0_2 = arith.constant 0 : index
    %c0_3 = arith.constant 0 : index
    %4 = vector.load %arg3[%c0_2, %c0_3] : memref<64x128xbf16, #tpu.memory_space<vmem>>, vector<64x128xbf16>
    %c0_4 = arith.constant 0 : index
    %c0_5 = arith.constant 0 : index
    %5 = vector.load %arg4[%c0_4, %c0_5] : memref<128x128xbf16, #tpu.memory_space<vmem>>, vector<128x128xbf16>
    %cst = arith.constant dense<0.000000e+00> : vector<64x128xf32>
    %6 = tpu.matmul %4, %5, %cst {dimension_numbers = #tpu.dot_dimension_numbers<[1], [0], [0], [1], [0, 0, 1, 1], [], []>} : vector<64x128xbf16>, vector<128x128xbf16>, vector<64x128xf32> -> vector<64x128xf32>
    %7 = arith.addf %3, %6 : vector<64x128xf32>
    %c0_6 = arith.constant 0 : index
    %c0_7 = arith.constant 0 : index
    %8 = vector.load %arg7[%c0_6, %c0_7] : memref<64x128xf32, #tpu.memory_space<vmem>>, vector<64x128xf32>
    tpu.vector_store %arg7[%c0_6, %c0_7], %7 {strides = array<i32>} : memref<64x128xf32, #tpu.memory_space<vmem>>, vector<64x128xf32>,
    %c0_i32_8 = arith.constant 0 : i32
    %9 = arith.cmpi eq, %arg2, %c0_i32_8 : i32
    %10 = arith.extui %9 : i1 to i32
    %c0_i32_9 = arith.constant 0 : i32
    %11 = arith.cmpi ne, %10, %c0_i32_9 : i32
    scf.if %11 {
      %c0_10 = arith.constant 0 : index
      %c0_11 = arith.constant 0 : index
      %12 = vector.load %arg7[%c0_10, %c0_11] : memref<64x128xf32, #tpu.memory_space<vmem>>, vector<64x128xf32>
      %c0_12 = arith.constant 0 : index
      %c0_13 = arith.constant 0 : index
      %13 = vector.load %arg5[%c0_12, %c0_13] : memref<1x128xf32, #tpu.memory_space<vmem>>, vector<1x128xf32>
      %14 = vector.broadcast %13 : vector<1x128xf32> to vector<64x128xf32>
      %15 = arith.addf %12, %14 : vector<64x128xf32>
      %cst_14 = arith.constant 0.000000e+00 : f32
      %16 = vector.broadcast %cst_14 : f32 to vector<64x128xf32>
      %17 = arith.maximumf %15, %16 : vector<64x128xf32>
      %18 = arith.truncf %17 : vector<64x128xf32> to vector<64x128xbf16>
      %c0_15 = arith.constant 0 : index
      %c0_16 = arith.constant 0 : index
      %19 = vector.load %arg6[%c0_15, %c0_16] : memref<64x128xbf16, #tpu.memory_space<vmem>>, vector<64x128xbf16>
      tpu.vector_store %arg6[%c0_15, %c0_16], %18 {strides = array<i32>} : memref<64x128xbf16, #tpu.memory_space<vmem>>, vector<64x128xbf16>,
    } else {
    }
    return
  }
  func.func @transform_0(%arg0: i32, %arg1: i32, %arg2: i32) -> (i32, i32) {
    %c0_i32 = arith.constant 0 : i32
    return %arg0, %arg2 : i32, i32
  }
  func.func @transform_1(%arg0: i32, %arg1: i32, %arg2: i32) -> (i32, i32) {
    %c0_i32 = arith.constant 0 : i32
    return %arg2, %arg1 : i32, i32
  }
  func.func @transform_2(%arg0: i32, %arg1: i32, %arg2: i32) -> (i32, i32) {
    %c0_i32 = arith.constant 0 : i32
    %c0_i32_0 = arith.constant 0 : i32
    return %c0_i32, %arg1 : i32, i32
  }
  func.func @transform_3(%arg0: i32, %arg1: i32, %arg2: i32) -> (i32, i32) {
    %c0_i32 = arith.constant 0 : i32
    return %arg0, %arg1 : i32, i32
  }
}

module attributes {stable_mosaic.version = 11 : i64} {
  func.func @_matmul_bias_act_kernel(%arg0: i32, %arg1: i32, %arg2: i32, %arg3: memref<16x128xbf16, #tpu.memory_space<vmem>>, %arg4: memref<128x128xbf16, #tpu.memory_space<vmem>>, %arg5: memref<1x128xf32, #tpu.memory_space<vmem>>, %arg6: memref<16x128xf32, #tpu.memory_space<vmem>>, %arg7: memref<16x128xf32, #tpu.memory_space<vmem>>) attributes {dimension_semantics = [#tpu.dimension_semantics<parallel>, #tpu.dimension_semantics<parallel>, #tpu.dimension_semantics<arbitrary>], iteration_bounds = array<i64: 1, 1, 1>, scalar_prefetch = 0 : i64, scratch_operands = 1 : i64, tpu.core_type = #tpu.core_type<tc>, window_params = [{transform_indices = @transform_0, window_bounds = array<i64: 16, 128>}, {transform_indices = @transform_1, window_bounds = array<i64: 128, 128>}, {transform_indices = @transform_2, window_bounds = array<i64: 1, 128>}, {transform_indices = @transform_3, window_bounds = array<i64: 16, 128>}]} {
    %c0_i32 = arith.constant 0 : i32
    %0 = arith.cmpi eq, %arg2, %c0_i32 : i32
    %1 = arith.extui %0 : i1 to i32
    %c0_i32_0 = arith.constant 0 : i32
    %2 = arith.cmpi ne, %1, %c0_i32_0 : i32
    scf.if %2 {
      %cst_10 = arith.constant 0.000000e+00 : f32
      %12 = vector.broadcast %cst_10 : f32 to vector<16x128xf32>
      %c0_11 = arith.constant 0 : index
      %c0_12 = arith.constant 0 : index
      %13 = vector.load %arg7[%c0_11, %c0_12] : memref<16x128xf32, #tpu.memory_space<vmem>>, vector<16x128xf32>
      tpu.vector_store %arg7[%c0_11, %c0_12], %12 {strides = array<i32>} : memref<16x128xf32, #tpu.memory_space<vmem>>, vector<16x128xf32>,
    } else {
    }
    %c0 = arith.constant 0 : index
    %c0_1 = arith.constant 0 : index
    %3 = vector.load %arg7[%c0, %c0_1] : memref<16x128xf32, #tpu.memory_space<vmem>>, vector<16x128xf32>
    %c0_2 = arith.constant 0 : index
    %c0_3 = arith.constant 0 : index
    %4 = vector.load %arg3[%c0_2, %c0_3] : memref<16x128xbf16, #tpu.memory_space<vmem>>, vector<16x128xbf16>
    %c0_4 = arith.constant 0 : index
    %c0_5 = arith.constant 0 : index
    %5 = vector.load %arg4[%c0_4, %c0_5] : memref<128x128xbf16, #tpu.memory_space<vmem>>, vector<128x128xbf16>
    %cst = arith.constant dense<0.000000e+00> : vector<16x128xf32>
    %6 = tpu.matmul %4, %5, %cst {dimension_numbers = #tpu.dot_dimension_numbers<[1], [0], [0], [1], [0, 0, 1, 1], [], []>} : vector<16x128xbf16>, vector<128x128xbf16>, vector<16x128xf32> -> vector<16x128xf32>
    %7 = arith.addf %3, %6 : vector<16x128xf32>
    %c0_6 = arith.constant 0 : index
    %c0_7 = arith.constant 0 : index
    %8 = vector.load %arg7[%c0_6, %c0_7] : memref<16x128xf32, #tpu.memory_space<vmem>>, vector<16x128xf32>
    tpu.vector_store %arg7[%c0_6, %c0_7], %7 {strides = array<i32>} : memref<16x128xf32, #tpu.memory_space<vmem>>, vector<16x128xf32>,
    %c0_i32_8 = arith.constant 0 : i32
    %9 = arith.cmpi eq, %arg2, %c0_i32_8 : i32
    %10 = arith.extui %9 : i1 to i32
    %c0_i32_9 = arith.constant 0 : i32
    %11 = arith.cmpi ne, %10, %c0_i32_9 : i32
    scf.if %11 {
      %c0_10 = arith.constant 0 : index
      %c0_11 = arith.constant 0 : index
      %12 = vector.load %arg7[%c0_10, %c0_11] : memref<16x128xf32, #tpu.memory_space<vmem>>, vector<16x128xf32>
      %c0_12 = arith.constant 0 : index
      %c0_13 = arith.constant 0 : index
      %13 = vector.load %arg5[%c0_12, %c0_13] : memref<1x128xf32, #tpu.memory_space<vmem>>, vector<1x128xf32>
      %14 = vector.broadcast %13 : vector<1x128xf32> to vector<16x128xf32>
      %15 = arith.addf %12, %14 : vector<16x128xf32>
      %c0_14 = arith.constant 0 : index
      %c0_15 = arith.constant 0 : index
      %16 = vector.load %arg6[%c0_14, %c0_15] : memref<16x128xf32, #tpu.memory_space<vmem>>, vector<16x128xf32>
      tpu.vector_store %arg6[%c0_14, %c0_15], %15 {strides = array<i32>} : memref<16x128xf32, #tpu.memory_space<vmem>>, vector<16x128xf32>,
    } else {
    }
    return
  }
  func.func @transform_0(%arg0: i32, %arg1: i32, %arg2: i32) -> (i32, i32) {
    %c0_i32 = arith.constant 0 : i32
    return %arg0, %arg2 : i32, i32
  }
  func.func @transform_1(%arg0: i32, %arg1: i32, %arg2: i32) -> (i32, i32) {
    %c0_i32 = arith.constant 0 : i32
    return %arg2, %arg1 : i32, i32
  }
  func.func @transform_2(%arg0: i32, %arg1: i32, %arg2: i32) -> (i32, i32) {
    %c0_i32 = arith.constant 0 : i32
    %c0_i32_0 = arith.constant 0 : i32
    return %c0_i32, %arg1 : i32, i32
  }
  func.func @transform_3(%arg0: i32, %arg1: i32, %arg2: i32) -> (i32, i32) {
    %c0_i32 = arith.constant 0 : i32
    return %arg0, %arg1 : i32, i32
  }
}

module attributes {stable_mosaic.version = 11 : i64} {
  func.func @_matmul_bias_act_kernel(%arg0: i32, %arg1: i32, %arg2: i32, %arg3: memref<16x256xbf16, #tpu.memory_space<vmem>>, %arg4: memref<256x128xbf16, #tpu.memory_space<vmem>>, %arg5: memref<1x128xf32, #tpu.memory_space<vmem>>, %arg6: memref<16x128xbf16, #tpu.memory_space<vmem>>, %arg7: memref<16x128xf32, #tpu.memory_space<vmem>>) attributes {dimension_semantics = [#tpu.dimension_semantics<parallel>, #tpu.dimension_semantics<parallel>, #tpu.dimension_semantics<arbitrary>], iteration_bounds = array<i64: 1, 1, 1>, scalar_prefetch = 0 : i64, scratch_operands = 1 : i64, tpu.core_type = #tpu.core_type<tc>, window_params = [{transform_indices = @transform_0, window_bounds = array<i64: 16, 256>}, {transform_indices = @transform_1, window_bounds = array<i64: 256, 128>}, {transform_indices = @transform_2, window_bounds = array<i64: 1, 128>}, {transform_indices = @transform_3, window_bounds = array<i64: 16, 128>}]} {
    %c0_i32 = arith.constant 0 : i32
    %0 = arith.cmpi eq, %arg2, %c0_i32 : i32
    %1 = arith.extui %0 : i1 to i32
    %c0_i32_0 = arith.constant 0 : i32
    %2 = arith.cmpi ne, %1, %c0_i32_0 : i32
    scf.if %2 {
      %cst_10 = arith.constant 0.000000e+00 : f32
      %12 = vector.broadcast %cst_10 : f32 to vector<16x128xf32>
      %c0_11 = arith.constant 0 : index
      %c0_12 = arith.constant 0 : index
      %13 = vector.load %arg7[%c0_11, %c0_12] : memref<16x128xf32, #tpu.memory_space<vmem>>, vector<16x128xf32>
      tpu.vector_store %arg7[%c0_11, %c0_12], %12 {strides = array<i32>} : memref<16x128xf32, #tpu.memory_space<vmem>>, vector<16x128xf32>,
    } else {
    }
    %c0 = arith.constant 0 : index
    %c0_1 = arith.constant 0 : index
    %3 = vector.load %arg7[%c0, %c0_1] : memref<16x128xf32, #tpu.memory_space<vmem>>, vector<16x128xf32>
    %c0_2 = arith.constant 0 : index
    %c0_3 = arith.constant 0 : index
    %4 = vector.load %arg3[%c0_2, %c0_3] : memref<16x256xbf16, #tpu.memory_space<vmem>>, vector<16x256xbf16>
    %c0_4 = arith.constant 0 : index
    %c0_5 = arith.constant 0 : index
    %5 = vector.load %arg4[%c0_4, %c0_5] : memref<256x128xbf16, #tpu.memory_space<vmem>>, vector<256x128xbf16>
    %cst = arith.constant dense<0.000000e+00> : vector<16x128xf32>
    %6 = tpu.matmul %4, %5, %cst {dimension_numbers = #tpu.dot_dimension_numbers<[1], [0], [0], [1], [0, 0, 1, 1], [], []>} : vector<16x256xbf16>, vector<256x128xbf16>, vector<16x128xf32> -> vector<16x128xf32>
    %7 = arith.addf %3, %6 : vector<16x128xf32>
    %c0_6 = arith.constant 0 : index
    %c0_7 = arith.constant 0 : index
    %8 = vector.load %arg7[%c0_6, %c0_7] : memref<16x128xf32, #tpu.memory_space<vmem>>, vector<16x128xf32>
    tpu.vector_store %arg7[%c0_6, %c0_7], %7 {strides = array<i32>} : memref<16x128xf32, #tpu.memory_space<vmem>>, vector<16x128xf32>,
    %c0_i32_8 = arith.constant 0 : i32
    %9 = arith.cmpi eq, %arg2, %c0_i32_8 : i32
    %10 = arith.extui %9 : i1 to i32
    %c0_i32_9 = arith.constant 0 : i32
    %11 = arith.cmpi ne, %10, %c0_i32_9 : i32
    scf.if %11 {
      %c0_10 = arith.constant 0 : index
      %c0_11 = arith.constant 0 : index
      %12 = vector.load %arg7[%c0_10, %c0_11] : memref<16x128xf32, #tpu.memory_space<vmem>>, vector<16x128xf32>
      %c0_12 = arith.constant 0 : index
      %c0_13 = arith.constant 0 : index
      %13 = vector.load %arg5[%c0_12, %c0_13] : memref<1x128xf32, #tpu.memory_space<vmem>>, vector<1x128xf32>
      %14 = vector.broadcast %13 : vector<1x128xf32> to vector<16x128xf32>
      %15 = arith.addf %12, %14 : vector<16x128xf32>
      %cst_14 = arith.constant 0.000000e+00 : f32
      %16 = vector.broadcast %cst_14 : f32 to vector<16x128xf32>
      %17 = arith.maximumf %15, %16 : vector<16x128xf32>
      %18 = arith.truncf %17 : vector<16x128xf32> to vector<16x128xbf16>
      %c0_15 = arith.constant 0 : index
      %c0_16 = arith.constant 0 : index
      %19 = vector.load %arg6[%c0_15, %c0_16] : memref<16x128xbf16, #tpu.memory_space<vmem>>, vector<16x128xbf16>
      tpu.vector_store %arg6[%c0_15, %c0_16], %18 {strides = array<i32>} : memref<16x128xbf16, #tpu.memory_space<vmem>>, vector<16x128xbf16>,
    } else {
    }
    return
  }
  func.func @transform_0(%arg0: i32, %arg1: i32, %arg2: i32) -> (i32, i32) {
    %c0_i32 = arith.constant 0 : i32
    return %arg0, %arg2 : i32, i32
  }
  func.func @transform_1(%arg0: i32, %arg1: i32, %arg2: i32) -> (i32, i32) {
    %c0_i32 = arith.constant 0 : i32
    return %arg2, %arg1 : i32, i32
  }
  func.func @transform_2(%arg0: i32, %arg1: i32, %arg2: i32) -> (i32, i32) {
    %c0_i32 = arith.constant 0 : i32
    %c0_i32_0 = arith.constant 0 : i32
    return %c0_i32, %arg1 : i32, i32
  }
  func.func @transform_3(%arg0: i32, %arg1: i32, %arg2: i32) -> (i32, i32) {
    %c0_i32 = arith.constant 0 : i32
    return %arg0, %arg1 : i32, i32
  }
}

module attributes {stable_mosaic.version = 11 : i64} {
  func.func @_matmul_bias_act_kernel(%arg0: i32, %arg1: i32, %arg2: i32, %arg3: memref<16x128xbf16, #tpu.memory_space<vmem>>, %arg4: memref<128x128xbf16, #tpu.memory_space<vmem>>, %arg5: memref<1x128xf32, #tpu.memory_space<vmem>>, %arg6: memref<16x128xbf16, #tpu.memory_space<vmem>>, %arg7: memref<16x128xf32, #tpu.memory_space<vmem>>) attributes {dimension_semantics = [#tpu.dimension_semantics<parallel>, #tpu.dimension_semantics<parallel>, #tpu.dimension_semantics<arbitrary>], iteration_bounds = array<i64: 1, 1, 1>, scalar_prefetch = 0 : i64, scratch_operands = 1 : i64, tpu.core_type = #tpu.core_type<tc>, window_params = [{transform_indices = @transform_0, window_bounds = array<i64: 16, 128>}, {transform_indices = @transform_1, window_bounds = array<i64: 128, 128>}, {transform_indices = @transform_2, window_bounds = array<i64: 1, 128>}, {transform_indices = @transform_3, window_bounds = array<i64: 16, 128>}]} {
    %c0_i32 = arith.constant 0 : i32
    %0 = arith.cmpi eq, %arg2, %c0_i32 : i32
    %1 = arith.extui %0 : i1 to i32
    %c0_i32_0 = arith.constant 0 : i32
    %2 = arith.cmpi ne, %1, %c0_i32_0 : i32
    scf.if %2 {
      %cst_10 = arith.constant 0.000000e+00 : f32
      %12 = vector.broadcast %cst_10 : f32 to vector<16x128xf32>
      %c0_11 = arith.constant 0 : index
      %c0_12 = arith.constant 0 : index
      %13 = vector.load %arg7[%c0_11, %c0_12] : memref<16x128xf32, #tpu.memory_space<vmem>>, vector<16x128xf32>
      tpu.vector_store %arg7[%c0_11, %c0_12], %12 {strides = array<i32>} : memref<16x128xf32, #tpu.memory_space<vmem>>, vector<16x128xf32>,
    } else {
    }
    %c0 = arith.constant 0 : index
    %c0_1 = arith.constant 0 : index
    %3 = vector.load %arg7[%c0, %c0_1] : memref<16x128xf32, #tpu.memory_space<vmem>>, vector<16x128xf32>
    %c0_2 = arith.constant 0 : index
    %c0_3 = arith.constant 0 : index
    %4 = vector.load %arg3[%c0_2, %c0_3] : memref<16x128xbf16, #tpu.memory_space<vmem>>, vector<16x128xbf16>
    %c0_4 = arith.constant 0 : index
    %c0_5 = arith.constant 0 : index
    %5 = vector.load %arg4[%c0_4, %c0_5] : memref<128x128xbf16, #tpu.memory_space<vmem>>, vector<128x128xbf16>
    %cst = arith.constant dense<0.000000e+00> : vector<16x128xf32>
    %6 = tpu.matmul %4, %5, %cst {dimension_numbers = #tpu.dot_dimension_numbers<[1], [0], [0], [1], [0, 0, 1, 1], [], []>} : vector<16x128xbf16>, vector<128x128xbf16>, vector<16x128xf32> -> vector<16x128xf32>
    %7 = arith.addf %3, %6 : vector<16x128xf32>
    %c0_6 = arith.constant 0 : index
    %c0_7 = arith.constant 0 : index
    %8 = vector.load %arg7[%c0_6, %c0_7] : memref<16x128xf32, #tpu.memory_space<vmem>>, vector<16x128xf32>
    tpu.vector_store %arg7[%c0_6, %c0_7], %7 {strides = array<i32>} : memref<16x128xf32, #tpu.memory_space<vmem>>, vector<16x128xf32>,
    %c0_i32_8 = arith.constant 0 : i32
    %9 = arith.cmpi eq, %arg2, %c0_i32_8 : i32
    %10 = arith.extui %9 : i1 to i32
    %c0_i32_9 = arith.constant 0 : i32
    %11 = arith.cmpi ne, %10, %c0_i32_9 : i32
    scf.if %11 {
      %c0_10 = arith.constant 0 : index
      %c0_11 = arith.constant 0 : index
      %12 = vector.load %arg7[%c0_10, %c0_11] : memref<16x128xf32, #tpu.memory_space<vmem>>, vector<16x128xf32>
      %c0_12 = arith.constant 0 : index
      %c0_13 = arith.constant 0 : index
      %13 = vector.load %arg5[%c0_12, %c0_13] : memref<1x128xf32, #tpu.memory_space<vmem>>, vector<1x128xf32>
      %14 = vector.broadcast %13 : vector<1x128xf32> to vector<16x128xf32>
      %15 = arith.addf %12, %14 : vector<16x128xf32>
      %cst_14 = arith.constant 0.000000e+00 : f32
      %16 = vector.broadcast %cst_14 : f32 to vector<16x128xf32>
      %17 = arith.maximumf %15, %16 : vector<16x128xf32>
      %18 = arith.truncf %17 : vector<16x128xf32> to vector<16x128xbf16>
      %c0_15 = arith.constant 0 : index
      %c0_16 = arith.constant 0 : index
      %19 = vector.load %arg6[%c0_15, %c0_16] : memref<16x128xbf16, #tpu.memory_space<vmem>>, vector<16x128xbf16>
      tpu.vector_store %arg6[%c0_15, %c0_16], %18 {strides = array<i32>} : memref<16x128xbf16, #tpu.memory_space<vmem>>, vector<16x128xbf16>,
    } else {
    }
    return
  }
  func.func @transform_0(%arg0: i32, %arg1: i32, %arg2: i32) -> (i32, i32) {
    %c0_i32 = arith.constant 0 : i32
    return %arg0, %arg2 : i32, i32
  }
  func.func @transform_1(%arg0: i32, %arg1: i32, %arg2: i32) -> (i32, i32) {
    %c0_i32 = arith.constant 0 : i32
    return %arg2, %arg1 : i32, i32
  }
  func.func @transform_2(%arg0: i32, %arg1: i32, %arg2: i32) -> (i32, i32) {
    %c0_i32 = arith.constant 0 : i32
    %c0_i32_0 = arith.constant 0 : i32
    return %c0_i32, %arg1 : i32, i32
  }
  func.func @transform_3(%arg0: i32, %arg1: i32, %arg2: i32) -> (i32, i32) {
    %c0_i32 = arith.constant 0 : i32
    return %arg0, %arg1 : i32, i32
  }
}

module attributes {stable_mosaic.version = 11 : i64} {
  func.func @_matmul_bias_act_kernel(%arg0: i32, %arg1: i32, %arg2: i32, %arg3: memref<64x128xbf16, #tpu.memory_space<vmem>>, %arg4: memref<128x128xbf16, #tpu.memory_space<vmem>>, %arg5: memref<1x128xf32, #tpu.memory_space<vmem>>, %arg6: memref<64x128xbf16, #tpu.memory_space<vmem>>, %arg7: memref<64x128xf32, #tpu.memory_space<vmem>>) attributes {dimension_semantics = [#tpu.dimension_semantics<parallel>, #tpu.dimension_semantics<parallel>, #tpu.dimension_semantics<arbitrary>], iteration_bounds = array<i64: 1, 1, 1>, scalar_prefetch = 0 : i64, scratch_operands = 1 : i64, tpu.core_type = #tpu.core_type<tc>, window_params = [{transform_indices = @transform_0, window_bounds = array<i64: 64, 128>}, {transform_indices = @transform_1, window_bounds = array<i64: 128, 128>}, {transform_indices = @transform_2, window_bounds = array<i64: 1, 128>}, {transform_indices = @transform_3, window_bounds = array<i64: 64, 128>}]} {
    %c0_i32 = arith.constant 0 : i32
    %0 = arith.cmpi eq, %arg2, %c0_i32 : i32
    %1 = arith.extui %0 : i1 to i32
    %c0_i32_0 = arith.constant 0 : i32
    %2 = arith.cmpi ne, %1, %c0_i32_0 : i32
    scf.if %2 {
      %cst_10 = arith.constant 0.000000e+00 : f32
      %12 = vector.broadcast %cst_10 : f32 to vector<64x128xf32>
      %c0_11 = arith.constant 0 : index
      %c0_12 = arith.constant 0 : index
      %13 = vector.load %arg7[%c0_11, %c0_12] : memref<64x128xf32, #tpu.memory_space<vmem>>, vector<64x128xf32>
      tpu.vector_store %arg7[%c0_11, %c0_12], %12 {strides = array<i32>} : memref<64x128xf32, #tpu.memory_space<vmem>>, vector<64x128xf32>,
    } else {
    }
    %c0 = arith.constant 0 : index
    %c0_1 = arith.constant 0 : index
    %3 = vector.load %arg7[%c0, %c0_1] : memref<64x128xf32, #tpu.memory_space<vmem>>, vector<64x128xf32>
    %c0_2 = arith.constant 0 : index
    %c0_3 = arith.constant 0 : index
    %4 = vector.load %arg3[%c0_2, %c0_3] : memref<64x128xbf16, #tpu.memory_space<vmem>>, vector<64x128xbf16>
    %c0_4 = arith.constant 0 : index
    %c0_5 = arith.constant 0 : index
    %5 = vector.load %arg4[%c0_4, %c0_5] : memref<128x128xbf16, #tpu.memory_space<vmem>>, vector<128x128xbf16>
    %cst = arith.constant dense<0.000000e+00> : vector<64x128xf32>
    %6 = tpu.matmul %4, %5, %cst {dimension_numbers = #tpu.dot_dimension_numbers<[1], [0], [0], [1], [0, 0, 1, 1], [], []>} : vector<64x128xbf16>, vector<128x128xbf16>, vector<64x128xf32> -> vector<64x128xf32>
    %7 = arith.addf %3, %6 : vector<64x128xf32>
    %c0_6 = arith.constant 0 : index
    %c0_7 = arith.constant 0 : index
    %8 = vector.load %arg7[%c0_6, %c0_7] : memref<64x128xf32, #tpu.memory_space<vmem>>, vector<64x128xf32>
    tpu.vector_store %arg7[%c0_6, %c0_7], %7 {strides = array<i32>} : memref<64x128xf32, #tpu.memory_space<vmem>>, vector<64x128xf32>,
    %c0_i32_8 = arith.constant 0 : i32
    %9 = arith.cmpi eq, %arg2, %c0_i32_8 : i32
    %10 = arith.extui %9 : i1 to i32
    %c0_i32_9 = arith.constant 0 : i32
    %11 = arith.cmpi ne, %10, %c0_i32_9 : i32
    scf.if %11 {
      %c0_10 = arith.constant 0 : index
      %c0_11 = arith.constant 0 : index
      %12 = vector.load %arg7[%c0_10, %c0_11] : memref<64x128xf32, #tpu.memory_space<vmem>>, vector<64x128xf32>
      %c0_12 = arith.constant 0 : index
      %c0_13 = arith.constant 0 : index
      %13 = vector.load %arg5[%c0_12, %c0_13] : memref<1x128xf32, #tpu.memory_space<vmem>>, vector<1x128xf32>
      %14 = vector.broadcast %13 : vector<1x128xf32> to vector<64x128xf32>
      %15 = arith.addf %12, %14 : vector<64x128xf32>
      %cst_14 = arith.constant 0.000000e+00 : f32
      %16 = vector.broadcast %cst_14 : f32 to vector<64x128xf32>
      %17 = arith.maximumf %15, %16 : vector<64x128xf32>
      %18 = arith.truncf %17 : vector<64x128xf32> to vector<64x128xbf16>
      %c0_15 = arith.constant 0 : index
      %c0_16 = arith.constant 0 : index
      %19 = vector.load %arg6[%c0_15, %c0_16] : memref<64x128xbf16, #tpu.memory_space<vmem>>, vector<64x128xbf16>
      tpu.vector_store %arg6[%c0_15, %c0_16], %18 {strides = array<i32>} : memref<64x128xbf16, #tpu.memory_space<vmem>>, vector<64x128xbf16>,
    } else {
    }
    return
  }
  func.func @transform_0(%arg0: i32, %arg1: i32, %arg2: i32) -> (i32, i32) {
    %c0_i32 = arith.constant 0 : i32
    return %arg0, %arg2 : i32, i32
  }
  func.func @transform_1(%arg0: i32, %arg1: i32, %arg2: i32) -> (i32, i32) {
    %c0_i32 = arith.constant 0 : i32
    return %arg2, %arg1 : i32, i32
  }
  func.func @transform_2(%arg0: i32, %arg1: i32, %arg2: i32) -> (i32, i32) {
    %c0_i32 = arith.constant 0 : i32
    %c0_i32_0 = arith.constant 0 : i32
    return %c0_i32, %arg1 : i32, i32
  }
  func.func @transform_3(%arg0: i32, %arg1: i32, %arg2: i32) -> (i32, i32) {
    %c0_i32 = arith.constant 0 : i32
    return %arg0, %arg1 : i32, i32
  }
}

module attributes {stable_mosaic.version = 11 : i64} {
  func.func @_matmul_bias_act_kernel(%arg0: i32, %arg1: i32, %arg2: i32, %arg3: memref<256x128xbf16, #tpu.memory_space<vmem>>, %arg4: memref<128x128xbf16, #tpu.memory_space<vmem>>, %arg5: memref<1x128xf32, #tpu.memory_space<vmem>>, %arg6: memref<256x128xbf16, #tpu.memory_space<vmem>>, %arg7: memref<256x128xf32, #tpu.memory_space<vmem>>) attributes {dimension_semantics = [#tpu.dimension_semantics<parallel>, #tpu.dimension_semantics<parallel>, #tpu.dimension_semantics<arbitrary>], iteration_bounds = array<i64: 1, 1, 1>, scalar_prefetch = 0 : i64, scratch_operands = 1 : i64, tpu.core_type = #tpu.core_type<tc>, window_params = [{transform_indices = @transform_0, window_bounds = array<i64: 256, 128>}, {transform_indices = @transform_1, window_bounds = array<i64: 128, 128>}, {transform_indices = @transform_2, window_bounds = array<i64: 1, 128>}, {transform_indices = @transform_3, window_bounds = array<i64: 256, 128>}]} {
    %c0_i32 = arith.constant 0 : i32
    %0 = arith.cmpi eq, %arg2, %c0_i32 : i32
    %1 = arith.extui %0 : i1 to i32
    %c0_i32_0 = arith.constant 0 : i32
    %2 = arith.cmpi ne, %1, %c0_i32_0 : i32
    scf.if %2 {
      %cst_10 = arith.constant 0.000000e+00 : f32
      %12 = vector.broadcast %cst_10 : f32 to vector<256x128xf32>
      %c0_11 = arith.constant 0 : index
      %c0_12 = arith.constant 0 : index
      %13 = vector.load %arg7[%c0_11, %c0_12] : memref<256x128xf32, #tpu.memory_space<vmem>>, vector<256x128xf32>
      tpu.vector_store %arg7[%c0_11, %c0_12], %12 {strides = array<i32>} : memref<256x128xf32, #tpu.memory_space<vmem>>, vector<256x128xf32>,
    } else {
    }
    %c0 = arith.constant 0 : index
    %c0_1 = arith.constant 0 : index
    %3 = vector.load %arg7[%c0, %c0_1] : memref<256x128xf32, #tpu.memory_space<vmem>>, vector<256x128xf32>
    %c0_2 = arith.constant 0 : index
    %c0_3 = arith.constant 0 : index
    %4 = vector.load %arg3[%c0_2, %c0_3] : memref<256x128xbf16, #tpu.memory_space<vmem>>, vector<256x128xbf16>
    %c0_4 = arith.constant 0 : index
    %c0_5 = arith.constant 0 : index
    %5 = vector.load %arg4[%c0_4, %c0_5] : memref<128x128xbf16, #tpu.memory_space<vmem>>, vector<128x128xbf16>
    %cst = arith.constant dense<0.000000e+00> : vector<256x128xf32>
    %6 = tpu.matmul %4, %5, %cst {dimension_numbers = #tpu.dot_dimension_numbers<[1], [0], [0], [1], [0, 0, 1, 1], [], []>} : vector<256x128xbf16>, vector<128x128xbf16>, vector<256x128xf32> -> vector<256x128xf32>
    %7 = arith.addf %3, %6 : vector<256x128xf32>
    %c0_6 = arith.constant 0 : index
    %c0_7 = arith.constant 0 : index
    %8 = vector.load %arg7[%c0_6, %c0_7] : memref<256x128xf32, #tpu.memory_space<vmem>>, vector<256x128xf32>
    tpu.vector_store %arg7[%c0_6, %c0_7], %7 {strides = array<i32>} : memref<256x128xf32, #tpu.memory_space<vmem>>, vector<256x128xf32>,
    %c0_i32_8 = arith.constant 0 : i32
    %9 = arith.cmpi eq, %arg2, %c0_i32_8 : i32
    %10 = arith.extui %9 : i1 to i32
    %c0_i32_9 = arith.constant 0 : i32
    %11 = arith.cmpi ne, %10, %c0_i32_9 : i32
    scf.if %11 {
      %c0_10 = arith.constant 0 : index
      %c0_11 = arith.constant 0 : index
      %12 = vector.load %arg7[%c0_10, %c0_11] : memref<256x128xf32, #tpu.memory_space<vmem>>, vector<256x128xf32>
      %c0_12 = arith.constant 0 : index
      %c0_13 = arith.constant 0 : index
      %13 = vector.load %arg5[%c0_12, %c0_13] : memref<1x128xf32, #tpu.memory_space<vmem>>, vector<1x128xf32>
      %14 = vector.broadcast %13 : vector<1x128xf32> to vector<256x128xf32>
      %15 = arith.addf %12, %14 : vector<256x128xf32>
      %cst_14 = arith.constant 0.000000e+00 : f32
      %16 = vector.broadcast %cst_14 : f32 to vector<256x128xf32>
      %17 = arith.maximumf %15, %16 : vector<256x128xf32>
      %18 = arith.truncf %17 : vector<256x128xf32> to vector<256x128xbf16>
      %c0_15 = arith.constant 0 : index
      %c0_16 = arith.constant 0 : index
      %19 = vector.load %arg6[%c0_15, %c0_16] : memref<256x128xbf16, #tpu.memory_space<vmem>>, vector<256x128xbf16>
      tpu.vector_store %arg6[%c0_15, %c0_16], %18 {strides = array<i32>} : memref<256x128xbf16, #tpu.memory_space<vmem>>, vector<256x128xbf16>,
    } else {
    }
    return
  }
  func.func @transform_0(%arg0: i32, %arg1: i32, %arg2: i32) -> (i32, i32) {
    %c0_i32 = arith.constant 0 : i32
    return %arg0, %arg2 : i32, i32
  }
  func.func @transform_1(%arg0: i32, %arg1: i32, %arg2: i32) -> (i32, i32) {
    %c0_i32 = arith.constant 0 : i32
    return %arg2, %arg1 : i32, i32
  }
  func.func @transform_2(%arg0: i32, %arg1: i32, %arg2: i32) -> (i32, i32) {
    %c0_i32 = arith.constant 0 : i32
    %c0_i32_0 = arith.constant 0 : i32
    return %c0_i32, %arg1 : i32, i32
  }
  func.func @transform_3(%arg0: i32, %arg1: i32, %arg2: i32) -> (i32, i32) {
    %c0_i32 = arith.constant 0 : i32
    return %arg0, %arg1 : i32, i32
  }
}

module attributes {stable_mosaic.version = 11 : i64} {
  func.func @_matmul_bias_act_kernel(%arg0: i32, %arg1: i32, %arg2: i32, %arg3: memref<512x128xbf16, #tpu.memory_space<vmem>>, %arg4: memref<128x128xbf16, #tpu.memory_space<vmem>>, %arg5: memref<1x128xf32, #tpu.memory_space<vmem>>, %arg6: memref<512x128xbf16, #tpu.memory_space<vmem>>, %arg7: memref<512x128xf32, #tpu.memory_space<vmem>>) attributes {dimension_semantics = [#tpu.dimension_semantics<parallel>, #tpu.dimension_semantics<parallel>, #tpu.dimension_semantics<arbitrary>], iteration_bounds = array<i64: 2, 1, 1>, scalar_prefetch = 0 : i64, scratch_operands = 1 : i64, tpu.core_type = #tpu.core_type<tc>, window_params = [{transform_indices = @transform_0, window_bounds = array<i64: 512, 128>}, {transform_indices = @transform_1, window_bounds = array<i64: 128, 128>}, {transform_indices = @transform_2, window_bounds = array<i64: 1, 128>}, {transform_indices = @transform_3, window_bounds = array<i64: 512, 128>}]} {
    %c0_i32 = arith.constant 0 : i32
    %0 = arith.cmpi eq, %arg2, %c0_i32 : i32
    %1 = arith.extui %0 : i1 to i32
    %c0_i32_0 = arith.constant 0 : i32
    %2 = arith.cmpi ne, %1, %c0_i32_0 : i32
    scf.if %2 {
      %cst_10 = arith.constant 0.000000e+00 : f32
      %12 = vector.broadcast %cst_10 : f32 to vector<512x128xf32>
      %c0_11 = arith.constant 0 : index
      %c0_12 = arith.constant 0 : index
      %13 = vector.load %arg7[%c0_11, %c0_12] : memref<512x128xf32, #tpu.memory_space<vmem>>, vector<512x128xf32>
      tpu.vector_store %arg7[%c0_11, %c0_12], %12 {strides = array<i32>} : memref<512x128xf32, #tpu.memory_space<vmem>>, vector<512x128xf32>,
    } else {
    }
    %c0 = arith.constant 0 : index
    %c0_1 = arith.constant 0 : index
    %3 = vector.load %arg7[%c0, %c0_1] : memref<512x128xf32, #tpu.memory_space<vmem>>, vector<512x128xf32>
    %c0_2 = arith.constant 0 : index
    %c0_3 = arith.constant 0 : index
    %4 = vector.load %arg3[%c0_2, %c0_3] : memref<512x128xbf16, #tpu.memory_space<vmem>>, vector<512x128xbf16>
    %c0_4 = arith.constant 0 : index
    %c0_5 = arith.constant 0 : index
    %5 = vector.load %arg4[%c0_4, %c0_5] : memref<128x128xbf16, #tpu.memory_space<vmem>>, vector<128x128xbf16>
    %cst = arith.constant dense<0.000000e+00> : vector<512x128xf32>
    %6 = tpu.matmul %4, %5, %cst {dimension_numbers = #tpu.dot_dimension_numbers<[1], [0], [0], [1], [0, 0, 1, 1], [], []>} : vector<512x128xbf16>, vector<128x128xbf16>, vector<512x128xf32> -> vector<512x128xf32>
    %7 = arith.addf %3, %6 : vector<512x128xf32>
    %c0_6 = arith.constant 0 : index
    %c0_7 = arith.constant 0 : index
    %8 = vector.load %arg7[%c0_6, %c0_7] : memref<512x128xf32, #tpu.memory_space<vmem>>, vector<512x128xf32>
    tpu.vector_store %arg7[%c0_6, %c0_7], %7 {strides = array<i32>} : memref<512x128xf32, #tpu.memory_space<vmem>>, vector<512x128xf32>,
    %c0_i32_8 = arith.constant 0 : i32
    %9 = arith.cmpi eq, %arg2, %c0_i32_8 : i32
    %10 = arith.extui %9 : i1 to i32
    %c0_i32_9 = arith.constant 0 : i32
    %11 = arith.cmpi ne, %10, %c0_i32_9 : i32
    scf.if %11 {
      %c0_10 = arith.constant 0 : index
      %c0_11 = arith.constant 0 : index
      %12 = vector.load %arg7[%c0_10, %c0_11] : memref<512x128xf32, #tpu.memory_space<vmem>>, vector<512x128xf32>
      %c0_12 = arith.constant 0 : index
      %c0_13 = arith.constant 0 : index
      %13 = vector.load %arg5[%c0_12, %c0_13] : memref<1x128xf32, #tpu.memory_space<vmem>>, vector<1x128xf32>
      %14 = vector.broadcast %13 : vector<1x128xf32> to vector<512x128xf32>
      %15 = arith.addf %12, %14 : vector<512x128xf32>
      %cst_14 = arith.constant 0.000000e+00 : f32
      %16 = vector.broadcast %cst_14 : f32 to vector<512x128xf32>
      %17 = arith.maximumf %15, %16 : vector<512x128xf32>
      %18 = arith.truncf %17 : vector<512x128xf32> to vector<512x128xbf16>
      %c0_15 = arith.constant 0 : index
      %c0_16 = arith.constant 0 : index
      %19 = vector.load %arg6[%c0_15, %c0_16] : memref<512x128xbf16, #tpu.memory_space<vmem>>, vector<512x128xbf16>
      tpu.vector_store %arg6[%c0_15, %c0_16], %18 {strides = array<i32>} : memref<512x128xbf16, #tpu.memory_space<vmem>>, vector<512x128xbf16>,
    } else {
    }
    return
  }
  func.func @transform_0(%arg0: i32, %arg1: i32, %arg2: i32) -> (i32, i32) {
    %c0_i32 = arith.constant 0 : i32
    return %arg0, %arg2 : i32, i32
  }
  func.func @transform_1(%arg0: i32, %arg1: i32, %arg2: i32) -> (i32, i32) {
    %c0_i32 = arith.constant 0 : i32
    return %arg2, %arg1 : i32, i32
  }
  func.func @transform_2(%arg0: i32, %arg1: i32, %arg2: i32) -> (i32, i32) {
    %c0_i32 = arith.constant 0 : i32
    %c0_i32_0 = arith.constant 0 : i32
    return %c0_i32, %arg1 : i32, i32
  }
  func.func @transform_3(%arg0: i32, %arg1: i32, %arg2: i32) -> (i32, i32) {
    %c0_i32 = arith.constant 0 : i32
    return %arg0, %arg1 : i32, i32
  }
}

module attributes {stable_mosaic.version = 11 : i64} {
  func.func @_matmul_bias_act_kernel(%arg0: i32, %arg1: i32, %arg2: i32, %arg3: memref<512x128xbf16, #tpu.memory_space<vmem>>, %arg4: memref<128x128xbf16, #tpu.memory_space<vmem>>, %arg5: memref<1x128xf32, #tpu.memory_space<vmem>>, %arg6: memref<512x128xf32, #tpu.memory_space<vmem>>, %arg7: memref<512x128xf32, #tpu.memory_space<vmem>>) attributes {dimension_semantics = [#tpu.dimension_semantics<parallel>, #tpu.dimension_semantics<parallel>, #tpu.dimension_semantics<arbitrary>], iteration_bounds = array<i64: 2, 1, 1>, scalar_prefetch = 0 : i64, scratch_operands = 1 : i64, tpu.core_type = #tpu.core_type<tc>, window_params = [{transform_indices = @transform_0, window_bounds = array<i64: 512, 128>}, {transform_indices = @transform_1, window_bounds = array<i64: 128, 128>}, {transform_indices = @transform_2, window_bounds = array<i64: 1, 128>}, {transform_indices = @transform_3, window_bounds = array<i64: 512, 128>}]} {
    %c0_i32 = arith.constant 0 : i32
    %0 = arith.cmpi eq, %arg2, %c0_i32 : i32
    %1 = arith.extui %0 : i1 to i32
    %c0_i32_0 = arith.constant 0 : i32
    %2 = arith.cmpi ne, %1, %c0_i32_0 : i32
    scf.if %2 {
      %cst_10 = arith.constant 0.000000e+00 : f32
      %12 = vector.broadcast %cst_10 : f32 to vector<512x128xf32>
      %c0_11 = arith.constant 0 : index
      %c0_12 = arith.constant 0 : index
      %13 = vector.load %arg7[%c0_11, %c0_12] : memref<512x128xf32, #tpu.memory_space<vmem>>, vector<512x128xf32>
      tpu.vector_store %arg7[%c0_11, %c0_12], %12 {strides = array<i32>} : memref<512x128xf32, #tpu.memory_space<vmem>>, vector<512x128xf32>,
    } else {
    }
    %c0 = arith.constant 0 : index
    %c0_1 = arith.constant 0 : index
    %3 = vector.load %arg7[%c0, %c0_1] : memref<512x128xf32, #tpu.memory_space<vmem>>, vector<512x128xf32>
    %c0_2 = arith.constant 0 : index
    %c0_3 = arith.constant 0 : index
    %4 = vector.load %arg3[%c0_2, %c0_3] : memref<512x128xbf16, #tpu.memory_space<vmem>>, vector<512x128xbf16>
    %c0_4 = arith.constant 0 : index
    %c0_5 = arith.constant 0 : index
    %5 = vector.load %arg4[%c0_4, %c0_5] : memref<128x128xbf16, #tpu.memory_space<vmem>>, vector<128x128xbf16>
    %cst = arith.constant dense<0.000000e+00> : vector<512x128xf32>
    %6 = tpu.matmul %4, %5, %cst {dimension_numbers = #tpu.dot_dimension_numbers<[1], [0], [0], [1], [0, 0, 1, 1], [], []>} : vector<512x128xbf16>, vector<128x128xbf16>, vector<512x128xf32> -> vector<512x128xf32>
    %7 = arith.addf %3, %6 : vector<512x128xf32>
    %c0_6 = arith.constant 0 : index
    %c0_7 = arith.constant 0 : index
    %8 = vector.load %arg7[%c0_6, %c0_7] : memref<512x128xf32, #tpu.memory_space<vmem>>, vector<512x128xf32>
    tpu.vector_store %arg7[%c0_6, %c0_7], %7 {strides = array<i32>} : memref<512x128xf32, #tpu.memory_space<vmem>>, vector<512x128xf32>,
    %c0_i32_8 = arith.constant 0 : i32
    %9 = arith.cmpi eq, %arg2, %c0_i32_8 : i32
    %10 = arith.extui %9 : i1 to i32
    %c0_i32_9 = arith.constant 0 : i32
    %11 = arith.cmpi ne, %10, %c0_i32_9 : i32
    scf.if %11 {
      %c0_10 = arith.constant 0 : index
      %c0_11 = arith.constant 0 : index
      %12 = vector.load %arg7[%c0_10, %c0_11] : memref<512x128xf32, #tpu.memory_space<vmem>>, vector<512x128xf32>
      %c0_12 = arith.constant 0 : index
      %c0_13 = arith.constant 0 : index
      %13 = vector.load %arg5[%c0_12, %c0_13] : memref<1x128xf32, #tpu.memory_space<vmem>>, vector<1x128xf32>
      %14 = vector.broadcast %13 : vector<1x128xf32> to vector<512x128xf32>
      %15 = arith.addf %12, %14 : vector<512x128xf32>
      %c0_14 = arith.constant 0 : index
      %c0_15 = arith.constant 0 : index
      %16 = vector.load %arg6[%c0_14, %c0_15] : memref<512x128xf32, #tpu.memory_space<vmem>>, vector<512x128xf32>
      tpu.vector_store %arg6[%c0_14, %c0_15], %15 {strides = array<i32>} : memref<512x128xf32, #tpu.memory_space<vmem>>, vector<512x128xf32>,
    } else {
    }
    return
  }
  func.func @transform_0(%arg0: i32, %arg1: i32, %arg2: i32) -> (i32, i32) {
    %c0_i32 = arith.constant 0 : i32
    return %arg0, %arg2 : i32, i32
  }
  func.func @transform_1(%arg0: i32, %arg1: i32, %arg2: i32) -> (i32, i32) {
    %c0_i32 = arith.constant 0 : i32
    return %arg2, %arg1 : i32, i32
  }
  func.func @transform_2(%arg0: i32, %arg1: i32, %arg2: i32) -> (i32, i32) {
    %c0_i32 = arith.constant 0 : i32
    %c0_i32_0 = arith.constant 0 : i32
    return %c0_i32, %arg1 : i32, i32
  }
  func.func @transform_3(%arg0: i32, %arg1: i32, %arg2: i32) -> (i32, i32) {
    %c0_i32 = arith.constant 0 : i32
    return %arg0, %arg1 : i32, i32
  }
}

</mosaic_0001>

<llo_original>
// kernel: fwd.10
$region0: #{fwd.10}
  #allocation0 [shape = 'u32[]', space=smem, size = 0x4, offset = 0x4, fixed_abs, tag = 'smem constant byte address 0x4 - core index']
  #allocation1 [shape = 'u32[72,128]{1,0:T(1,128)}', space=vmem, size = 0x9000, scoped, tag = 'internal scratch']
  #allocation2 [shape = 'f32[64,128]{1,0:T(8,128)}', space=vmem, size = 0x8000, scoped, tag = 'scratch operand']
  %s0 = inlined_call_operand.vmem [shape: bf16[64,128], index: 0, kind: input, shape index: {}]
  %s1 = inlined_call_operand.vmem [shape: bf16[128,128], index: 1, kind: input, shape index: {}]
  %s2 = inlined_call_operand.vmem [shape: f32[1,128], index: 2, kind: input, shape index: {}]
  %s3 = inlined_call_operand.vmem [shape: bf16[64,128], index: 3, kind: output, shape index: {}]
  %s4 = sld [smem:[#allocation0]]
  $region30: #{fwd.10} parent=0
    _
  %s6 = ssub.s32 1, %s4
  %s7 = scalar_select 0, %s6, %s4
  // Predicated region
  $region2: #{fwd.10} parent=0 // pred_check
    _
  $region3: #{fwd.10} parent=0 // pred_check_branch
    %9 = sbr.rel (0) target = $region5
  $region4: #{fwd.10} parent=0 // pred_region
    _
  $region5: #{fwd.10} parent=0 // pred_fallthru
    _
  // Predicated region
  $region6: #{fwd.10} parent=0 // pred_check
    _
  $region7: #{fwd.10} parent=0 // pred_check_branch
    %11 = sbr.rel (0) target = $region9
  $region8: #{fwd.10} parent=0 // pred_region
    _
  $region9: #{fwd.10} parent=0 // pred_fallthru
    _
  // Predicated region
  $region10: #{fwd.10} parent=0 // pred_check
    _
  $region11: #{fwd.10} parent=0 // pred_check_branch
    %13 = sbr.rel (0) target = $region13
  $region12: #{fwd.10} parent=0 // pred_region
    _
  $region13: #{fwd.10} parent=0 // pred_fallthru
    _
  %p14 = scmp.eq.s32.totalorder 0, 0
  // Predicated region
  $region14: #{fwd.10} parent=0 // pred_check
    %p15 = pneg %p14
  $region15: #{fwd.10} parent=0 // pred_check_branch
    %17 = sbr.rel (%p15) target = $region17
  $region16: #{fwd.10} parent=0 // pred_region
    %18 = vst [vmem:[#allocation2] sm:$0xff] 0.0
    %19 = vst [vmem:[#allocation2 + $0x8] sm:$0xff] 0.0
    %20 = vst [vmem:[#allocation2 + $0x10] sm:$0xff] 0.0
    %21 = vst [vmem:[#allocation2 + $0x18] sm:$0xff] 0.0
    %22 = vst [vmem:[#allocation2 + $0x20] sm:$0xff] 0.0
    %23 = vst [vmem:[#allocation2 + $0x28] sm:$0xff] 0.0
    %24 = vst [vmem:[#allocation2 + $0x30] sm:$0xff] 0.0
    %25 = vst [vmem:[#allocation2 + $0x38] sm:$0xff] 0.0
  $region17: #{fwd.10} parent=0 // pred_fallthru
    _
  %v26 = vld [vmem:[#allocation2] sm:$0xff]
  %v27 = vld [vmem:[#allocation2 + $0x8] sm:$0xff]
  %v28 = vld [vmem:[#allocation2 + $0x10] sm:$0xff]
  %v29 = vld [vmem:[#allocation2 + $0x18] sm:$0xff]
  %v30 = vld [vmem:[#allocation2 + $0x20] sm:$0xff]
  %v31 = vld [vmem:[#allocation2 + $0x28] sm:$0xff]
  %v32 = vld [vmem:[#allocation2 + $0x30] sm:$0xff]
  %v33 = vld [vmem:[#allocation2 + $0x38] sm:$0xff]
  %v34 = vld [vmem:[%s0] sm:$0xf]
  %v35 = vld [vmem:[%s0 + $0x4] sm:$0xf]
  %v36 = vld [vmem:[%s0 + $0x8] sm:$0xf]
  %v37 = vld [vmem:[%s0 + $0xc] sm:$0xf]
  %v38 = vld [vmem:[%s0 + $0x10] sm:$0xf]
  %v39 = vld [vmem:[%s0 + $0x14] sm:$0xf]
  %v40 = vld [vmem:[%s0 + $0x18] sm:$0xf]
  %v41 = vld [vmem:[%s0 + $0x1c] sm:$0xf]
  %v42 = vld [vmem:[%s1] sm:$0xf]
  %v43 = vld [vmem:[%s1 + $0x4] sm:$0xf]
  %v44 = vld [vmem:[%s1 + $0x8] sm:$0xf]
  %v45 = vld [vmem:[%s1 + $0xc] sm:$0xf]
  %v46 = vld [vmem:[%s1 + $0x10] sm:$0xf]
  %v47 = vld [vmem:[%s1 + $0x14] sm:$0xf]
  %v48 = vld [vmem:[%s1 + $0x18] sm:$0xf]
  %v49 = vld [vmem:[%s1 + $0x1c] sm:$0xf]
  %v50 = vld [vmem:[%s1 + $0x20] sm:$0xf]
  %v51 = vld [vmem:[%s1 + $0x24] sm:$0xf]
  %v52 = vld [vmem:[%s1 + $0x28] sm:$0xf]
  %v53 = vld [vmem:[%s1 + $0x2c] sm:$0xf]
  %v54 = vld [vmem:[%s1 + $0x30] sm:$0xf]
  %v55 = vld [vmem:[%s1 + $0x34] sm:$0xf]
  %v56 = vld [vmem:[%s1 + $0x38] sm:$0xf]
  %v57 = vld [vmem:[%s1 + $0x3c] sm:$0xf]
  %v66 = vunpack.c.l.b16 %v34
  %v67 = vunpack.c.l.b16 %v35
  %v68 = vunpack.c.l.b16 %v36
  %v69 = vunpack.c.l.b16 %v37
  %v70 = vunpack.c.l.b16 %v38
  %v71 = vunpack.c.l.b16 %v39
  %v72 = vunpack.c.l.b16 %v40
  %v73 = vunpack.c.l.b16 %v41
  %v74 = vpack.c.b16 %v67, %v66
  %v75 = vpack.c.b16 %v69, %v68
  %v76 = vpack.c.b16 %v71, %v70
  %v77 = vpack.c.b16 %v73, %v72
  %v98 = vunpack.c.l.b16 %v42
  %v99 = vunpack.c.l.b16 %v43
  %v100 = vunpack.c.l.b16 %v44
  %v101 = vunpack.c.l.b16 %v45
  %v102 = vunpack.c.l.b16 %v46
  %v103 = vunpack.c.l.b16 %v47
  %v104 = vunpack.c.l.b16 %v48
  %v105 = vunpack.c.l.b16 %v49
  %v106 = vunpack.c.l.b16 %v50
  %v107 = vunpack.c.l.b16 %v51
  %v108 = vunpack.c.l.b16 %v52
  %v109 = vunpack.c.l.b16 %v53
  %v110 = vunpack.c.l.b16 %v54
  %v111 = vunpack.c.l.b16 %v55
  %v112 = vunpack.c.l.b16 %v56
  %v113 = vunpack.c.l.b16 %v57
  %v114 = vpack.c.b16 %v99, %v98
  %v115 = vpack.c.b16 %v101, %v100
  %v116 = vpack.c.b16 %v103, %v102
  %v117 = vpack.c.b16 %v105, %v104
  %v118 = vpack.c.b16 %v107, %v106
  %v119 = vpack.c.b16 %v109, %v108
  %v120 = vpack.c.b16 %v111, %v110
  %v121 = vpack.c.b16 %v113, %v112
  %130 = vmatpush.bf16.msra.mxu0 %v121
  %131 = vmatpush.bf16.msra.mxu0 %v120
  %132 = vmatpush.bf16.msra.mxu0 %v119
  %133 = vmatpush.bf16.msra.mxu0 %v118
  %134 = vmatpush.bf16.msra.mxu0 %v117
  %135 = vmatpush.bf16.msra.mxu0 %v116
  %136 = vmatpush.bf16.msra.mxu0 %v115
  %137 = vmatpush.bf16.msra.mxu0 %v114
  %138 = vmatmul.bf16.gmra.mxu0 %v74
  %v139 = vpop.f32.mrf.mxu0
  %v140 = vadd.f32 0.0, %v139
  %v141 = vpop.f32.mrf.mxu0
  %v142 = vadd.f32 0.0, %v141
  %143 = vmatmul.bf16.gmra.mxu0 %v75
  %v144 = vpop.f32.mrf.mxu0
  %v145 = vadd.f32 0.0, %v144
  %v146 = vpop.f32.mrf.mxu0
  %v147 = vadd.f32 0.0, %v146
  %148 = vmatmul.bf16.gmra.mxu0 %v76
  %v149 = vpop.f32.mrf.mxu0
  %v150 = vadd.f32 0.0, %v149
  %v151 = vpop.f32.mrf.mxu0
  %v152 = vadd.f32 0.0, %v151
  %153 = vmatmul.bf16.gmra.mxu0 %v77
  %v154 = vpop.f32.mrf.mxu0
  %v155 = vadd.f32 0.0, %v154
  %v156 = vpop.f32.mrf.mxu0
  %v157 = vadd.f32 0.0, %v156
  %158 = vdwg.mxu0
  %v159 = vadd.f32 %v26, %v140
  %v160 = vadd.f32 %v27, %v142
  %v161 = vadd.f32 %v28, %v145
  %v162 = vadd.f32 %v29, %v147
  %v163 = vadd.f32 %v30, %v150
  %v164 = vadd.f32 %v31, %v152
  %v165 = vadd.f32 %v32, %v155
  %v166 = vadd.f32 %v33, %v157
  %167 = vst [vmem:[#allocation2] sm:$0xff] %v159
  %168 = vst [vmem:[#allocation2 + $0x8] sm:$0xff] %v160
  %169 = vst [vmem:[#allocation2 + $0x10] sm:$0xff] %v161
  %170 = vst [vmem:[#allocation2 + $0x18] sm:$0xff] %v162
  %171 = vst [vmem:[#allocation2 + $0x20] sm:$0xff] %v163
  %172 = vst [vmem:[#allocation2 + $0x28] sm:$0xff] %v164
  %173 = vst [vmem:[#allocation2 + $0x30] sm:$0xff] %v165
  %174 = vst [vmem:[#allocation2 + $0x38] sm:$0xff] %v166
  // Predicated region
  $region18: #{fwd.10} parent=0 // pred_check
    %p175 = pneg %p14
  $region19: #{fwd.10} parent=0 // pred_check_branch
    %177 = sbr.rel (%p175) target = $region21
  $region20: #{fwd.10} parent=0 // pred_region
    %v178 = vld [vmem:[#allocation2] sm:$0xff]
    %v179 = vld [vmem:[#allocation2 + $0x8] sm:$0xff]
    %v180 = vld [vmem:[#allocation2 + $0x10] sm:$0xff]
    %v181 = vld [vmem:[#allocation2 + $0x18] sm:$0xff]
    %v182 = vld [vmem:[#allocation2 + $0x20] sm:$0xff]
    %v183 = vld [vmem:[#allocation2 + $0x28] sm:$0xff]
    %v184 = vld [vmem:[#allocation2 + $0x30] sm:$0xff]
    %v185 = vld [vmem:[#allocation2 + $0x38] sm:$0xff]
    %v186 = vld [vmem:[%s2] sm:$0x1]
    %v188 = vperm.slane %v186, 0
    %v190 = vadd.f32 %v178, %v188
    %v191 = vadd.f32 %v179, %v188
    %v192 = vadd.f32 %v180, %v188
    %v193 = vadd.f32 %v181, %v188
    %v194 = vadd.f32 %v182, %v188
    %v195 = vadd.f32 %v183, %v188
    %v196 = vadd.f32 %v184, %v188
    %v197 = vadd.f32 %v185, %v188
    %v198 = vmax.f32 %v190, 0.0
    %v199 = vmax.f32 %v191, 0.0
    %v200 = vmax.f32 %v192, 0.0
    %v201 = vmax.f32 %v193, 0.0
    %v202 = vmax.f32 %v194, 0.0
    %v203 = vmax.f32 %v195, 0.0
    %v204 = vmax.f32 %v196, 0.0
    %v205 = vmax.f32 %v197, 0.0
    %v206 = vpack.c.bf16 %v198, %v198
    %v207 = vpack.c.bf16 %v199, %v199
    %v208 = vpack.c.bf16 %v200, %v200
    %v209 = vpack.c.bf16 %v201, %v201
    %v210 = vpack.c.bf16 %v202, %v202
    %v211 = vpack.c.bf16 %v203, %v203
    %v212 = vpack.c.bf16 %v204, %v204
    %v213 = vpack.c.bf16 %v205, %v205
    %214 = vst [vmem:[%s3] sm:$0xf] %v206
    %215 = vst [vmem:[%s3 + $0x4] sm:$0xf] %v207
    %216 = vst [vmem:[%s3 + $0x8] sm:$0xf] %v208
    %217 = vst [vmem:[%s3 + $0xc] sm:$0xf] %v209
    %218 = vst [vmem:[%s3 + $0x10] sm:$0xf] %v210
    %219 = vst [vmem:[%s3 + $0x14] sm:$0xf] %v211
    %220 = vst [vmem:[%s3 + $0x18] sm:$0xf] %v212
    %221 = vst [vmem:[%s3 + $0x1c] sm:$0xf] %v213
  $region21: #{fwd.10} parent=0 // pred_fallthru
    _
  // Predicated region
  $region22: #{fwd.10} parent=0 // pred_check
    _
  $region23: #{fwd.10} parent=0 // pred_check_branch
    %223 = sbr.rel (0) target = $region25
  $region24: #{fwd.10} parent=0 // pred_region
    _
  $region25: #{fwd.10} parent=0 // pred_fallthru
    _
  // Predicated region
  $region26: #{fwd.10} parent=0 // pred_check
    _
  $region27: #{fwd.10} parent=0 // pred_check_branch
    %225 = sbr.rel (0) target = $region29
  $region28: #{fwd.10} parent=0 // pred_region
    _
  $region29: #{fwd.10} parent=0 // pred_fallthru
    _

// kernel: fwd.9
$region0: #{fwd.9}
  #allocation0 [shape = 'u32[]', space=smem, size = 0x4, offset = 0x4, fixed_abs, tag = 'smem constant byte address 0x4 - core index']
  #allocation1 [shape = 'u32[72,128]{1,0:T(1,128)}', space=vmem, size = 0x9000, scoped, tag = 'internal scratch']
  #allocation2 [shape = 'f32[256,128]{1,0:T(8,128)}', space=vmem, size = 0x20000, scoped, tag = 'scratch operand']
  %s0 = inlined_call_operand.vmem [shape: bf16[256,128], index: 0, kind: input, shape index: {}]
  %s1 = inlined_call_operand.vmem [shape: bf16[128,128], index: 1, kind: input, shape index: {}]
  %s2 = inlined_call_operand.vmem [shape: f32[1,128], index: 2, kind: input, shape index: {}]
  %s3 = inlined_call_operand.vmem [shape: bf16[256,128], index: 3, kind: output, shape index: {}]
  %s4 = sld [smem:[#allocation0]]
  $region30: #{fwd.9} parent=0
    _
  %s6 = ssub.s32 1, %s4
  %s7 = scalar_select 0, %s6, %s4
  // Predicated region
  $region2: #{fwd.9} parent=0 // pred_check
    _
  $region3: #{fwd.9} parent=0 // pred_check_branch
    %9 = sbr.rel (0) target = $region5
  $region4: #{fwd.9} parent=0 // pred_region
    _
  $region5: #{fwd.9} parent=0 // pred_fallthru
    _
  // Predicated region
  $region6: #{fwd.9} parent=0 // pred_check
    _
  $region7: #{fwd.9} parent=0 // pred_check_branch
    %11 = sbr.rel (0) target = $region9
  $region8: #{fwd.9} parent=0 // pred_region
    _
  $region9: #{fwd.9} parent=0 // pred_fallthru
    _
  // Predicated region
  $region10: #{fwd.9} parent=0 // pred_check
    _
  $region11: #{fwd.9} parent=0 // pred_check_branch
    %13 = sbr.rel (0) target = $region13
  $region12: #{fwd.9} parent=0 // pred_region
    _
  $region13: #{fwd.9} parent=0 // pred_fallthru
    _
  %p14 = scmp.eq.s32.totalorder 0, 0
  // Predicated region
  $region14: #{fwd.9} parent=0 // pred_check
    %p15 = pneg %p14
  $region15: #{fwd.9} parent=0 // pred_check_branch
    %17 = sbr.rel (%p15) target = $region17
  $region16: #{fwd.9} parent=0 // pred_region
    %18 = vst [vmem:[#allocation2] sm:$0xff] 0.0
    %19 = vst [vmem:[#allocation2 + $0x8] sm:$0xff] 0.0
    %20 = vst [vmem:[#allocation2 + $0x10] sm:$0xff] 0.0
    %21 = vst [vmem:[#allocation2 + $0x18] sm:$0xff] 0.0
    %22 = vst [vmem:[#allocation2 + $0x20] sm:$0xff] 0.0
    %23 = vst [vmem:[#allocation2 + $0x28] sm:$0xff] 0.0
    %24 = vst [vmem:[#allocation2 + $0x30] sm:$0xff] 0.0
    %25 = vst [vmem:[#allocation2 + $0x38] sm:$0xff] 0.0
    %26 = vst [vmem:[#allocation2 + $0x40] sm:$0xff] 0.0
    %27 = vst [vmem:[#allocation2 + $0x48] sm:$0xff] 0.0
    %28 = vst [vmem:[#allocation2 + $0x50] sm:$0xff] 0.0
    %29 = vst [vmem:[#allocation2 + $0x58] sm:$0xff] 0.0
    %30 = vst [vmem:[#allocation2 + $0x60] sm:$0xff] 0.0
    %31 = vst [vmem:[#allocation2 + $0x68] sm:$0xff] 0.0
    %32 = vst [vmem:[#allocation2 + $0x70] sm:$0xff] 0.0
    %33 = vst [vmem:[#allocation2 + $0x78] sm:$0xff] 0.0
    %34 = vst [vmem:[#allocation2 + $0x80] sm:$0xff] 0.0
    %35 = vst [vmem:[#allocation2 + $0x88] sm:$0xff] 0.0
    %36 = vst [vmem:[#allocation2 + $0x90] sm:$0xff] 0.0
    %37 = vst [vmem:[#allocation2 + $0x98] sm:$0xff] 0.0
    %38 = vst [vmem:[#allocation2 + $0xa0] sm:$0xff] 0.0
    %39 = vst [vmem:[#allocation2 + $0xa8] sm:$0xff] 0.0
    %40 = vst [vmem:[#allocation2 + $0xb0] sm:$0xff] 0.0
    %41 = vst [vmem:[#allocation2 + $0xb8] sm:$0xff] 0.0
    %42 = vst [vmem:[#allocation2 + $0xc0] sm:$0xff] 0.0
    %43 = vst [vmem:[#allocation2 + $0xc8] sm:$0xff] 0.0
    %44 = vst [vmem:[#allocation2 + $0xd0] sm:$0xff] 0.0
    %45 = vst [vmem:[#allocation2 + $0xd8] sm:$0xff] 0.0
    %46 = vst [vmem:[#allocation2 + $0xe0] sm:$0xff] 0.0
    %47 = vst [vmem:[#allocation2 + $0xe8] sm:$0xff] 0.0
    %48 = vst [vmem:[#allocation2 + $0xf0] sm:$0xff] 0.0
    %49 = vst [vmem:[#allocation2 + $0xf8] sm:$0xff] 0.0
  $region17: #{fwd.9} parent=0 // pred_fallthru
    _
  %v50 = vld [vmem:[#allocation2] sm:$0xff]
  %v51 = vld [vmem:[#allocation2 + $0x8] sm:$0xff]
  %v52 = vld [vmem:[#allocation2 + $0x10] sm:$0xff]
  %v53 = vld [vmem:[#allocation2 + $0x18] sm:$0xff]
  %v54 = vld [vmem:[#allocation2 + $0x20] sm:$0xff]
  %v55 = vld [vmem:[#allocation2 + $0x28] sm:$0xff]
  %v56 = vld [vmem:[#allocation2 + $0x30] sm:$0xff]
  %v57 = vld [vmem:[#allocation2 + $0x38] sm:$0xff]
  %v58 = vld [vmem:[#allocation2 + $0x40] sm:$0xff]
  %v59 = vld [vmem:[#allocation2 + $0x48] sm:$0xff]
  %v60 = vld [vmem:[#allocation2 + $0x50] sm:$0xff]
  %v61 = vld [vmem:[#allocation2 + $0x58] sm:$0xff]
  %v62 = vld [vmem:[#allocation2 + $0x60] sm:$0xff]
  %v63 = vld [vmem:[#allocation2 + $0x68] sm:$0xff]
  %v64 = vld [vmem:[#allocation2 + $0x70] sm:$0xff]
  %v65 = vld [vmem:[#allocation2 + $0x78] sm:$0xff]
  %v66 = vld [vmem:[#allocation2 + $0x80] sm:$0xff]
  %v67 = vld [vmem:[#allocation2 + $0x88] sm:$0xff]
  %v68 = vld [vmem:[#allocation2 + $0x90] sm:$0xff]
  %v69 = vld [vmem:[#allocation2 + $0x98] sm:$0xff]
  %v70 = vld [vmem:[#allocation2 + $0xa0] sm:$0xff]
  %v71 = vld [vmem:[#allocation2 + $0xa8] sm:$0xff]
  %v72 = vld [vmem:[#allocation2 + $0xb0] sm:$0xff]
  %v73 = vld [vmem:[#allocation2 + $0xb8] sm:$0xff]
  %v74 = vld [vmem:[#allocation2 + $0xc0] sm:$0xff]
  %v75 = vld [vmem:[#allocation2 + $0xc8] sm:$0xff]
  %v76 = vld [vmem:[#allocation2 + $0xd0] sm:$0xff]
  %v77 = vld [vmem:[#allocation2 + $0xd8] sm:$0xff]
  %v78 = vld [vmem:[#allocation2 + $0xe0] sm:$0xff]
  %v79 = vld [vmem:[#allocation2 + $0xe8] sm:$0xff]
  %v80 = vld [vmem:[#allocation2 + $0xf0] sm:$0xff]
  %v81 = vld [vmem:[#allocation2 + $0xf8] sm:$0xff]
  %v82 = vld [vmem:[%s0] sm:$0xf]
  %v83 = vld [vmem:[%s0 + $0x4] sm:$0xf]
  %v84 = vld [vmem:[%s0 + $0x8] sm:$0xf]
  %v85 = vld [vmem:[%s0 + $0xc] sm:$0xf]
  %v86 = vld [vmem:[%s0 + $0x10] sm:$0xf]
  %v87 = vld [vmem:[%s0 + $0x14] sm:$0xf]
  %v88 = vld [vmem:[%s0 + $0x18] sm:$0xf]
  %v89 = vld [vmem:[%s0 + $0x1c] sm:$0xf]
  %v90 = vld [vmem:[%s0 + $0x20] sm:$0xf]
  %v91 = vld [vmem:[%s0 + $0x24] sm:$0xf]
  %v92 = vld [vmem:[%s0 + $0x28] sm:$0xf]
  %v93 = vld [vmem:[%s0 + $0x2c] sm:$0xf]
  %v94 = vld [vmem:[%s0 + $0x30] sm:$0xf]
  %v95 = vld [vmem:[%s0 + $0x34] sm:$0xf]
  %v96 = vld [vmem:[%s0 + $0x38] sm:$0xf]
  %v97 = vld [vmem:[%s0 + $0x3c] sm:$0xf]
  %v98 = vld [vmem:[%s0 + $0x40] sm:$0xf]
  %v99 = vld [vmem:[%s0 + $0x44] sm:$0xf]
  %v100 = vld [vmem:[%s0 + $0x48] sm:$0xf]
  %v101 = vld [vmem:[%s0 + $0x4c] sm:$0xf]
  %v102 = vld [vmem:[%s0 + $0x50] sm:$0xf]
  %v103 = vld [vmem:[%s0 + $0x54] sm:$0xf]
  %v104 = vld [vmem:[%s0 + $0x58] sm:$0xf]
  %v105 = vld [vmem:[%s0 + $0x5c] sm:$0xf]
  %v106 = vld [vmem:[%s0 + $0x60] sm:$0xf]
  %v107 = vld [vmem:[%s0 + $0x64] sm:$0xf]
  %v108 = vld [vmem:[%s0 + $0x68] sm:$0xf]
  %v109 = vld [vmem:[%s0 + $0x6c] sm:$0xf]
  %v110 = vld [vmem:[%s0 + $0x70] sm:$0xf]
  %v111 = vld [vmem:[%s0 + $0x74] sm:$0xf]
  %v112 = vld [vmem:[%s0 + $0x78] sm:$0xf]
  %v113 = vld [vmem:[%s0 + $0x7c] sm:$0xf]
  %v114 = vld [vmem:[%s1] sm:$0xf]
  %v115 = vld [vmem:[%s1 + $0x4] sm:$0xf]
  %v116 = vld [vmem:[%s1 + $0x8] sm:$0xf]
  %v117 = vld [vmem:[%s1 + $0xc] sm:$0xf]
  %v118 = vld [vmem:[%s1 + $0x10] sm:$0xf]
  %v119 = vld [vmem:[%s1 + $0x14] sm:$0xf]
  %v120 = vld [vmem:[%s1 + $0x18] sm:$0xf]
  %v121 = vld [vmem:[%s1 + $0x1c] sm:$0xf]
  %v122 = vld [vmem:[%s1 + $0x20] sm:$0xf]
  %v123 = vld [vmem:[%s1 + $0x24] sm:$0xf]
  %v124 = vld [vmem:[%s1 + $0x28] sm:$0xf]
  %v125 = vld [vmem:[%s1 + $0x2c] sm:$0xf]
  %v126 = vld [vmem:[%s1 + $0x30] sm:$0xf]
  %v127 = vld [vmem:[%s1 + $0x34] sm:$0xf]
  %v128 = vld [vmem:[%s1 + $0x38] sm:$0xf]
  %v129 = vld [vmem:[%s1 + $0x3c] sm:$0xf]
  %v162 = vunpack.c.l.b16 %v82
  %v163 = vunpack.c.l.b16 %v83
  %v164 = vunpack.c.l.b16 %v84
  %v165 = vunpack.c.l.b16 %v85
  %v166 = vunpack.c.l.b16 %v86
  %v167 = vunpack.c.l.b16 %v87
  %v168 = vunpack.c.l.b16 %v88
  %v169 = vunpack.c.l.b16 %v89
  %v170 = vunpack.c.l.b16 %v90
  %v171 = vunpack.c.l.b16 %v91
  %v172 = vunpack.c.l.b16 %v92
  %v173 = vunpack.c.l.b16 %v93
  %v174 = vunpack.c.l.b16 %v94
  %v175 = vunpack.c.l.b16 %v95
  %v176 = vunpack.c.l.b16 %v96
  %v177 = vunpack.c.l.b16 %v97
  %v178 = vunpack.c.l.b16 %v98
  %v179 = vunpack.c.l.b16 %v99
  %v180 = vunpack.c.l.b16 %v100
  %v181 = vunpack.c.l.b16 %v101
  %v182 = vunpack.c.l.b16 %v102
  %v183 = vunpack.c.l.b16 %v103
  %v184 = vunpack.c.l.b16 %v104
  %v185 = vunpack.c.l.b16 %v105
  %v186 = vunpack.c.l.b16 %v106
  %v187 = vunpack.c.l.b16 %v107
  %v188 = vunpack.c.l.b16 %v108
  %v189 = vunpack.c.l.b16 %v109
  %v190 = vunpack.c.l.b16 %v110
  %v191 = vunpack.c.l.b16 %v111
  %v192 = vunpack.c.l.b16 %v112
  %v193 = vunpack.c.l.b16 %v113
  %v194 = vpack.c.b16 %v163, %v162
  %v195 = vpack.c.b16 %v165, %v164
  %v196 = vpack.c.b16 %v167, %v166
  %v197 = vpack.c.b16 %v169, %v168
  %v198 = vpack.c.b16 %v171, %v170
  %v199 = vpack.c.b16 %v173, %v172
  %v200 = vpack.c.b16 %v175, %v174
  %v201 = vpack.c.b16 %v177, %v176
  %v202 = vpack.c.b16 %v179, %v178
  %v203 = vpack.c.b16 %v181, %v180
  %v204 = vpack.c.b16 %v183, %v182
  %v205 = vpack.c.b16 %v185, %v184
  %v206 = vpack.c.b16 %v187, %v186
  %v207 = vpack.c.b16 %v189, %v188
  %v208 = vpack.c.b16 %v191, %v190
  %v209 = vpack.c.b16 %v193, %v192
  %v242 = vunpack.c.l.b16 %v114
  %v243 = vunpack.c.l.b16 %v115
  %v244 = vunpack.c.l.b16 %v116
  %v245 = vunpack.c.l.b16 %v117
  %v246 = vunpack.c.l.b16 %v118
  %v247 = vunpack.c.l.b16 %v119
  %v248 = vunpack.c.l.b16 %v120
  %v249 = vunpack.c.l.b16 %v121
  %v250 = vunpack.c.l.b16 %v122
  %v251 = vunpack.c.l.b16 %v123
  %v252 = vunpack.c.l.b16 %v124
  %v253 = vunpack.c.l.b16 %v125
  %v254 = vunpack.c.l.b16 %v126
  %v255 = vunpack.c.l.b16 %v127
  %v256 = vunpack.c.l.b16 %v128
  %v257 = vunpack.c.l.b16 %v129
  %v258 = vpack.c.b16 %v243, %v242
  %v259 = vpack.c.b16 %v245, %v244
  %v260 = vpack.c.b16 %v247, %v246
  %v261 = vpack.c.b16 %v249, %v248
  %v262 = vpack.c.b16 %v251, %v250
  %v263 = vpack.c.b16 %v253, %v252
  %v264 = vpack.c.b16 %v255, %v254
  %v265 = vpack.c.b16 %v257, %v256
  %274 = vmatpush.bf16.msra.mxu0 %v265
  %275 = vmatpush.bf16.msra.mxu0 %v264
  %276 = vmatpush.bf16.msra.mxu0 %v263
  %277 = vmatpush.bf16.msra.mxu0 %v262
  %278 = vmatpush.bf16.msra.mxu0 %v261
  %279 = vmatpush.bf16.msra.mxu0 %v260
  %280 = vmatpush.bf16.msra.mxu0 %v259
  %281 = vmatpush.bf16.msra.mxu0 %v258
  %282 = vmatmul.bf16.gmra.mxu0 %v194
  %v283 = vpop.f32.mrf.mxu0
  %v284 = vadd.f32 0.0, %v283
  %v285 = vpop.f32.mrf.mxu0
  %v286 = vadd.f32 0.0, %v285
  %287 = vmatmul.bf16.gmra.mxu0 %v195
  %v288 = vpop.f32.mrf.mxu0
  %v289 = vadd.f32 0.0, %v288
  %v290 = vpop.f32.mrf.mxu0
  %v291 = vadd.f32 0.0, %v290
  %292 = vmatmul.bf16.gmra.mxu0 %v196
  %v293 = vpop.f32.mrf.mxu0
  %v294 = vadd.f32 0.0, %v293
  %v295 = vpop.f32.mrf.mxu0
  %v296 = vadd.f32 0.0, %v295
  %297 = vmatmul.bf16.gmra.mxu0 %v197
  %v298 = vpop.f32.mrf.mxu0
  %v299 = vadd.f32 0.0, %v298
  %v300 = vpop.f32.mrf.mxu0
  %v301 = vadd.f32 0.0, %v300
  %302 = vmatmul.bf16.gmra.mxu0 %v198
  %v303 = vpop.f32.mrf.mxu0
  %v304 = vadd.f32 0.0, %v303
  %v305 = vpop.f32.mrf.mxu0
  %v306 = vadd.f32 0.0, %v305
  %307 = vmatmul.bf16.gmra.mxu0 %v199
  %v308 = vpop.f32.mrf.mxu0
  %v309 = vadd.f32 0.0, %v308
  %v310 = vpop.f32.mrf.mxu0
  %v311 = vadd.f32 0.0, %v310
  %312 = vmatmul.bf16.gmra.mxu0 %v200
  %v313 = vpop.f32.mrf.mxu0
  %v314 = vadd.f32 0.0, %v313
  %v315 = vpop.f32.mrf.mxu0
  %v316 = vadd.f32 0.0, %v315
  %317 = vmatmul.bf16.gmra.mxu0 %v201
  %v318 = vpop.f32.mrf.mxu0
  %v319 = vadd.f32 0.0, %v318
  %v320 = vpop.f32.mrf.mxu0
  %v321 = vadd.f32 0.0, %v320
  %322 = vmatmul.bf16.gmra.mxu0 %v202
  %v323 = vpop.f32.mrf.mxu0
  %v324 = vadd.f32 0.0, %v323
  %v325 = vpop.f32.mrf.mxu0
  %v326 = vadd.f32 0.0, %v325
  %327 = vmatmul.bf16.gmra.mxu0 %v203
  %v328 = vpop.f32.mrf.mxu0
  %v329 = vadd.f32 0.0, %v328
  %v330 = vpop.f32.mrf.mxu0
  %v331 = vadd.f32 0.0, %v330
  %332 = vmatmul.bf16.gmra.mxu0 %v204
  %v333 = vpop.f32.mrf.mxu0
  %v334 = vadd.f32 0.0, %v333
  %v335 = vpop.f32.mrf.mxu0
  %v336 = vadd.f32 0.0, %v335
  %337 = vmatmul.bf16.gmra.mxu0 %v205
  %v338 = vpop.f32.mrf.mxu0
  %v339 = vadd.f32 0.0, %v338
  %v340 = vpop.f32.mrf.mxu0
  %v341 = vadd.f32 0.0, %v340
  %342 = vmatmul.bf16.gmra.mxu0 %v206
  %v343 = vpop.f32.mrf.mxu0
  %v344 = vadd.f32 0.0, %v343
  %v345 = vpop.f32.mrf.mxu0
  %v346 = vadd.f32 0.0, %v345
  %347 = vmatmul.bf16.gmra.mxu0 %v207
  %v348 = vpop.f32.mrf.mxu0
  %v349 = vadd.f32 0.0, %v348
  %v350 = vpop.f32.mrf.mxu0
  %v351 = vadd.f32 0.0, %v350
  %352 = vmatmul.bf16.gmra.mxu0 %v208
  %v353 = vpop.f32.mrf.mxu0
  %v354 = vadd.f32 0.0, %v353
  %v355 = vpop.f32.mrf.mxu0
  %v356 = vadd.f32 0.0, %v355
  %357 = vmatmul.bf16.gmra.mxu0 %v209
  %v358 = vpop.f32.mrf.mxu0
  %v359 = vadd.f32 0.0, %v358
  %v360 = vpop.f32.mrf.mxu0
  %v361 = vadd.f32 0.0, %v360
  %362 = vdwg.mxu0
  %v363 = vadd.f32 %v50, %v284
  %v364 = vadd.f32 %v51, %v286
  %v365 = vadd.f32 %v52, %v289
  %v366 = vadd.f32 %v53, %v291
  %v367 = vadd.f32 %v54, %v294
  %v368 = vadd.f32 %v55, %v296
  %v369 = vadd.f32 %v56, %v299
  %v370 = vadd.f32 %v57, %v301
  %v371 = vadd.f32 %v58, %v304
  %v372 = vadd.f32 %v59, %v306
  %v373 = vadd.f32 %v60, %v309
  %v374 = vadd.f32 %v61, %v311
  %v375 = vadd.f32 %v62, %v314
  %v376 = vadd.f32 %v63, %v316
  %v377 = vadd.f32 %v64, %v319
  %v378 = vadd.f32 %v65, %v321
  %v379 = vadd.f32 %v66, %v324
  %v380 = vadd.f32 %v67, %v326
  %v381 = vadd.f32 %v68, %v329
  %v382 = vadd.f32 %v69, %v331
  %v383 = vadd.f32 %v70, %v334
  %v384 = vadd.f32 %v71, %v336
  %v385 = vadd.f32 %v72, %v339
  %v386 = vadd.f32 %v73, %v341
  %v387 = vadd.f32 %v74, %v344
  %v388 = vadd.f32 %v75, %v346
  %v389 = vadd.f32 %v76, %v349
  %v390 = vadd.f32 %v77, %v351
  %v391 = vadd.f32 %v78, %v354
  %v392 = vadd.f32 %v79, %v356
  %v393 = vadd.f32 %v80, %v359
  %v394 = vadd.f32 %v81, %v361
  %395 = vst [vmem:[#allocation2] sm:$0xff] %v363
  %396 = vst [vmem:[#allocation2 + $0x8] sm:$0xff] %v364
  %397 = vst [vmem:[#allocation2 + $0x10] sm:$0xff] %v365
  %398 = vst [vmem:[#allocation2 + $0x18] sm:$0xff] %v366
  %399 = vst [vmem:[#allocation2 + $0x20] sm:$0xff] %v367
  %400 = vst [vmem:[#allocation2 + $0x28] sm:$0xff] %v368
  %401 = vst [vmem:[#allocation2 + $0x30] sm:$0xff] %v369
  %402 = vst [vmem:[#allocation2 + $0x38] sm:$0xff] %v370
  %403 = vst [vmem:[#allocation2 + $0x40] sm:$0xff] %v371
  %404 = vst [vmem:[#allocation2 + $0x48] sm:$0xff] %v372
  %405 = vst [vmem:[#allocation2 + $0x50] sm:$0xff] %v373
  %406 = vst [vmem:[#allocation2 + $0x58] sm:$0xff] %v374
  %407 = vst [vmem:[#allocation2 + $0x60] sm:$0xff] %v375
  %408 = vst [vmem:[#allocation2 + $0x68] sm:$0xff] %v376
  %409 = vst [vmem:[#allocation2 + $0x70] sm:$0xff] %v377
  %410 = vst [vmem:[#allocation2 + $0x78] sm:$0xff] %v378
  %411 = vst [vmem:[#allocation2 + $0x80] sm:$0xff] %v379
  %412 = vst [vmem:[#allocation2 + $0x88] sm:$0xff] %v380
  %413 = vst [vmem:[#allocation2 + $0x90] sm:$0xff] %v381
  %414 = vst [vmem:[#allocation2 + $0x98] sm:$0xff] %v382
  %415 = vst [vmem:[#allocation2 + $0xa0] sm:$0xff] %v383
  %416 = vst [vmem:[#allocation2 + $0xa8] sm:$0xff] %v384
  %417 = vst [vmem:[#allocation2 + $0xb0] sm:$0xff] %v385
  %418 = vst [vmem:[#allocation2 + $0xb8] sm:$0xff] %v386
  %419 = vst [vmem:[#allocation2 + $0xc0] sm:$0xff] %v387
  %420 = vst [vmem:[#allocation2 + $0xc8] sm:$0xff] %v388
  %421 = vst [vmem:[#allocation2 + $0xd0] sm:$0xff] %v389
  %422 = vst [vmem:[#allocation2 + $0xd8] sm:$0xff] %v390
  %423 = vst [vmem:[#allocation2 + $0xe0] sm:$0xff] %v391
  %424 = vst [vmem:[#allocation2 + $0xe8] sm:$0xff] %v392
  %425 = vst [vmem:[#allocation2 + $0xf0] sm:$0xff] %v393
  %426 = vst [vmem:[#allocation2 + $0xf8] sm:$0xff] %v394
  // Predicated region
  $region18: #{fwd.9} parent=0 // pred_check
    %p427 = pneg %p14
  $region19: #{fwd.9} parent=0 // pred_check_branch
    %429 = sbr.rel (%p427) target = $region21
  $region20: #{fwd.9} parent=0 // pred_region
    %v430 = vld [vmem:[#allocation2] sm:$0xff]
    %v431 = vld [vmem:[#allocation2 + $0x8] sm:$0xff]
    %v432 = vld [vmem:[#allocation2 + $0x10] sm:$0xff]
    %v433 = vld [vmem:[#allocation2 + $0x18] sm:$0xff]
    %v434 = vld [vmem:[#allocation2 + $0x20] sm:$0xff]
    %v435 = vld [vmem:[#allocation2 + $0x28] sm:$0xff]
    %v436 = vld [vmem:[#allocation2 + $0x30] sm:$0xff]
    %v437 = vld [vmem:[#allocation2 + $0x38] sm:$0xff]
    %v438 = vld [vmem:[#allocation2 + $0x40] sm:$0xff]
    %v439 = vld [vmem:[#allocation2 + $0x48] sm:$0xff]
    %v440 = vld [vmem:[#allocation2 + $0x50] sm:$0xff]
    %v441 = vld [vmem:[#allocation2 + $0x58] sm:$0xff]
    %v442 = vld [vmem:[#allocation2 + $0x60] sm:$0xff]
    %v443 = vld [vmem:[#allocation2 + $0x68] sm:$0xff]
    %v444 = vld [vmem:[#allocation2 + $0x70] sm:$0xff]
    %v445 = vld [vmem:[#allocation2 + $0x78] sm:$0xff]
    %v446 = vld [vmem:[#allocation2 + $0x80] sm:$0xff]
    %v447 = vld [vmem:[#allocation2 + $0x88] sm:$0xff]
    %v448 = vld [vmem:[#allocation2 + $0x90] sm:$0xff]
    %v449 = vld [vmem:[#allocation2 + $0x98] sm:$0xff]
    %v450 = vld [vmem:[#allocation2 + $0xa0] sm:$0xff]
    %v451 = vld [vmem:[#allocation2 + $0xa8] sm:$0xff]
    %v452 = vld [vmem:[#allocation2 + $0xb0] sm:$0xff]
    %v453 = vld [vmem:[#allocation2 + $0xb8] sm:$0xff]
    %v454 = vld [vmem:[#allocation2 + $0xc0] sm:$0xff]
    %v455 = vld [vmem:[#allocation2 + $0xc8] sm:$0xff]
    %v456 = vld [vmem:[#allocation2 + $0xd0] sm:$0xff]
    %v457 = vld [vmem:[#allocation2 + $0xd8] sm:$0xff]
    %v458 = vld [vmem:[#allocation2 + $0xe0] sm:$0xff]
    %v459 = vld [vmem:[#allocation2 + $0xe8] sm:$0xff]
    %v460 = vld [vmem:[#allocation2 + $0xf0] sm:$0xff]
    %v461 = vld [vmem:[#allocation2 + $0xf8] sm:$0xff]
    %v462 = vld [vmem:[%s2] sm:$0x1]
    %v464 = vperm.slane %v462, 0
    %v466 = vadd.f32 %v430, %v464
    %v467 = vadd.f32 %v431, %v464
    %v468 = vadd.f32 %v432, %v464
    %v469 = vadd.f32 %v433, %v464
    %v470 = vadd.f32 %v434, %v464
    %v471 = vadd.f32 %v435, %v464
    %v472 = vadd.f32 %v436, %v464
    %v473 = vadd.f32 %v437, %v464
    %v474 = vadd.f32 %v438, %v464
    %v475 = vadd.f32 %v439, %v464
    %v476 = vadd.f32 %v440, %v464
    %v477 = vadd.f32 %v441, %v464
    %v478 = vadd.f32 %v442, %v464
    %v479 = vadd.f32 %v443, %v464
    %v480 = vadd.f32 %v444, %v464
    %v481 = vadd.f32 %v445, %v464
    %v482 = vadd.f32 %v446, %v464
    %v483 = vadd.f32 %v447, %v464
    %v484 = vadd.f32 %v448, %v464
    %v485 = vadd.f32 %v449, %v464
    %v486 = vadd.f32 %v450, %v464
    %v487 = vadd.f32 %v451, %v464
    %v488 = vadd.f32 %v452, %v464
    %v489 = vadd.f32 %v453, %v464
    %v490 = vadd.f32 %v454, %v464
    %v491 = vadd.f32 %v455, %v464
    %v492 = vadd.f32 %v456, %v464
    %v493 = vadd.f32 %v457, %v464
    %v494 = vadd.f32 %v458, %v464
    %v495 = vadd.f32 %v459, %v464
    %v496 = vadd.f32 %v460, %v464
    %v497 = vadd.f32 %v461, %v464
    %v498 = vmax.f32 %v466, 0.0
    %v499 = vmax.f32 %v467, 0.0
    %v500 = vmax.f32 %v468, 0.0
    %v501 = vmax.f32 %v469, 0.0
    %v502 = vmax.f32 %v470, 0.0
    %v503 = vmax.f32 %v471, 0.0
    %v504 = vmax.f32 %v472, 0.0
    %v505 = vmax.f32 %v473, 0.0
    %v506 = vmax.f32 %v474, 0.0
    %v507 = vmax.f32 %v475, 0.0
    %v508 = vmax.f32 %v476, 0.0
    %v509 = vmax.f32 %v477, 0.0
    %v510 = vmax.f32 %v478, 0.0
    %v511 = vmax.f32 %v479, 0.0
    %v512 = vmax.f32 %v480, 0.0
    %v513 = vmax.f32 %v481, 0.0
    %v514 = vmax.f32 %v482, 0.0
    %v515 = vmax.f32 %v483, 0.0
    %v516 = vmax.f32 %v484, 0.0
    %v517 = vmax.f32 %v485, 0.0
    %v518 = vmax.f32 %v486, 0.0
    %v519 = vmax.f32 %v487, 0.0
    %v520 = vmax.f32 %v488, 0.0
    %v521 = vmax.f32 %v489, 0.0
    %v522 = vmax.f32 %v490, 0.0
    %v523 = vmax.f32 %v491, 0.0
    %v524 = vmax.f32 %v492, 0.0
    %v525 = vmax.f32 %v493, 0.0
    %v526 = vmax.f32 %v494, 0.0
    %v527 = vmax.f32 %v495, 0.0
    %v528 = vmax.f32 %v496, 0.0
    %v529 = vmax.f32 %v497, 0.0
    %v530 = vpack.c.bf16 %v498, %v498
    %v531 = vpack.c.bf16 %v499, %v499
    %v532 = vpack.c.bf16 %v500, %v500
    %v533 = vpack.c.bf16 %v501, %v501
    %v534 = vpack.c.bf16 %v502, %v502
    %v535 = vpack.c.bf16 %v503, %v503
    %v536 = vpack.c.bf16 %v504, %v504
    %v537 = vpack.c.bf16 %v505, %v505
    %v538 = vpack.c.bf16 %v506, %v506
    %v539 = vpack.c.bf16 %v507, %v507
    %v540 = vpack.c.bf16 %v508, %v508
    %v541 = vpack.c.bf16 %v509, %v509
    %v542 = vpack.c.bf16 %v510, %v510
    %v543 = vpack.c.bf16 %v511, %v511
    %v544 = vpack.c.bf16 %v512, %v512
    %v545 = vpack.c.bf16 %v513, %v513
    %v546 = vpack.c.bf16 %v514, %v514
    %v547 = vpack.c.bf16 %v515, %v515
    %v548 = vpack.c.bf16 %v516, %v516
    %v549 = vpack.c.bf16 %v517, %v517
    %v550 = vpack.c.bf16 %v518, %v518
    %v551 = vpack.c.bf16 %v519, %v519
    %v552 = vpack.c.bf16 %v520, %v520
    %v553 = vpack.c.bf16 %v521, %v521
    %v554 = vpack.c.bf16 %v522, %v522
    %v555 = vpack.c.bf16 %v523, %v523
    %v556 = vpack.c.bf16 %v524, %v524
    %v557 = vpack.c.bf16 %v525, %v525
    %v558 = vpack.c.bf16 %v526, %v526
    %v559 = vpack.c.bf16 %v527, %v527
    %v560 = vpack.c.bf16 %v528, %v528
    %v561 = vpack.c.bf16 %v529, %v529
    %562 = vst [vmem:[%s3] sm:$0xf] %v530
    %563 = vst [vmem:[%s3 + $0x4] sm:$0xf] %v531
    %564 = vst [vmem:[%s3 + $0x8] sm:$0xf] %v532
    %565 = vst [vmem:[%s3 + $0xc] sm:$0xf] %v533
    %566 = vst [vmem:[%s3 + $0x10] sm:$0xf] %v534
    %567 = vst [vmem:[%s3 + $0x14] sm:$0xf] %v535
    %568 = vst [vmem:[%s3 + $0x18] sm:$0xf] %v536
    %569 = vst [vmem:[%s3 + $0x1c] sm:$0xf] %v537
    %570 = vst [vmem:[%s3 + $0x20] sm:$0xf] %v538
    %571 = vst [vmem:[%s3 + $0x24] sm:$0xf] %v539
    %572 = vst [vmem:[%s3 + $0x28] sm:$0xf] %v540
    %573 = vst [vmem:[%s3 + $0x2c] sm:$0xf] %v541
    %574 = vst [vmem:[%s3 + $0x30] sm:$0xf] %v542
    %575 = vst [vmem:[%s3 + $0x34] sm:$0xf] %v543
    %576 = vst [vmem:[%s3 + $0x38] sm:$0xf] %v544
    %577 = vst [vmem:[%s3 + $0x3c] sm:$0xf] %v545
    %578 = vst [vmem:[%s3 + $0x40] sm:$0xf] %v546
    %579 = vst [vmem:[%s3 + $0x44] sm:$0xf] %v547
    %580 = vst [vmem:[%s3 + $0x48] sm:$0xf] %v548
    %581 = vst [vmem:[%s3 + $0x4c] sm:$0xf] %v549
    %582 = vst [vmem:[%s3 + $0x50] sm:$0xf] %v550
    %583 = vst [vmem:[%s3 + $0x54] sm:$0xf] %v551
    %584 = vst [vmem:[%s3 + $0x58] sm:$0xf] %v552
    %585 = vst [vmem:[%s3 + $0x5c] sm:$0xf] %v553
    %586 = vst [vmem:[%s3 + $0x60] sm:$0xf] %v554
    %587 = vst [vmem:[%s3 + $0x64] sm:$0xf] %v555
    %588 = vst [vmem:[%s3 + $0x68] sm:$0xf] %v556
    %589 = vst [vmem:[%s3 + $0x6c] sm:$0xf] %v557
    %590 = vst [vmem:[%s3 + $0x70] sm:$0xf] %v558
    %591 = vst [vmem:[%s3 + $0x74] sm:$0xf] %v559
    %592 = vst [vmem:[%s3 + $0x78] sm:$0xf] %v560
    %593 = vst [vmem:[%s3 + $0x7c] sm:$0xf] %v561
  $region21: #{fwd.9} parent=0 // pred_fallthru
    _
  // Predicated region
  $region22: #{fwd.9} parent=0 // pred_check
    _
  $region23: #{fwd.9} parent=0 // pred_check_branch
    %595 = sbr.rel (0) target = $region25
  $region24: #{fwd.9} parent=0 // pred_region
    _
  $region25: #{fwd.9} parent=0 // pred_fallthru
    _
  // Predicated region
  $region26: #{fwd.9} parent=0 // pred_check
    _
  $region27: #{fwd.9} parent=0 // pred_check_branch
    %597 = sbr.rel (0) target = $region29
  $region28: #{fwd.9} parent=0 // pred_region
    _
  $region29: #{fwd.9} parent=0 // pred_fallthru
    _

// kernel: fwd.12
$region0: #{fwd.12}
  #allocation0 [shape = 'u32[]', space=smem, size = 0x4, offset = 0x4, fixed_abs, tag = 'smem constant byte address 0x4 - core index']
  #allocation1 [shape = 'u32[72,128]{1,0:T(1,128)}', space=vmem, size = 0x9000, scoped, tag = 'internal scratch']
  #allocation2 [shape = 'f32[16,128]{1,0:T(8,128)}', space=vmem, size = 0x2000, scoped, tag = 'scratch operand']
  %s0 = inlined_call_operand.vmem [shape: bf16[16,128], index: 0, kind: input, shape index: {}]
  %s1 = inlined_call_operand.vmem [shape: bf16[128,128], index: 1, kind: input, shape index: {}]
  %s2 = inlined_call_operand.vmem [shape: f32[1,128], index: 2, kind: input, shape index: {}]
  %s3 = inlined_call_operand.vmem [shape: f32[16,128], index: 3, kind: output, shape index: {}]
  %s4 = sld [smem:[#allocation0]]
  $region30: #{fwd.12} parent=0
    _
  %s6 = ssub.s32 1, %s4
  %s7 = scalar_select 0, %s6, %s4
  // Predicated region
  $region2: #{fwd.12} parent=0 // pred_check
    _
  $region3: #{fwd.12} parent=0 // pred_check_branch
    %9 = sbr.rel (0) target = $region5
  $region4: #{fwd.12} parent=0 // pred_region
    _
  $region5: #{fwd.12} parent=0 // pred_fallthru
    _
  // Predicated region
  $region6: #{fwd.12} parent=0 // pred_check
    _
  $region7: #{fwd.12} parent=0 // pred_check_branch
    %11 = sbr.rel (0) target = $region9
  $region8: #{fwd.12} parent=0 // pred_region
    _
  $region9: #{fwd.12} parent=0 // pred_fallthru
    _
  // Predicated region
  $region10: #{fwd.12} parent=0 // pred_check
    _
  $region11: #{fwd.12} parent=0 // pred_check_branch
    %13 = sbr.rel (0) target = $region13
  $region12: #{fwd.12} parent=0 // pred_region
    _
  $region13: #{fwd.12} parent=0 // pred_fallthru
    _
  %p14 = scmp.eq.s32.totalorder 0, 0
  // Predicated region
  $region14: #{fwd.12} parent=0 // pred_check
    %p15 = pneg %p14
  $region15: #{fwd.12} parent=0 // pred_check_branch
    %17 = sbr.rel (%p15) target = $region17
  $region16: #{fwd.12} parent=0 // pred_region
    %18 = vst [vmem:[#allocation2] sm:$0xff] 0.0
    %19 = vst [vmem:[#allocation2 + $0x8] sm:$0xff] 0.0
  $region17: #{fwd.12} parent=0 // pred_fallthru
    _
  %v20 = vld [vmem:[#allocation2] sm:$0xff]
  %v21 = vld [vmem:[#allocation2 + $0x8] sm:$0xff]
  %v22 = vld [vmem:[%s0] sm:$0xf]
  %v23 = vld [vmem:[%s0 + $0x4] sm:$0xf]
  %v24 = vld [vmem:[%s1] sm:$0xf]
  %v25 = vld [vmem:[%s1 + $0x4] sm:$0xf]
  %v26 = vld [vmem:[%s1 + $0x8] sm:$0xf]
  %v27 = vld [vmem:[%s1 + $0xc] sm:$0xf]
  %v28 = vld [vmem:[%s1 + $0x10] sm:$0xf]
  %v29 = vld [vmem:[%s1 + $0x14] sm:$0xf]
  %v30 = vld [vmem:[%s1 + $0x18] sm:$0xf]
  %v31 = vld [vmem:[%s1 + $0x1c] sm:$0xf]
  %v32 = vld [vmem:[%s1 + $0x20] sm:$0xf]
  %v33 = vld [vmem:[%s1 + $0x24] sm:$0xf]
  %v34 = vld [vmem:[%s1 + $0x28] sm:$0xf]
  %v35 = vld [vmem:[%s1 + $0x2c] sm:$0xf]
  %v36 = vld [vmem:[%s1 + $0x30] sm:$0xf]
  %v37 = vld [vmem:[%s1 + $0x34] sm:$0xf]
  %v38 = vld [vmem:[%s1 + $0x38] sm:$0xf]
  %v39 = vld [vmem:[%s1 + $0x3c] sm:$0xf]
  %v42 = vunpack.c.l.b16 %v22
  %v43 = vunpack.c.l.b16 %v23
  %v44 = vpack.c.b16 %v43, %v42
  %v62 = vunpack.c.l.b16 %v24
  %v63 = vunpack.c.l.b16 %v25
  %v64 = vunpack.c.l.b16 %v26
  %v65 = vunpack.c.l.b16 %v27
  %v66 = vunpack.c.l.b16 %v28
  %v67 = vunpack.c.l.b16 %v29
  %v68 = vunpack.c.l.b16 %v30
  %v69 = vunpack.c.l.b16 %v31
  %v70 = vunpack.c.l.b16 %v32
  %v71 = vunpack.c.l.b16 %v33
  %v72 = vunpack.c.l.b16 %v34
  %v73 = vunpack.c.l.b16 %v35
  %v74 = vunpack.c.l.b16 %v36
  %v75 = vunpack.c.l.b16 %v37
  %v76 = vunpack.c.l.b16 %v38
  %v77 = vunpack.c.l.b16 %v39
  %v78 = vpack.c.b16 %v63, %v62
  %v79 = vpack.c.b16 %v65, %v64
  %v80 = vpack.c.b16 %v67, %v66
  %v81 = vpack.c.b16 %v69, %v68
  %v82 = vpack.c.b16 %v71, %v70
  %v83 = vpack.c.b16 %v73, %v72
  %v84 = vpack.c.b16 %v75, %v74
  %v85 = vpack.c.b16 %v77, %v76
  %94 = vmatpush.bf16.msra.mxu0 %v85
  %95 = vmatpush.bf16.msra.mxu0 %v84
  %96 = vmatpush.bf16.msra.mxu0 %v83
  %97 = vmatpush.bf16.msra.mxu0 %v82
  %98 = vmatpush.bf16.msra.mxu0 %v81
  %99 = vmatpush.bf16.msra.mxu0 %v80
  %100 = vmatpush.bf16.msra.mxu0 %v79
  %101 = vmatpush.bf16.msra.mxu0 %v78
  %102 = vmatmul.bf16.gmra.mxu0 %v44
  %v103 = vpop.f32.mrf.mxu0
  %v104 = vadd.f32 0.0, %v103
  %v105 = vpop.f32.mrf.mxu0
  %v106 = vadd.f32 0.0, %v105
  %107 = vdwg.mxu0
  %v108 = vadd.f32 %v20, %v104
  %v109 = vadd.f32 %v21, %v106
  %110 = vst [vmem:[#allocation2] sm:$0xff] %v108
  %111 = vst [vmem:[#allocation2 + $0x8] sm:$0xff] %v109
  // Predicated region
  $region18: #{fwd.12} parent=0 // pred_check
    %p112 = pneg %p14
  $region19: #{fwd.12} parent=0 // pred_check_branch
    %114 = sbr.rel (%p112) target = $region21
  $region20: #{fwd.12} parent=0 // pred_region
    %v115 = vld [vmem:[#allocation2] sm:$0xff]
    %v116 = vld [vmem:[#allocation2 + $0x8] sm:$0xff]
    %v117 = vld [vmem:[%s2] sm:$0x1]
    %v119 = vperm.slane %v117, 0
    %v121 = vadd.f32 %v115, %v119
    %v122 = vadd.f32 %v116, %v119
    %123 = vst [vmem:[%s3] sm:$0xff] %v121
    %124 = vst [vmem:[%s3 + $0x8] sm:$0xff] %v122
  $region21: #{fwd.12} parent=0 // pred_fallthru
    _
  // Predicated region
  $region22: #{fwd.12} parent=0 // pred_check
    _
  $region23: #{fwd.12} parent=0 // pred_check_branch
    %126 = sbr.rel (0) target = $region25
  $region24: #{fwd.12} parent=0 // pred_region
    _
  $region25: #{fwd.12} parent=0 // pred_fallthru
    _
  // Predicated region
  $region26: #{fwd.12} parent=0 // pred_check
    _
  $region27: #{fwd.12} parent=0 // pred_check_branch
    %128 = sbr.rel (0) target = $region29
  $region28: #{fwd.12} parent=0 // pred_region
    _
  $region29: #{fwd.12} parent=0 // pred_fallthru
    _

// kernel: fwd.13
$region0: #{fwd.13}
  #allocation0 [shape = 'u32[]', space=smem, size = 0x4, offset = 0x4, fixed_abs, tag = 'smem constant byte address 0x4 - core index']
  #allocation1 [shape = 'u32[72,128]{1,0:T(1,128)}', space=vmem, size = 0x9000, scoped, tag = 'internal scratch']
  #allocation2 [shape = 'f32[16,128]{1,0:T(8,128)}', space=vmem, size = 0x2000, scoped, tag = 'scratch operand']
  %s0 = inlined_call_operand.vmem [shape: bf16[16,128], index: 0, kind: input, shape index: {}]
  %s1 = inlined_call_operand.vmem [shape: bf16[128,128], index: 1, kind: input, shape index: {}]
  %s2 = inlined_call_operand.vmem [shape: f32[1,128], index: 2, kind: input, shape index: {}]
  %s3 = inlined_call_operand.vmem [shape: bf16[16,128], index: 3, kind: output, shape index: {}]
  %s4 = sld [smem:[#allocation0]]
  $region30: #{fwd.13} parent=0
    _
  %s6 = ssub.s32 1, %s4
  %s7 = scalar_select 0, %s6, %s4
  // Predicated region
  $region2: #{fwd.13} parent=0 // pred_check
    _
  $region3: #{fwd.13} parent=0 // pred_check_branch
    %9 = sbr.rel (0) target = $region5
  $region4: #{fwd.13} parent=0 // pred_region
    _
  $region5: #{fwd.13} parent=0 // pred_fallthru
    _
  // Predicated region
  $region6: #{fwd.13} parent=0 // pred_check
    _
  $region7: #{fwd.13} parent=0 // pred_check_branch
    %11 = sbr.rel (0) target = $region9
  $region8: #{fwd.13} parent=0 // pred_region
    _
  $region9: #{fwd.13} parent=0 // pred_fallthru
    _
  // Predicated region
  $region10: #{fwd.13} parent=0 // pred_check
    _
  $region11: #{fwd.13} parent=0 // pred_check_branch
    %13 = sbr.rel (0) target = $region13
  $region12: #{fwd.13} parent=0 // pred_region
    _
  $region13: #{fwd.13} parent=0 // pred_fallthru
    _
  %p14 = scmp.eq.s32.totalorder 0, 0
  // Predicated region
  $region14: #{fwd.13} parent=0 // pred_check
    %p15 = pneg %p14
  $region15: #{fwd.13} parent=0 // pred_check_branch
    %17 = sbr.rel (%p15) target = $region17
  $region16: #{fwd.13} parent=0 // pred_region
    %18 = vst [vmem:[#allocation2] sm:$0xff] 0.0
    %19 = vst [vmem:[#allocation2 + $0x8] sm:$0xff] 0.0
  $region17: #{fwd.13} parent=0 // pred_fallthru
    _
  %v20 = vld [vmem:[#allocation2] sm:$0xff]
  %v21 = vld [vmem:[#allocation2 + $0x8] sm:$0xff]
  %v22 = vld [vmem:[%s0] sm:$0xf]
  %v23 = vld [vmem:[%s0 + $0x4] sm:$0xf]
  %v24 = vld [vmem:[%s1] sm:$0xf]
  %v25 = vld [vmem:[%s1 + $0x4] sm:$0xf]
  %v26 = vld [vmem:[%s1 + $0x8] sm:$0xf]
  %v27 = vld [vmem:[%s1 + $0xc] sm:$0xf]
  %v28 = vld [vmem:[%s1 + $0x10] sm:$0xf]
  %v29 = vld [vmem:[%s1 + $0x14] sm:$0xf]
  %v30 = vld [vmem:[%s1 + $0x18] sm:$0xf]
  %v31 = vld [vmem:[%s1 + $0x1c] sm:$0xf]
  %v32 = vld [vmem:[%s1 + $0x20] sm:$0xf]
  %v33 = vld [vmem:[%s1 + $0x24] sm:$0xf]
  %v34 = vld [vmem:[%s1 + $0x28] sm:$0xf]
  %v35 = vld [vmem:[%s1 + $0x2c] sm:$0xf]
  %v36 = vld [vmem:[%s1 + $0x30] sm:$0xf]
  %v37 = vld [vmem:[%s1 + $0x34] sm:$0xf]
  %v38 = vld [vmem:[%s1 + $0x38] sm:$0xf]
  %v39 = vld [vmem:[%s1 + $0x3c] sm:$0xf]
  %v42 = vunpack.c.l.b16 %v22
  %v43 = vunpack.c.l.b16 %v23
  %v44 = vpack.c.b16 %v43, %v42
  %v62 = vunpack.c.l.b16 %v24
  %v63 = vunpack.c.l.b16 %v25
  %v64 = vunpack.c.l.b16 %v26
  %v65 = vunpack.c.l.b16 %v27
  %v66 = vunpack.c.l.b16 %v28
  %v67 = vunpack.c.l.b16 %v29
  %v68 = vunpack.c.l.b16 %v30
  %v69 = vunpack.c.l.b16 %v31
  %v70 = vunpack.c.l.b16 %v32
  %v71 = vunpack.c.l.b16 %v33
  %v72 = vunpack.c.l.b16 %v34
  %v73 = vunpack.c.l.b16 %v35
  %v74 = vunpack.c.l.b16 %v36
  %v75 = vunpack.c.l.b16 %v37
  %v76 = vunpack.c.l.b16 %v38
  %v77 = vunpack.c.l.b16 %v39
  %v78 = vpack.c.b16 %v63, %v62
  %v79 = vpack.c.b16 %v65, %v64
  %v80 = vpack.c.b16 %v67, %v66
  %v81 = vpack.c.b16 %v69, %v68
  %v82 = vpack.c.b16 %v71, %v70
  %v83 = vpack.c.b16 %v73, %v72
  %v84 = vpack.c.b16 %v75, %v74
  %v85 = vpack.c.b16 %v77, %v76
  %94 = vmatpush.bf16.msra.mxu0 %v85
  %95 = vmatpush.bf16.msra.mxu0 %v84
  %96 = vmatpush.bf16.msra.mxu0 %v83
  %97 = vmatpush.bf16.msra.mxu0 %v82
  %98 = vmatpush.bf16.msra.mxu0 %v81
  %99 = vmatpush.bf16.msra.mxu0 %v80
  %100 = vmatpush.bf16.msra.mxu0 %v79
  %101 = vmatpush.bf16.msra.mxu0 %v78
  %102 = vmatmul.bf16.gmra.mxu0 %v44
  %v103 = vpop.f32.mrf.mxu0
  %v104 = vadd.f32 0.0, %v103
  %v105 = vpop.f32.mrf.mxu0
  %v106 = vadd.f32 0.0, %v105
  %107 = vdwg.mxu0
  %v108 = vadd.f32 %v20, %v104
  %v109 = vadd.f32 %v21, %v106
  %110 = vst [vmem:[#allocation2] sm:$0xff] %v108
  %111 = vst [vmem:[#allocation2 + $0x8] sm:$0xff] %v109
  // Predicated region
  $region18: #{fwd.13} parent=0 // pred_check
    %p112 = pneg %p14
  $region19: #{fwd.13} parent=0 // pred_check_branch
    %114 = sbr.rel (%p112) target = $region21
  $region20: #{fwd.13} parent=0 // pred_region
    %v115 = vld [vmem:[#allocation2] sm:$0xff]
    %v116 = vld [vmem:[#allocation2 + $0x8] sm:$0xff]
    %v117 = vld [vmem:[%s2] sm:$0x1]
    %v119 = vperm.slane %v117, 0
    %v121 = vadd.f32 %v115, %v119
    %v122 = vadd.f32 %v116, %v119
    %v123 = vmax.f32 %v121, 0.0
    %v124 = vmax.f32 %v122, 0.0
    %v125 = vpack.c.bf16 %v123, %v123
    %v126 = vpack.c.bf16 %v124, %v124
    %127 = vst [vmem:[%s3] sm:$0xf] %v125
    %128 = vst [vmem:[%s3 + $0x4] sm:$0xf] %v126
  $region21: #{fwd.13} parent=0 // pred_fallthru
    _
  // Predicated region
  $region22: #{fwd.13} parent=0 // pred_check
    _
  $region23: #{fwd.13} parent=0 // pred_check_branch
    %130 = sbr.rel (0) target = $region25
  $region24: #{fwd.13} parent=0 // pred_region
    _
  $region25: #{fwd.13} parent=0 // pred_fallthru
    _
  // Predicated region
  $region26: #{fwd.13} parent=0 // pred_check
    _
  $region27: #{fwd.13} parent=0 // pred_check_branch
    %132 = sbr.rel (0) target = $region29
  $region28: #{fwd.13} parent=0 // pred_region
    _
  $region29: #{fwd.13} parent=0 // pred_fallthru
    _

// kernel: fwd.11
$region0: #{fwd.11}
  #allocation0 [shape = 'u32[]', space=smem, size = 0x4, offset = 0x4, fixed_abs, tag = 'smem constant byte address 0x4 - core index']
  #allocation1 [shape = 'u32[72,128]{1,0:T(1,128)}', space=vmem, size = 0x9000, scoped, tag = 'internal scratch']
  #allocation2 [shape = 'f32[16,128]{1,0:T(8,128)}', space=vmem, size = 0x2000, scoped, tag = 'scratch operand']
  %s0 = inlined_call_operand.vmem [shape: bf16[16,256], index: 0, kind: input, shape index: {}]
  %s1 = inlined_call_operand.vmem [shape: bf16[256,128], index: 1, kind: input, shape index: {}]
  %s2 = inlined_call_operand.vmem [shape: f32[1,128], index: 2, kind: input, shape index: {}]
  %s3 = inlined_call_operand.vmem [shape: bf16[16,128], index: 3, kind: output, shape index: {}]
  %s4 = sld [smem:[#allocation0]]
  $region30: #{fwd.11} parent=0
    _
  %s6 = ssub.s32 1, %s4
  %s7 = scalar_select 0, %s6, %s4
  // Predicated region
  $region2: #{fwd.11} parent=0 // pred_check
    _
  $region3: #{fwd.11} parent=0 // pred_check_branch
    %9 = sbr.rel (0) target = $region5
  $region4: #{fwd.11} parent=0 // pred_region
    _
  $region5: #{fwd.11} parent=0 // pred_fallthru
    _
  // Predicated region
  $region6: #{fwd.11} parent=0 // pred_check
    _
  $region7: #{fwd.11} parent=0 // pred_check_branch
    %11 = sbr.rel (0) target = $region9
  $region8: #{fwd.11} parent=0 // pred_region
    _
  $region9: #{fwd.11} parent=0 // pred_fallthru
    _
  // Predicated region
  $region10: #{fwd.11} parent=0 // pred_check
    _
  $region11: #{fwd.11} parent=0 // pred_check_branch
    %13 = sbr.rel (0) target = $region13
  $region12: #{fwd.11} parent=0 // pred_region
    _
  $region13: #{fwd.11} parent=0 // pred_fallthru
    _
  %p14 = scmp.eq.s32.totalorder 0, 0
  // Predicated region
  $region14: #{fwd.11} parent=0 // pred_check
    %p15 = pneg %p14
  $region15: #{fwd.11} parent=0 // pred_check_branch
    %17 = sbr.rel (%p15) target = $region17
  $region16: #{fwd.11} parent=0 // pred_region
    %18 = vst [vmem:[#allocation2] sm:$0xff] 0.0
    %19 = vst [vmem:[#allocation2 + $0x8] sm:$0xff] 0.0
  $region17: #{fwd.11} parent=0 // pred_fallthru
    _
  %v20 = vld [vmem:[#allocation2] sm:$0xff]
  %v21 = vld [vmem:[#allocation2 + $0x8] sm:$0xff]
  %v22 = vld [vmem:[%s0] sm:$0xff]
  %v23 = vld [vmem:[%s0 + $0x8] sm:$0xff]
  %v24 = vld [vmem:[%s1] sm:$0xf]
  %v25 = vld [vmem:[%s1 + $0x4] sm:$0xf]
  %v26 = vld [vmem:[%s1 + $0x8] sm:$0xf]
  %v27 = vld [vmem:[%s1 + $0xc] sm:$0xf]
  %v28 = vld [vmem:[%s1 + $0x10] sm:$0xf]
  %v29 = vld [vmem:[%s1 + $0x14] sm:$0xf]
  %v30 = vld [vmem:[%s1 + $0x18] sm:$0xf]
  %v31 = vld [vmem:[%s1 + $0x1c] sm:$0xf]
  %v32 = vld [vmem:[%s1 + $0x20] sm:$0xf]
  %v33 = vld [vmem:[%s1 + $0x24] sm:$0xf]
  %v34 = vld [vmem:[%s1 + $0x28] sm:$0xf]
  %v35 = vld [vmem:[%s1 + $0x2c] sm:$0xf]
  %v36 = vld [vmem:[%s1 + $0x30] sm:$0xf]
  %v37 = vld [vmem:[%s1 + $0x34] sm:$0xf]
  %v38 = vld [vmem:[%s1 + $0x38] sm:$0xf]
  %v39 = vld [vmem:[%s1 + $0x3c] sm:$0xf]
  %v40 = vld [vmem:[%s1 + $0x40] sm:$0xf]
  %v41 = vld [vmem:[%s1 + $0x44] sm:$0xf]
  %v42 = vld [vmem:[%s1 + $0x48] sm:$0xf]
  %v43 = vld [vmem:[%s1 + $0x4c] sm:$0xf]
  %v44 = vld [vmem:[%s1 + $0x50] sm:$0xf]
  %v45 = vld [vmem:[%s1 + $0x54] sm:$0xf]
  %v46 = vld [vmem:[%s1 + $0x58] sm:$0xf]
  %v47 = vld [vmem:[%s1 + $0x5c] sm:$0xf]
  %v48 = vld [vmem:[%s1 + $0x60] sm:$0xf]
  %v49 = vld [vmem:[%s1 + $0x64] sm:$0xf]
  %v50 = vld [vmem:[%s1 + $0x68] sm:$0xf]
  %v51 = vld [vmem:[%s1 + $0x6c] sm:$0xf]
  %v52 = vld [vmem:[%s1 + $0x70] sm:$0xf]
  %v53 = vld [vmem:[%s1 + $0x74] sm:$0xf]
  %v54 = vld [vmem:[%s1 + $0x78] sm:$0xf]
  %v55 = vld [vmem:[%s1 + $0x7c] sm:$0xf]
  %v58 = vunpack.c.l.b16 %v22
  %v59 = vunpack.c.h.b16 %v22
  %v60 = vunpack.c.l.b16 %v23
  %v61 = vunpack.c.h.b16 %v23
  %v62 = vpack.c.b16 %v60, %v58
  %v63 = vpack.c.b16 %v61, %v59
  %v98 = vunpack.c.l.b16 %v24
  %v99 = vunpack.c.l.b16 %v25
  %v100 = vunpack.c.l.b16 %v26
  %v101 = vunpack.c.l.b16 %v27
  %v102 = vunpack.c.l.b16 %v28
  %v103 = vunpack.c.l.b16 %v29
  %v104 = vunpack.c.l.b16 %v30
  %v105 = vunpack.c.l.b16 %v31
  %v106 = vunpack.c.l.b16 %v32
  %v107 = vunpack.c.l.b16 %v33
  %v108 = vunpack.c.l.b16 %v34
  %v109 = vunpack.c.l.b16 %v35
  %v110 = vunpack.c.l.b16 %v36
  %v111 = vunpack.c.l.b16 %v37
  %v112 = vunpack.c.l.b16 %v38
  %v113 = vunpack.c.l.b16 %v39
  %v114 = vunpack.c.l.b16 %v40
  %v115 = vunpack.c.l.b16 %v41
  %v116 = vunpack.c.l.b16 %v42
  %v117 = vunpack.c.l.b16 %v43
  %v118 = vunpack.c.l.b16 %v44
  %v119 = vunpack.c.l.b16 %v45
  %v120 = vunpack.c.l.b16 %v46
  %v121 = vunpack.c.l.b16 %v47
  %v122 = vunpack.c.l.b16 %v48
  %v123 = vunpack.c.l.b16 %v49
  %v124 = vunpack.c.l.b16 %v50
  %v125 = vunpack.c.l.b16 %v51
  %v126 = vunpack.c.l.b16 %v52
  %v127 = vunpack.c.l.b16 %v53
  %v128 = vunpack.c.l.b16 %v54
  %v129 = vunpack.c.l.b16 %v55
  %v130 = vpack.c.b16 %v99, %v98
  %v131 = vpack.c.b16 %v101, %v100
  %v132 = vpack.c.b16 %v103, %v102
  %v133 = vpack.c.b16 %v105, %v104
  %v134 = vpack.c.b16 %v107, %v106
  %v135 = vpack.c.b16 %v109, %v108
  %v136 = vpack.c.b16 %v111, %v110
  %v137 = vpack.c.b16 %v113, %v112
  %v138 = vpack.c.b16 %v115, %v114
  %v139 = vpack.c.b16 %v117, %v116
  %v140 = vpack.c.b16 %v119, %v118
  %v141 = vpack.c.b16 %v121, %v120
  %v142 = vpack.c.b16 %v123, %v122
  %v143 = vpack.c.b16 %v125, %v124
  %v144 = vpack.c.b16 %v127, %v126
  %v145 = vpack.c.b16 %v129, %v128
  %162 = vmatpush.bf16.msra.mxu0 %v137
  %163 = vmatpush.bf16.msra.mxu0 %v136
  %164 = vmatpush.bf16.msra.mxu0 %v135
  %165 = vmatpush.bf16.msra.mxu0 %v134
  %166 = vmatpush.bf16.msra.mxu0 %v133
  %167 = vmatpush.bf16.msra.mxu0 %v132
  %168 = vmatpush.bf16.msra.mxu0 %v131
  %169 = vmatpush.bf16.msra.mxu0 %v130
  %170 = vmatmul.bf16.gmra.mxu0 %v62
  %v171 = vpop.f32.mrf.mxu0
  %v172 = vadd.f32 0.0, %v171
  %v173 = vpop.f32.mrf.mxu0
  %v174 = vadd.f32 0.0, %v173
  %175 = vdwg.mxu0
  %176 = vmatpush.bf16.msra.mxu0 %v145
  %177 = vmatpush.bf16.msra.mxu0 %v144
  %178 = vmatpush.bf16.msra.mxu0 %v143
  %179 = vmatpush.bf16.msra.mxu0 %v142
  %180 = vmatpush.bf16.msra.mxu0 %v141
  %181 = vmatpush.bf16.msra.mxu0 %v140
  %182 = vmatpush.bf16.msra.mxu0 %v139
  %183 = vmatpush.bf16.msra.mxu0 %v138
  %184 = vmatmul.bf16.gmra.mxu0 %v63
  %v185 = vpop.f32.mrf.mxu0
  %v186 = vadd.f32 %v172, %v185
  %v187 = vpop.f32.mrf.mxu0
  %v188 = vadd.f32 %v174, %v187
  %189 = vdwg.mxu0
  %v190 = vadd.f32 %v20, %v186
  %v191 = vadd.f32 %v21, %v188
  %192 = vst [vmem:[#allocation2] sm:$0xff] %v190
  %193 = vst [vmem:[#allocation2 + $0x8] sm:$0xff] %v191
  // Predicated region
  $region18: #{fwd.11} parent=0 // pred_check
    %p194 = pneg %p14
  $region19: #{fwd.11} parent=0 // pred_check_branch
    %196 = sbr.rel (%p194) target = $region21
  $region20: #{fwd.11} parent=0 // pred_region
    %v197 = vld [vmem:[#allocation2] sm:$0xff]
    %v198 = vld [vmem:[#allocation2 + $0x8] sm:$0xff]
    %v199 = vld [vmem:[%s2] sm:$0x1]
    %v201 = vperm.slane %v199, 0
    %v203 = vadd.f32 %v197, %v201
    %v204 = vadd.f32 %v198, %v201
    %v205 = vmax.f32 %v203, 0.0
    %v206 = vmax.f32 %v204, 0.0
    %v207 = vpack.c.bf16 %v205, %v205
    %v208 = vpack.c.bf16 %v206, %v206
    %209 = vst [vmem:[%s3] sm:$0xf] %v207
    %210 = vst [vmem:[%s3 + $0x4] sm:$0xf] %v208
  $region21: #{fwd.11} parent=0 // pred_fallthru
    _
  // Predicated region
  $region22: #{fwd.11} parent=0 // pred_check
    _
  $region23: #{fwd.11} parent=0 // pred_check_branch
    %212 = sbr.rel (0) target = $region25
  $region24: #{fwd.11} parent=0 // pred_region
    _
  $region25: #{fwd.11} parent=0 // pred_fallthru
    _
  // Predicated region
  $region26: #{fwd.11} parent=0 // pred_check
    _
  $region27: #{fwd.11} parent=0 // pred_check_branch
    %214 = sbr.rel (0) target = $region29
  $region28: #{fwd.11} parent=0 // pred_region
    _
  $region29: #{fwd.11} parent=0 // pred_fallthru
    _

// kernel: fwd.14
$region0: #{fwd.14}
  #allocation0 [shape = 'u32[]', space=smem, size = 0x4, offset = 0x4, fixed_abs, tag = 'smem constant byte address 0x4 - core index']
  #allocation1 [shape = 'u32[72,128]{1,0:T(1,128)}', space=vmem, size = 0x9000, scoped, tag = 'internal scratch']
  #allocation2 [shape = 'f32[64,128]{1,0:T(8,128)}', space=vmem, size = 0x8000, scoped, tag = 'scratch operand']
  %s0 = inlined_call_operand.vmem [shape: bf16[64,128], index: 0, kind: input, shape index: {}]
  %s1 = inlined_call_operand.vmem [shape: bf16[128,128], index: 1, kind: input, shape index: {}]
  %s2 = inlined_call_operand.vmem [shape: f32[1,128], index: 2, kind: input, shape index: {}]
  %s3 = inlined_call_operand.vmem [shape: bf16[64,128], index: 3, kind: output, shape index: {}]
  %s4 = sld [smem:[#allocation0]]
  $region30: #{fwd.14} parent=0
    _
  %s6 = ssub.s32 1, %s4
  %s7 = scalar_select 0, %s6, %s4
  // Predicated region
  $region2: #{fwd.14} parent=0 // pred_check
    _
  $region3: #{fwd.14} parent=0 // pred_check_branch
    %9 = sbr.rel (0) target = $region5
  $region4: #{fwd.14} parent=0 // pred_region
    _
  $region5: #{fwd.14} parent=0 // pred_fallthru
    _
  // Predicated region
  $region6: #{fwd.14} parent=0 // pred_check
    _
  $region7: #{fwd.14} parent=0 // pred_check_branch
    %11 = sbr.rel (0) target = $region9
  $region8: #{fwd.14} parent=0 // pred_region
    _
  $region9: #{fwd.14} parent=0 // pred_fallthru
    _
  // Predicated region
  $region10: #{fwd.14} parent=0 // pred_check
    _
  $region11: #{fwd.14} parent=0 // pred_check_branch
    %13 = sbr.rel (0) target = $region13
  $region12: #{fwd.14} parent=0 // pred_region
    _
  $region13: #{fwd.14} parent=0 // pred_fallthru
    _
  %p14 = scmp.eq.s32.totalorder 0, 0
  // Predicated region
  $region14: #{fwd.14} parent=0 // pred_check
    %p15 = pneg %p14
  $region15: #{fwd.14} parent=0 // pred_check_branch
    %17 = sbr.rel (%p15) target = $region17
  $region16: #{fwd.14} parent=0 // pred_region
    %18 = vst [vmem:[#allocation2] sm:$0xff] 0.0
    %19 = vst [vmem:[#allocation2 + $0x8] sm:$0xff] 0.0
    %20 = vst [vmem:[#allocation2 + $0x10] sm:$0xff] 0.0
    %21 = vst [vmem:[#allocation2 + $0x18] sm:$0xff] 0.0
    %22 = vst [vmem:[#allocation2 + $0x20] sm:$0xff] 0.0
    %23 = vst [vmem:[#allocation2 + $0x28] sm:$0xff] 0.0
    %24 = vst [vmem:[#allocation2 + $0x30] sm:$0xff] 0.0
    %25 = vst [vmem:[#allocation2 + $0x38] sm:$0xff] 0.0
  $region17: #{fwd.14} parent=0 // pred_fallthru
    _
  %v26 = vld [vmem:[#allocation2] sm:$0xff]
  %v27 = vld [vmem:[#allocation2 + $0x8] sm:$0xff]
  %v28 = vld [vmem:[#allocation2 + $0x10] sm:$0xff]
  %v29 = vld [vmem:[#allocation2 + $0x18] sm:$0xff]
  %v30 = vld [vmem:[#allocation2 + $0x20] sm:$0xff]
  %v31 = vld [vmem:[#allocation2 + $0x28] sm:$0xff]
  %v32 = vld [vmem:[#allocation2 + $0x30] sm:$0xff]
  %v33 = vld [vmem:[#allocation2 + $0x38] sm:$0xff]
  %v34 = vld [vmem:[%s0] sm:$0xf]
  %v35 = vld [vmem:[%s0 + $0x4] sm:$0xf]
  %v36 = vld [vmem:[%s0 + $0x8] sm:$0xf]
  %v37 = vld [vmem:[%s0 + $0xc] sm:$0xf]
  %v38 = vld [vmem:[%s0 + $0x10] sm:$0xf]
  %v39 = vld [vmem:[%s0 + $0x14] sm:$0xf]
  %v40 = vld [vmem:[%s0 + $0x18] sm:$0xf]
  %v41 = vld [vmem:[%s0 + $0x1c] sm:$0xf]
  %v42 = vld [vmem:[%s1] sm:$0xf]
  %v43 = vld [vmem:[%s1 + $0x4] sm:$0xf]
  %v44 = vld [vmem:[%s1 + $0x8] sm:$0xf]
  %v45 = vld [vmem:[%s1 + $0xc] sm:$0xf]
  %v46 = vld [vmem:[%s1 + $0x10] sm:$0xf]
  %v47 = vld [vmem:[%s1 + $0x14] sm:$0xf]
  %v48 = vld [vmem:[%s1 + $0x18] sm:$0xf]
  %v49 = vld [vmem:[%s1 + $0x1c] sm:$0xf]
  %v50 = vld [vmem:[%s1 + $0x20] sm:$0xf]
  %v51 = vld [vmem:[%s1 + $0x24] sm:$0xf]
  %v52 = vld [vmem:[%s1 + $0x28] sm:$0xf]
  %v53 = vld [vmem:[%s1 + $0x2c] sm:$0xf]
  %v54 = vld [vmem:[%s1 + $0x30] sm:$0xf]
  %v55 = vld [vmem:[%s1 + $0x34] sm:$0xf]
  %v56 = vld [vmem:[%s1 + $0x38] sm:$0xf]
  %v57 = vld [vmem:[%s1 + $0x3c] sm:$0xf]
  %v66 = vunpack.c.l.b16 %v34
  %v67 = vunpack.c.l.b16 %v35
  %v68 = vunpack.c.l.b16 %v36
  %v69 = vunpack.c.l.b16 %v37
  %v70 = vunpack.c.l.b16 %v38
  %v71 = vunpack.c.l.b16 %v39
  %v72 = vunpack.c.l.b16 %v40
  %v73 = vunpack.c.l.b16 %v41
  %v74 = vpack.c.b16 %v67, %v66
  %v75 = vpack.c.b16 %v69, %v68
  %v76 = vpack.c.b16 %v71, %v70
  %v77 = vpack.c.b16 %v73, %v72
  %v98 = vunpack.c.l.b16 %v42
  %v99 = vunpack.c.l.b16 %v43
  %v100 = vunpack.c.l.b16 %v44
  %v101 = vunpack.c.l.b16 %v45
  %v102 = vunpack.c.l.b16 %v46
  %v103 = vunpack.c.l.b16 %v47
  %v104 = vunpack.c.l.b16 %v48
  %v105 = vunpack.c.l.b16 %v49
  %v106 = vunpack.c.l.b16 %v50
  %v107 = vunpack.c.l.b16 %v51
  %v108 = vunpack.c.l.b16 %v52
  %v109 = vunpack.c.l.b16 %v53
  %v110 = vunpack.c.l.b16 %v54
  %v111 = vunpack.c.l.b16 %v55
  %v112 = vunpack.c.l.b16 %v56
  %v113 = vunpack.c.l.b16 %v57
  %v114 = vpack.c.b16 %v99, %v98
  %v115 = vpack.c.b16 %v101, %v100
  %v116 = vpack.c.b16 %v103, %v102
  %v117 = vpack.c.b16 %v105, %v104
  %v118 = vpack.c.b16 %v107, %v106
  %v119 = vpack.c.b16 %v109, %v108
  %v120 = vpack.c.b16 %v111, %v110
  %v121 = vpack.c.b16 %v113, %v112
  %130 = vmatpush.bf16.msra.mxu0 %v121
  %131 = vmatpush.bf16.msra.mxu0 %v120
  %132 = vmatpush.bf16.msra.mxu0 %v119
  %133 = vmatpush.bf16.msra.mxu0 %v118
  %134 = vmatpush.bf16.msra.mxu0 %v117
  %135 = vmatpush.bf16.msra.mxu0 %v116
  %136 = vmatpush.bf16.msra.mxu0 %v115
  %137 = vmatpush.bf16.msra.mxu0 %v114
  %138 = vmatmul.bf16.gmra.mxu0 %v74
  %v139 = vpop.f32.mrf.mxu0
  %v140 = vadd.f32 0.0, %v139
  %v141 = vpop.f32.mrf.mxu0
  %v142 = vadd.f32 0.0, %v141
  %143 = vmatmul.bf16.gmra.mxu0 %v75
  %v144 = vpop.f32.mrf.mxu0
  %v145 = vadd.f32 0.0, %v144
  %v146 = vpop.f32.mrf.mxu0
  %v147 = vadd.f32 0.0, %v146
  %148 = vmatmul.bf16.gmra.mxu0 %v76
  %v149 = vpop.f32.mrf.mxu0
  %v150 = vadd.f32 0.0, %v149
  %v151 = vpop.f32.mrf.mxu0
  %v152 = vadd.f32 0.0, %v151
  %153 = vmatmul.bf16.gmra.mxu0 %v77
  %v154 = vpop.f32.mrf.mxu0
  %v155 = vadd.f32 0.0, %v154
  %v156 = vpop.f32.mrf.mxu0
  %v157 = vadd.f32 0.0, %v156
  %158 = vdwg.mxu0
  %v159 = vadd.f32 %v26, %v140
  %v160 = vadd.f32 %v27, %v142
  %v161 = vadd.f32 %v28, %v145
  %v162 = vadd.f32 %v29, %v147
  %v163 = vadd.f32 %v30, %v150
  %v164 = vadd.f32 %v31, %v152
  %v165 = vadd.f32 %v32, %v155
  %v166 = vadd.f32 %v33, %v157
  %167 = vst [vmem:[#allocation2] sm:$0xff] %v159
  %168 = vst [vmem:[#allocation2 + $0x8] sm:$0xff] %v160
  %169 = vst [vmem:[#allocation2 + $0x10] sm:$0xff] %v161
  %170 = vst [vmem:[#allocation2 + $0x18] sm:$0xff] %v162
  %171 = vst [vmem:[#allocation2 + $0x20] sm:$0xff] %v163
  %172 = vst [vmem:[#allocation2 + $0x28] sm:$0xff] %v164
  %173 = vst [vmem:[#allocation2 + $0x30] sm:$0xff] %v165
  %174 = vst [vmem:[#allocation2 + $0x38] sm:$0xff] %v166
  // Predicated region
  $region18: #{fwd.14} parent=0 // pred_check
    %p175 = pneg %p14
  $region19: #{fwd.14} parent=0 // pred_check_branch
    %177 = sbr.rel (%p175) target = $region21
  $region20: #{fwd.14} parent=0 // pred_region
    %v178 = vld [vmem:[#allocation2] sm:$0xff]
    %v179 = vld [vmem:[#allocation2 + $0x8] sm:$0xff]
    %v180 = vld [vmem:[#allocation2 + $0x10] sm:$0xff]
    %v181 = vld [vmem:[#allocation2 + $0x18] sm:$0xff]
    %v182 = vld [vmem:[#allocation2 + $0x20] sm:$0xff]
    %v183 = vld [vmem:[#allocation2 + $0x28] sm:$0xff]
    %v184 = vld [vmem:[#allocation2 + $0x30] sm:$0xff]
    %v185 = vld [vmem:[#allocation2 + $0x38] sm:$0xff]
    %v186 = vld [vmem:[%s2] sm:$0x1]
    %v188 = vperm.slane %v186, 0
    %v190 = vadd.f32 %v178, %v188
    %v191 = vadd.f32 %v179, %v188
    %v192 = vadd.f32 %v180, %v188
    %v193 = vadd.f32 %v181, %v188
    %v194 = vadd.f32 %v182, %v188
    %v195 = vadd.f32 %v183, %v188
    %v196 = vadd.f32 %v184, %v188
    %v197 = vadd.f32 %v185, %v188
    %v198 = vmax.f32 %v190, 0.0
    %v199 = vmax.f32 %v191, 0.0
    %v200 = vmax.f32 %v192, 0.0
    %v201 = vmax.f32 %v193, 0.0
    %v202 = vmax.f32 %v194, 0.0
    %v203 = vmax.f32 %v195, 0.0
    %v204 = vmax.f32 %v196, 0.0
    %v205 = vmax.f32 %v197, 0.0
    %v206 = vpack.c.bf16 %v198, %v198
    %v207 = vpack.c.bf16 %v199, %v199
    %v208 = vpack.c.bf16 %v200, %v200
    %v209 = vpack.c.bf16 %v201, %v201
    %v210 = vpack.c.bf16 %v202, %v202
    %v211 = vpack.c.bf16 %v203, %v203
    %v212 = vpack.c.bf16 %v204, %v204
    %v213 = vpack.c.bf16 %v205, %v205
    %214 = vst [vmem:[%s3] sm:$0xf] %v206
    %215 = vst [vmem:[%s3 + $0x4] sm:$0xf] %v207
    %216 = vst [vmem:[%s3 + $0x8] sm:$0xf] %v208
    %217 = vst [vmem:[%s3 + $0xc] sm:$0xf] %v209
    %218 = vst [vmem:[%s3 + $0x10] sm:$0xf] %v210
    %219 = vst [vmem:[%s3 + $0x14] sm:$0xf] %v211
    %220 = vst [vmem:[%s3 + $0x18] sm:$0xf] %v212
    %221 = vst [vmem:[%s3 + $0x1c] sm:$0xf] %v213
  $region21: #{fwd.14} parent=0 // pred_fallthru
    _
  // Predicated region
  $region22: #{fwd.14} parent=0 // pred_check
    _
  $region23: #{fwd.14} parent=0 // pred_check_branch
    %223 = sbr.rel (0) target = $region25
  $region24: #{fwd.14} parent=0 // pred_region
    _
  $region25: #{fwd.14} parent=0 // pred_fallthru
    _
  // Predicated region
  $region26: #{fwd.14} parent=0 // pred_check
    _
  $region27: #{fwd.14} parent=0 // pred_check_branch
    %225 = sbr.rel (0) target = $region29
  $region28: #{fwd.14} parent=0 // pred_region
    _
  $region29: #{fwd.14} parent=0 // pred_fallthru
    _

// kernel: fwd.15
$region0: #{fwd.15}
  #allocation0 [shape = 'u32[]', space=smem, size = 0x4, offset = 0x4, fixed_abs, tag = 'smem constant byte address 0x4 - core index']
  #allocation1 [shape = 'u32[72,128]{1,0:T(1,128)}', space=vmem, size = 0x9000, scoped, tag = 'internal scratch']
  #allocation2 [shape = 'f32[256,128]{1,0:T(8,128)}', space=vmem, size = 0x20000, scoped, tag = 'scratch operand']
  %s0 = inlined_call_operand.vmem [shape: bf16[256,128], index: 0, kind: input, shape index: {}]
  %s1 = inlined_call_operand.vmem [shape: bf16[128,128], index: 1, kind: input, shape index: {}]
  %s2 = inlined_call_operand.vmem [shape: f32[1,128], index: 2, kind: input, shape index: {}]
  %s3 = inlined_call_operand.vmem [shape: bf16[256,128], index: 3, kind: output, shape index: {}]
  %s4 = sld [smem:[#allocation0]]
  $region30: #{fwd.15} parent=0
    _
  %s6 = ssub.s32 1, %s4
  %s7 = scalar_select 0, %s6, %s4
  // Predicated region
  $region2: #{fwd.15} parent=0 // pred_check
    _
  $region3: #{fwd.15} parent=0 // pred_check_branch
    %9 = sbr.rel (0) target = $region5
  $region4: #{fwd.15} parent=0 // pred_region
    _
  $region5: #{fwd.15} parent=0 // pred_fallthru
    _
  // Predicated region
  $region6: #{fwd.15} parent=0 // pred_check
    _
  $region7: #{fwd.15} parent=0 // pred_check_branch
    %11 = sbr.rel (0) target = $region9
  $region8: #{fwd.15} parent=0 // pred_region
    _
  $region9: #{fwd.15} parent=0 // pred_fallthru
    _
  // Predicated region
  $region10: #{fwd.15} parent=0 // pred_check
    _
  $region11: #{fwd.15} parent=0 // pred_check_branch
    %13 = sbr.rel (0) target = $region13
  $region12: #{fwd.15} parent=0 // pred_region
    _
  $region13: #{fwd.15} parent=0 // pred_fallthru
    _
  %p14 = scmp.eq.s32.totalorder 0, 0
  // Predicated region
  $region14: #{fwd.15} parent=0 // pred_check
    %p15 = pneg %p14
  $region15: #{fwd.15} parent=0 // pred_check_branch
    %17 = sbr.rel (%p15) target = $region17
  $region16: #{fwd.15} parent=0 // pred_region
    %18 = vst [vmem:[#allocation2] sm:$0xff] 0.0
    %19 = vst [vmem:[#allocation2 + $0x8] sm:$0xff] 0.0
    %20 = vst [vmem:[#allocation2 + $0x10] sm:$0xff] 0.0
    %21 = vst [vmem:[#allocation2 + $0x18] sm:$0xff] 0.0
    %22 = vst [vmem:[#allocation2 + $0x20] sm:$0xff] 0.0
    %23 = vst [vmem:[#allocation2 + $0x28] sm:$0xff] 0.0
    %24 = vst [vmem:[#allocation2 + $0x30] sm:$0xff] 0.0
    %25 = vst [vmem:[#allocation2 + $0x38] sm:$0xff] 0.0
    %26 = vst [vmem:[#allocation2 + $0x40] sm:$0xff] 0.0
    %27 = vst [vmem:[#allocation2 + $0x48] sm:$0xff] 0.0
    %28 = vst [vmem:[#allocation2 + $0x50] sm:$0xff] 0.0
    %29 = vst [vmem:[#allocation2 + $0x58] sm:$0xff] 0.0
    %30 = vst [vmem:[#allocation2 + $0x60] sm:$0xff] 0.0
    %31 = vst [vmem:[#allocation2 + $0x68] sm:$0xff] 0.0
    %32 = vst [vmem:[#allocation2 + $0x70] sm:$0xff] 0.0
    %33 = vst [vmem:[#allocation2 + $0x78] sm:$0xff] 0.0
    %34 = vst [vmem:[#allocation2 + $0x80] sm:$0xff] 0.0
    %35 = vst [vmem:[#allocation2 + $0x88] sm:$0xff] 0.0
    %36 = vst [vmem:[#allocation2 + $0x90] sm:$0xff] 0.0
    %37 = vst [vmem:[#allocation2 + $0x98] sm:$0xff] 0.0
    %38 = vst [vmem:[#allocation2 + $0xa0] sm:$0xff] 0.0
    %39 = vst [vmem:[#allocation2 + $0xa8] sm:$0xff] 0.0
    %40 = vst [vmem:[#allocation2 + $0xb0] sm:$0xff] 0.0
    %41 = vst [vmem:[#allocation2 + $0xb8] sm:$0xff] 0.0
    %42 = vst [vmem:[#allocation2 + $0xc0] sm:$0xff] 0.0
    %43 = vst [vmem:[#allocation2 + $0xc8] sm:$0xff] 0.0
    %44 = vst [vmem:[#allocation2 + $0xd0] sm:$0xff] 0.0
    %45 = vst [vmem:[#allocation2 + $0xd8] sm:$0xff] 0.0
    %46 = vst [vmem:[#allocation2 + $0xe0] sm:$0xff] 0.0
    %47 = vst [vmem:[#allocation2 + $0xe8] sm:$0xff] 0.0
    %48 = vst [vmem:[#allocation2 + $0xf0] sm:$0xff] 0.0
    %49 = vst [vmem:[#allocation2 + $0xf8] sm:$0xff] 0.0
  $region17: #{fwd.15} parent=0 // pred_fallthru
    _
  %v50 = vld [vmem:[#allocation2] sm:$0xff]
  %v51 = vld [vmem:[#allocation2 + $0x8] sm:$0xff]
  %v52 = vld [vmem:[#allocation2 + $0x10] sm:$0xff]
  %v53 = vld [vmem:[#allocation2 + $0x18] sm:$0xff]
  %v54 = vld [vmem:[#allocation2 + $0x20] sm:$0xff]
  %v55 = vld [vmem:[#allocation2 + $0x28] sm:$0xff]
  %v56 = vld [vmem:[#allocation2 + $0x30] sm:$0xff]
  %v57 = vld [vmem:[#allocation2 + $0x38] sm:$0xff]
  %v58 = vld [vmem:[#allocation2 + $0x40] sm:$0xff]
  %v59 = vld [vmem:[#allocation2 + $0x48] sm:$0xff]
  %v60 = vld [vmem:[#allocation2 + $0x50] sm:$0xff]
  %v61 = vld [vmem:[#allocation2 + $0x58] sm:$0xff]
  %v62 = vld [vmem:[#allocation2 + $0x60] sm:$0xff]
  %v63 = vld [vmem:[#allocation2 + $0x68] sm:$0xff]
  %v64 = vld [vmem:[#allocation2 + $0x70] sm:$0xff]
  %v65 = vld [vmem:[#allocation2 + $0x78] sm:$0xff]
  %v66 = vld [vmem:[#allocation2 + $0x80] sm:$0xff]
  %v67 = vld [vmem:[#allocation2 + $0x88] sm:$0xff]
  %v68 = vld [vmem:[#allocation2 + $0x90] sm:$0xff]
  %v69 = vld [vmem:[#allocation2 + $0x98] sm:$0xff]
  %v70 = vld [vmem:[#allocation2 + $0xa0] sm:$0xff]
  %v71 = vld [vmem:[#allocation2 + $0xa8] sm:$0xff]
  %v72 = vld [vmem:[#allocation2 + $0xb0] sm:$0xff]
  %v73 = vld [vmem:[#allocation2 + $0xb8] sm:$0xff]
  %v74 = vld [vmem:[#allocation2 + $0xc0] sm:$0xff]
  %v75 = vld [vmem:[#allocation2 + $0xc8] sm:$0xff]
  %v76 = vld [vmem:[#allocation2 + $0xd0] sm:$0xff]
  %v77 = vld [vmem:[#allocation2 + $0xd8] sm:$0xff]
  %v78 = vld [vmem:[#allocation2 + $0xe0] sm:$0xff]
  %v79 = vld [vmem:[#allocation2 + $0xe8] sm:$0xff]
  %v80 = vld [vmem:[#allocation2 + $0xf0] sm:$0xff]
  %v81 = vld [vmem:[#allocation2 + $0xf8] sm:$0xff]
  %v82 = vld [vmem:[%s0] sm:$0xf]
  %v83 = vld [vmem:[%s0 + $0x4] sm:$0xf]
  %v84 = vld [vmem:[%s0 + $0x8] sm:$0xf]
  %v85 = vld [vmem:[%s0 + $0xc] sm:$0xf]
  %v86 = vld [vmem:[%s0 + $0x10] sm:$0xf]
  %v87 = vld [vmem:[%s0 + $0x14] sm:$0xf]
  %v88 = vld [vmem:[%s0 + $0x18] sm:$0xf]
  %v89 = vld [vmem:[%s0 + $0x1c] sm:$0xf]
  %v90 = vld [vmem:[%s0 + $0x20] sm:$0xf]
  %v91 = vld [vmem:[%s0 + $0x24] sm:$0xf]
  %v92 = vld [vmem:[%s0 + $0x28] sm:$0xf]
  %v93 = vld [vmem:[%s0 + $0x2c] sm:$0xf]
  %v94 = vld [vmem:[%s0 + $0x30] sm:$0xf]
  %v95 = vld [vmem:[%s0 + $0x34] sm:$0xf]
  %v96 = vld [vmem:[%s0 + $0x38] sm:$0xf]
  %v97 = vld [vmem:[%s0 + $0x3c] sm:$0xf]
  %v98 = vld [vmem:[%s0 + $0x40] sm:$0xf]
  %v99 = vld [vmem:[%s0 + $0x44] sm:$0xf]
  %v100 = vld [vmem:[%s0 + $0x48] sm:$0xf]
  %v101 = vld [vmem:[%s0 + $0x4c] sm:$0xf]
  %v102 = vld [vmem:[%s0 + $0x50] sm:$0xf]
  %v103 = vld [vmem:[%s0 + $0x54] sm:$0xf]
  %v104 = vld [vmem:[%s0 + $0x58] sm:$0xf]
  %v105 = vld [vmem:[%s0 + $0x5c] sm:$0xf]
  %v106 = vld [vmem:[%s0 + $0x60] sm:$0xf]
  %v107 = vld [vmem:[%s0 + $0x64] sm:$0xf]
  %v108 = vld [vmem:[%s0 + $0x68] sm:$0xf]
  %v109 = vld [vmem:[%s0 + $0x6c] sm:$0xf]
  %v110 = vld [vmem:[%s0 + $0x70] sm:$0xf]
  %v111 = vld [vmem:[%s0 + $0x74] sm:$0xf]
  %v112 = vld [vmem:[%s0 + $0x78] sm:$0xf]
  %v113 = vld [vmem:[%s0 + $0x7c] sm:$0xf]
  %v114 = vld [vmem:[%s1] sm:$0xf]
  %v115 = vld [vmem:[%s1 + $0x4] sm:$0xf]
  %v116 = vld [vmem:[%s1 + $0x8] sm:$0xf]
  %v117 = vld [vmem:[%s1 + $0xc] sm:$0xf]
  %v118 = vld [vmem:[%s1 + $0x10] sm:$0xf]
  %v119 = vld [vmem:[%s1 + $0x14] sm:$0xf]
  %v120 = vld [vmem:[%s1 + $0x18] sm:$0xf]
  %v121 = vld [vmem:[%s1 + $0x1c] sm:$0xf]
  %v122 = vld [vmem:[%s1 + $0x20] sm:$0xf]
  %v123 = vld [vmem:[%s1 + $0x24] sm:$0xf]
  %v124 = vld [vmem:[%s1 + $0x28] sm:$0xf]
  %v125 = vld [vmem:[%s1 + $0x2c] sm:$0xf]
  %v126 = vld [vmem:[%s1 + $0x30] sm:$0xf]
  %v127 = vld [vmem:[%s1 + $0x34] sm:$0xf]
  %v128 = vld [vmem:[%s1 + $0x38] sm:$0xf]
  %v129 = vld [vmem:[%s1 + $0x3c] sm:$0xf]
  %v162 = vunpack.c.l.b16 %v82
  %v163 = vunpack.c.l.b16 %v83
  %v164 = vunpack.c.l.b16 %v84
  %v165 = vunpack.c.l.b16 %v85
  %v166 = vunpack.c.l.b16 %v86
  %v167 = vunpack.c.l.b16 %v87
  %v168 = vunpack.c.l.b16 %v88
  %v169 = vunpack.c.l.b16 %v89
  %v170 = vunpack.c.l.b16 %v90
  %v171 = vunpack.c.l.b16 %v91
  %v172 = vunpack.c.l.b16 %v92
  %v173 = vunpack.c.l.b16 %v93
  %v174 = vunpack.c.l.b16 %v94
  %v175 = vunpack.c.l.b16 %v95
  %v176 = vunpack.c.l.b16 %v96
  %v177 = vunpack.c.l.b16 %v97
  %v178 = vunpack.c.l.b16 %v98
  %v179 = vunpack.c.l.b16 %v99
  %v180 = vunpack.c.l.b16 %v100
  %v181 = vunpack.c.l.b16 %v101
  %v182 = vunpack.c.l.b16 %v102
  %v183 = vunpack.c.l.b16 %v103
  %v184 = vunpack.c.l.b16 %v104
  %v185 = vunpack.c.l.b16 %v105
  %v186 = vunpack.c.l.b16 %v106
  %v187 = vunpack.c.l.b16 %v107
  %v188 = vunpack.c.l.b16 %v108
  %v189 = vunpack.c.l.b16 %v109
  %v190 = vunpack.c.l.b16 %v110
  %v191 = vunpack.c.l.b16 %v111
  %v192 = vunpack.c.l.b16 %v112
  %v193 = vunpack.c.l.b16 %v113
  %v194 = vpack.c.b16 %v163, %v162
  %v195 = vpack.c.b16 %v165, %v164
  %v196 = vpack.c.b16 %v167, %v166
  %v197 = vpack.c.b16 %v169, %v168
  %v198 = vpack.c.b16 %v171, %v170
  %v199 = vpack.c.b16 %v173, %v172
  %v200 = vpack.c.b16 %v175, %v174
  %v201 = vpack.c.b16 %v177, %v176
  %v202 = vpack.c.b16 %v179, %v178
  %v203 = vpack.c.b16 %v181, %v180
  %v204 = vpack.c.b16 %v183, %v182
  %v205 = vpack.c.b16 %v185, %v184
  %v206 = vpack.c.b16 %v187, %v186
  %v207 = vpack.c.b16 %v189, %v188
  %v208 = vpack.c.b16 %v191, %v190
  %v209 = vpack.c.b16 %v193, %v192
  %v242 = vunpack.c.l.b16 %v114
  %v243 = vunpack.c.l.b16 %v115
  %v244 = vunpack.c.l.b16 %v116
  %v245 = vunpack.c.l.b16 %v117
  %v246 = vunpack.c.l.b16 %v118
  %v247 = vunpack.c.l.b16 %v119
  %v248 = vunpack.c.l.b16 %v120
  %v249 = vunpack.c.l.b16 %v121
  %v250 = vunpack.c.l.b16 %v122
  %v251 = vunpack.c.l.b16 %v123
  %v252 = vunpack.c.l.b16 %v124
  %v253 = vunpack.c.l.b16 %v125
  %v254 = vunpack.c.l.b16 %v126
  %v255 = vunpack.c.l.b16 %v127
  %v256 = vunpack.c.l.b16 %v128
  %v257 = vunpack.c.l.b16 %v129
  %v258 = vpack.c.b16 %v243, %v242
  %v259 = vpack.c.b16 %v245, %v244
  %v260 = vpack.c.b16 %v247, %v246
  %v261 = vpack.c.b16 %v249, %v248
  %v262 = vpack.c.b16 %v251, %v250
  %v263 = vpack.c.b16 %v253, %v252
  %v264 = vpack.c.b16 %v255, %v254
  %v265 = vpack.c.b16 %v257, %v256
  %274 = vmatpush.bf16.msra.mxu0 %v265
  %275 = vmatpush.bf16.msra.mxu0 %v264
  %276 = vmatpush.bf16.msra.mxu0 %v263
  %277 = vmatpush.bf16.msra.mxu0 %v262
  %278 = vmatpush.bf16.msra.mxu0 %v261
  %279 = vmatpush.bf16.msra.mxu0 %v260
  %280 = vmatpush.bf16.msra.mxu0 %v259
  %281 = vmatpush.bf16.msra.mxu0 %v258
  %282 = vmatmul.bf16.gmra.mxu0 %v194
  %v283 = vpop.f32.mrf.mxu0
  %v284 = vadd.f32 0.0, %v283
  %v285 = vpop.f32.mrf.mxu0
  %v286 = vadd.f32 0.0, %v285
  %287 = vmatmul.bf16.gmra.mxu0 %v195
  %v288 = vpop.f32.mrf.mxu0
  %v289 = vadd.f32 0.0, %v288
  %v290 = vpop.f32.mrf.mxu0
  %v291 = vadd.f32 0.0, %v290
  %292 = vmatmul.bf16.gmra.mxu0 %v196
  %v293 = vpop.f32.mrf.mxu0
  %v294 = vadd.f32 0.0, %v293
  %v295 = vpop.f32.mrf.mxu0
  %v296 = vadd.f32 0.0, %v295
  %297 = vmatmul.bf16.gmra.mxu0 %v197
  %v298 = vpop.f32.mrf.mxu0
  %v299 = vadd.f32 0.0, %v298
  %v300 = vpop.f32.mrf.mxu0
  %v301 = vadd.f32 0.0, %v300
  %302 = vmatmul.bf16.gmra.mxu0 %v198
  %v303 = vpop.f32.mrf.mxu0
  %v304 = vadd.f32 0.0, %v303
  %v305 = vpop.f32.mrf.mxu0
  %v306 = vadd.f32 0.0, %v305
  %307 = vmatmul.bf16.gmra.mxu0 %v199
  %v308 = vpop.f32.mrf.mxu0
  %v309 = vadd.f32 0.0, %v308
  %v310 = vpop.f32.mrf.mxu0
  %v311 = vadd.f32 0.0, %v310
  %312 = vmatmul.bf16.gmra.mxu0 %v200
  %v313 = vpop.f32.mrf.mxu0
  %v314 = vadd.f32 0.0, %v313
  %v315 = vpop.f32.mrf.mxu0
  %v316 = vadd.f32 0.0, %v315
  %317 = vmatmul.bf16.gmra.mxu0 %v201
  %v318 = vpop.f32.mrf.mxu0
  %v319 = vadd.f32 0.0, %v318
  %v320 = vpop.f32.mrf.mxu0
  %v321 = vadd.f32 0.0, %v320
  %322 = vmatmul.bf16.gmra.mxu0 %v202
  %v323 = vpop.f32.mrf.mxu0
  %v324 = vadd.f32 0.0, %v323
  %v325 = vpop.f32.mrf.mxu0
  %v326 = vadd.f32 0.0, %v325
  %327 = vmatmul.bf16.gmra.mxu0 %v203
  %v328 = vpop.f32.mrf.mxu0
  %v329 = vadd.f32 0.0, %v328
  %v330 = vpop.f32.mrf.mxu0
  %v331 = vadd.f32 0.0, %v330
  %332 = vmatmul.bf16.gmra.mxu0 %v204
  %v333 = vpop.f32.mrf.mxu0
  %v334 = vadd.f32 0.0, %v333
  %v335 = vpop.f32.mrf.mxu0
  %v336 = vadd.f32 0.0, %v335
  %337 = vmatmul.bf16.gmra.mxu0 %v205
  %v338 = vpop.f32.mrf.mxu0
  %v339 = vadd.f32 0.0, %v338
  %v340 = vpop.f32.mrf.mxu0
  %v341 = vadd.f32 0.0, %v340
  %342 = vmatmul.bf16.gmra.mxu0 %v206
  %v343 = vpop.f32.mrf.mxu0
  %v344 = vadd.f32 0.0, %v343
  %v345 = vpop.f32.mrf.mxu0
  %v346 = vadd.f32 0.0, %v345
  %347 = vmatmul.bf16.gmra.mxu0 %v207
  %v348 = vpop.f32.mrf.mxu0
  %v349 = vadd.f32 0.0, %v348
  %v350 = vpop.f32.mrf.mxu0
  %v351 = vadd.f32 0.0, %v350
  %352 = vmatmul.bf16.gmra.mxu0 %v208
  %v353 = vpop.f32.mrf.mxu0
  %v354 = vadd.f32 0.0, %v353
  %v355 = vpop.f32.mrf.mxu0
  %v356 = vadd.f32 0.0, %v355
  %357 = vmatmul.bf16.gmra.mxu0 %v209
  %v358 = vpop.f32.mrf.mxu0
  %v359 = vadd.f32 0.0, %v358
  %v360 = vpop.f32.mrf.mxu0
  %v361 = vadd.f32 0.0, %v360
  %362 = vdwg.mxu0
  %v363 = vadd.f32 %v50, %v284
  %v364 = vadd.f32 %v51, %v286
  %v365 = vadd.f32 %v52, %v289
  %v366 = vadd.f32 %v53, %v291
  %v367 = vadd.f32 %v54, %v294
  %v368 = vadd.f32 %v55, %v296
  %v369 = vadd.f32 %v56, %v299
  %v370 = vadd.f32 %v57, %v301
  %v371 = vadd.f32 %v58, %v304
  %v372 = vadd.f32 %v59, %v306
  %v373 = vadd.f32 %v60, %v309
  %v374 = vadd.f32 %v61, %v311
  %v375 = vadd.f32 %v62, %v314
  %v376 = vadd.f32 %v63, %v316
  %v377 = vadd.f32 %v64, %v319
  %v378 = vadd.f32 %v65, %v321
  %v379 = vadd.f32 %v66, %v324
  %v380 = vadd.f32 %v67, %v326
  %v381 = vadd.f32 %v68, %v329
  %v382 = vadd.f32 %v69, %v331
  %v383 = vadd.f32 %v70, %v334
  %v384 = vadd.f32 %v71, %v336
  %v385 = vadd.f32 %v72, %v339
  %v386 = vadd.f32 %v73, %v341
  %v387 = vadd.f32 %v74, %v344
  %v388 = vadd.f32 %v75, %v346
  %v389 = vadd.f32 %v76, %v349
  %v390 = vadd.f32 %v77, %v351
  %v391 = vadd.f32 %v78, %v354
  %v392 = vadd.f32 %v79, %v356
  %v393 = vadd.f32 %v80, %v359
  %v394 = vadd.f32 %v81, %v361
  %395 = vst [vmem:[#allocation2] sm:$0xff] %v363
  %396 = vst [vmem:[#allocation2 + $0x8] sm:$0xff] %v364
  %397 = vst [vmem:[#allocation2 + $0x10] sm:$0xff] %v365
  %398 = vst [vmem:[#allocation2 + $0x18] sm:$0xff] %v366
  %399 = vst [vmem:[#allocation2 + $0x20] sm:$0xff] %v367
  %400 = vst [vmem:[#allocation2 + $0x28] sm:$0xff] %v368
  %401 = vst [vmem:[#allocation2 + $0x30] sm:$0xff] %v369
  %402 = vst [vmem:[#allocation2 + $0x38] sm:$0xff] %v370
  %403 = vst [vmem:[#allocation2 + $0x40] sm:$0xff] %v371
  %404 = vst [vmem:[#allocation2 + $0x48] sm:$0xff] %v372
  %405 = vst [vmem:[#allocation2 + $0x50] sm:$0xff] %v373
  %406 = vst [vmem:[#allocation2 + $0x58] sm:$0xff] %v374
  %407 = vst [vmem:[#allocation2 + $0x60] sm:$0xff] %v375
  %408 = vst [vmem:[#allocation2 + $0x68] sm:$0xff] %v376
  %409 = vst [vmem:[#allocation2 + $0x70] sm:$0xff] %v377
  %410 = vst [vmem:[#allocation2 + $0x78] sm:$0xff] %v378
  %411 = vst [vmem:[#allocation2 + $0x80] sm:$0xff] %v379
  %412 = vst [vmem:[#allocation2 + $0x88] sm:$0xff] %v380
  %413 = vst [vmem:[#allocation2 + $0x90] sm:$0xff] %v381
  %414 = vst [vmem:[#allocation2 + $0x98] sm:$0xff] %v382
  %415 = vst [vmem:[#allocation2 + $0xa0] sm:$0xff] %v383
  %416 = vst [vmem:[#allocation2 + $0xa8] sm:$0xff] %v384
  %417 = vst [vmem:[#allocation2 + $0xb0] sm:$0xff] %v385
  %418 = vst [vmem:[#allocation2 + $0xb8] sm:$0xff] %v386
  %419 = vst [vmem:[#allocation2 + $0xc0] sm:$0xff] %v387
  %420 = vst [vmem:[#allocation2 + $0xc8] sm:$0xff] %v388
  %421 = vst [vmem:[#allocation2 + $0xd0] sm:$0xff] %v389
  %422 = vst [vmem:[#allocation2 + $0xd8] sm:$0xff] %v390
  %423 = vst [vmem:[#allocation2 + $0xe0] sm:$0xff] %v391
  %424 = vst [vmem:[#allocation2 + $0xe8] sm:$0xff] %v392
  %425 = vst [vmem:[#allocation2 + $0xf0] sm:$0xff] %v393
  %426 = vst [vmem:[#allocation2 + $0xf8] sm:$0xff] %v394
  // Predicated region
  $region18: #{fwd.15} parent=0 // pred_check
    %p427 = pneg %p14
  $region19: #{fwd.15} parent=0 // pred_check_branch
    %429 = sbr.rel (%p427) target = $region21
  $region20: #{fwd.15} parent=0 // pred_region
    %v430 = vld [vmem:[#allocation2] sm:$0xff]
    %v431 = vld [vmem:[#allocation2 + $0x8] sm:$0xff]
    %v432 = vld [vmem:[#allocation2 + $0x10] sm:$0xff]
    %v433 = vld [vmem:[#allocation2 + $0x18] sm:$0xff]
    %v434 = vld [vmem:[#allocation2 + $0x20] sm:$0xff]
    %v435 = vld [vmem:[#allocation2 + $0x28] sm:$0xff]
    %v436 = vld [vmem:[#allocation2 + $0x30] sm:$0xff]
    %v437 = vld [vmem:[#allocation2 + $0x38] sm:$0xff]
    %v438 = vld [vmem:[#allocation2 + $0x40] sm:$0xff]
    %v439 = vld [vmem:[#allocation2 + $0x48] sm:$0xff]
    %v440 = vld [vmem:[#allocation2 + $0x50] sm:$0xff]
    %v441 = vld [vmem:[#allocation2 + $0x58] sm:$0xff]
    %v442 = vld [vmem:[#allocation2 + $0x60] sm:$0xff]
    %v443 = vld [vmem:[#allocation2 + $0x68] sm:$0xff]
    %v444 = vld [vmem:[#allocation2 + $0x70] sm:$0xff]
    %v445 = vld [vmem:[#allocation2 + $0x78] sm:$0xff]
    %v446 = vld [vmem:[#allocation2 + $0x80] sm:$0xff]
    %v447 = vld [vmem:[#allocation2 + $0x88] sm:$0xff]
    %v448 = vld [vmem:[#allocation2 + $0x90] sm:$0xff]
    %v449 = vld [vmem:[#allocation2 + $0x98] sm:$0xff]
    %v450 = vld [vmem:[#allocation2 + $0xa0] sm:$0xff]
    %v451 = vld [vmem:[#allocation2 + $0xa8] sm:$0xff]
    %v452 = vld [vmem:[#allocation2 + $0xb0] sm:$0xff]
    %v453 = vld [vmem:[#allocation2 + $0xb8] sm:$0xff]
    %v454 = vld [vmem:[#allocation2 + $0xc0] sm:$0xff]
    %v455 = vld [vmem:[#allocation2 + $0xc8] sm:$0xff]
    %v456 = vld [vmem:[#allocation2 + $0xd0] sm:$0xff]
    %v457 = vld [vmem:[#allocation2 + $0xd8] sm:$0xff]
    %v458 = vld [vmem:[#allocation2 + $0xe0] sm:$0xff]
    %v459 = vld [vmem:[#allocation2 + $0xe8] sm:$0xff]
    %v460 = vld [vmem:[#allocation2 + $0xf0] sm:$0xff]
    %v461 = vld [vmem:[#allocation2 + $0xf8] sm:$0xff]
    %v462 = vld [vmem:[%s2] sm:$0x1]
    %v464 = vperm.slane %v462, 0
    %v466 = vadd.f32 %v430, %v464
    %v467 = vadd.f32 %v431, %v464
    %v468 = vadd.f32 %v432, %v464
    %v469 = vadd.f32 %v433, %v464
    %v470 = vadd.f32 %v434, %v464
    %v471 = vadd.f32 %v435, %v464
    %v472 = vadd.f32 %v436, %v464
    %v473 = vadd.f32 %v437, %v464
    %v474 = vadd.f32 %v438, %v464
    %v475 = vadd.f32 %v439, %v464
    %v476 = vadd.f32 %v440, %v464
    %v477 = vadd.f32 %v441, %v464
    %v478 = vadd.f32 %v442, %v464
    %v479 = vadd.f32 %v443, %v464
    %v480 = vadd.f32 %v444, %v464
    %v481 = vadd.f32 %v445, %v464
    %v482 = vadd.f32 %v446, %v464
    %v483 = vadd.f32 %v447, %v464
    %v484 = vadd.f32 %v448, %v464
    %v485 = vadd.f32 %v449, %v464
    %v486 = vadd.f32 %v450, %v464
    %v487 = vadd.f32 %v451, %v464
    %v488 = vadd.f32 %v452, %v464
    %v489 = vadd.f32 %v453, %v464
    %v490 = vadd.f32 %v454, %v464
    %v491 = vadd.f32 %v455, %v464
    %v492 = vadd.f32 %v456, %v464
    %v493 = vadd.f32 %v457, %v464
    %v494 = vadd.f32 %v458, %v464
    %v495 = vadd.f32 %v459, %v464
    %v496 = vadd.f32 %v460, %v464
    %v497 = vadd.f32 %v461, %v464
    %v498 = vmax.f32 %v466, 0.0
    %v499 = vmax.f32 %v467, 0.0
    %v500 = vmax.f32 %v468, 0.0
    %v501 = vmax.f32 %v469, 0.0
    %v502 = vmax.f32 %v470, 0.0
    %v503 = vmax.f32 %v471, 0.0
    %v504 = vmax.f32 %v472, 0.0
    %v505 = vmax.f32 %v473, 0.0
    %v506 = vmax.f32 %v474, 0.0
    %v507 = vmax.f32 %v475, 0.0
    %v508 = vmax.f32 %v476, 0.0
    %v509 = vmax.f32 %v477, 0.0
    %v510 = vmax.f32 %v478, 0.0
    %v511 = vmax.f32 %v479, 0.0
    %v512 = vmax.f32 %v480, 0.0
    %v513 = vmax.f32 %v481, 0.0
    %v514 = vmax.f32 %v482, 0.0
    %v515 = vmax.f32 %v483, 0.0
    %v516 = vmax.f32 %v484, 0.0
    %v517 = vmax.f32 %v485, 0.0
    %v518 = vmax.f32 %v486, 0.0
    %v519 = vmax.f32 %v487, 0.0
    %v520 = vmax.f32 %v488, 0.0
    %v521 = vmax.f32 %v489, 0.0
    %v522 = vmax.f32 %v490, 0.0
    %v523 = vmax.f32 %v491, 0.0
    %v524 = vmax.f32 %v492, 0.0
    %v525 = vmax.f32 %v493, 0.0
    %v526 = vmax.f32 %v494, 0.0
    %v527 = vmax.f32 %v495, 0.0
    %v528 = vmax.f32 %v496, 0.0
    %v529 = vmax.f32 %v497, 0.0
    %v530 = vpack.c.bf16 %v498, %v498
    %v531 = vpack.c.bf16 %v499, %v499
    %v532 = vpack.c.bf16 %v500, %v500
    %v533 = vpack.c.bf16 %v501, %v501
    %v534 = vpack.c.bf16 %v502, %v502
    %v535 = vpack.c.bf16 %v503, %v503
    %v536 = vpack.c.bf16 %v504, %v504
    %v537 = vpack.c.bf16 %v505, %v505
    %v538 = vpack.c.bf16 %v506, %v506
    %v539 = vpack.c.bf16 %v507, %v507
    %v540 = vpack.c.bf16 %v508, %v508
    %v541 = vpack.c.bf16 %v509, %v509
    %v542 = vpack.c.bf16 %v510, %v510
    %v543 = vpack.c.bf16 %v511, %v511
    %v544 = vpack.c.bf16 %v512, %v512
    %v545 = vpack.c.bf16 %v513, %v513
    %v546 = vpack.c.bf16 %v514, %v514
    %v547 = vpack.c.bf16 %v515, %v515
    %v548 = vpack.c.bf16 %v516, %v516
    %v549 = vpack.c.bf16 %v517, %v517
    %v550 = vpack.c.bf16 %v518, %v518
    %v551 = vpack.c.bf16 %v519, %v519
    %v552 = vpack.c.bf16 %v520, %v520
    %v553 = vpack.c.bf16 %v521, %v521
    %v554 = vpack.c.bf16 %v522, %v522
    %v555 = vpack.c.bf16 %v523, %v523
    %v556 = vpack.c.bf16 %v524, %v524
    %v557 = vpack.c.bf16 %v525, %v525
    %v558 = vpack.c.bf16 %v526, %v526
    %v559 = vpack.c.bf16 %v527, %v527
    %v560 = vpack.c.bf16 %v528, %v528
    %v561 = vpack.c.bf16 %v529, %v529
    %562 = vst [vmem:[%s3] sm:$0xf] %v530
    %563 = vst [vmem:[%s3 + $0x4] sm:$0xf] %v531
    %564 = vst [vmem:[%s3 + $0x8] sm:$0xf] %v532
    %565 = vst [vmem:[%s3 + $0xc] sm:$0xf] %v533
    %566 = vst [vmem:[%s3 + $0x10] sm:$0xf] %v534
    %567 = vst [vmem:[%s3 + $0x14] sm:$0xf] %v535
    %568 = vst [vmem:[%s3 + $0x18] sm:$0xf] %v536
    %569 = vst [vmem:[%s3 + $0x1c] sm:$0xf] %v537
    %570 = vst [vmem:[%s3 + $0x20] sm:$0xf] %v538
    %571 = vst [vmem:[%s3 + $0x24] sm:$0xf] %v539
    %572 = vst [vmem:[%s3 + $0x28] sm:$0xf] %v540
    %573 = vst [vmem:[%s3 + $0x2c] sm:$0xf] %v541
    %574 = vst [vmem:[%s3 + $0x30] sm:$0xf] %v542
    %575 = vst [vmem:[%s3 + $0x34] sm:$0xf] %v543
    %576 = vst [vmem:[%s3 + $0x38] sm:$0xf] %v544
    %577 = vst [vmem:[%s3 + $0x3c] sm:$0xf] %v545
    %578 = vst [vmem:[%s3 + $0x40] sm:$0xf] %v546
    %579 = vst [vmem:[%s3 + $0x44] sm:$0xf] %v547
    %580 = vst [vmem:[%s3 + $0x48] sm:$0xf] %v548
    %581 = vst [vmem:[%s3 + $0x4c] sm:$0xf] %v549
    %582 = vst [vmem:[%s3 + $0x50] sm:$0xf] %v550
    %583 = vst [vmem:[%s3 + $0x54] sm:$0xf] %v551
    %584 = vst [vmem:[%s3 + $0x58] sm:$0xf] %v552
    %585 = vst [vmem:[%s3 + $0x5c] sm:$0xf] %v553
    %586 = vst [vmem:[%s3 + $0x60] sm:$0xf] %v554
    %587 = vst [vmem:[%s3 + $0x64] sm:$0xf] %v555
    %588 = vst [vmem:[%s3 + $0x68] sm:$0xf] %v556
    %589 = vst [vmem:[%s3 + $0x6c] sm:$0xf] %v557
    %590 = vst [vmem:[%s3 + $0x70] sm:$0xf] %v558
    %591 = vst [vmem:[%s3 + $0x74] sm:$0xf] %v559
    %592 = vst [vmem:[%s3 + $0x78] sm:$0xf] %v560
    %593 = vst [vmem:[%s3 + $0x7c] sm:$0xf] %v561
  $region21: #{fwd.15} parent=0 // pred_fallthru
    _
  // Predicated region
  $region22: #{fwd.15} parent=0 // pred_check
    _
  $region23: #{fwd.15} parent=0 // pred_check_branch
    %595 = sbr.rel (0) target = $region25
  $region24: #{fwd.15} parent=0 // pred_region
    _
  $region25: #{fwd.15} parent=0 // pred_fallthru
    _
  // Predicated region
  $region26: #{fwd.15} parent=0 // pred_check
    _
  $region27: #{fwd.15} parent=0 // pred_check_branch
    %597 = sbr.rel (0) target = $region29
  $region28: #{fwd.15} parent=0 // pred_region
    _
  $region29: #{fwd.15} parent=0 // pred_fallthru
    _

// kernel: fwd.16
$region0: #{fwd.16}
  #allocation0 [shape = 'u32[]', space=smem, size = 0x4, offset = 0x4, fixed_abs, tag = 'smem constant byte address 0x4 - core index']
  #allocation1 [shape = 'u32[72,128]{1,0:T(1,128)}', space=vmem, size = 0x9000, scoped, tag = 'internal scratch']
  #allocation2 [shape = 'f32[512,128]{1,0:T(8,128)}', space=vmem, size = 0x40000, scoped, tag = 'scratch operand']
  %s0 = inlined_call_operand.vmem [shape: bf16[1024,128], index: 0, kind: input, shape index: {}]
  %s1 = inlined_call_operand.vmem [shape: bf16[128,128], index: 1, kind: input, shape index: {}]
  %s2 = inlined_call_operand.vmem [shape: f32[1,128], index: 2, kind: input, shape index: {}]
  %s3 = inlined_call_operand.vmem [shape: bf16[1024,128], index: 3, kind: output, shape index: {}]
  %s4 = sld [smem:[#allocation0]]
  $region53: #{fwd.16} parent=0
    _
  %s6 = ssub.s32 1, %s4
  %s7 = scalar_select 0, %s6, %s4
  loop: start=0, step=1, limit=4
  $region2: #{fwd.16} parent=0 // loop_pre_header
    _
  $region3: #{fwd.16} parent=0 // loop_header
    %s9 = sphi 0, %s13
    %p10 = scmp.ge.s32.totalorder %s9, 4
    %s16 = sphi 0, %s35
    %s17 = sphi 0, %s31
    %s18 = sphi 0, %s27
    %s19 = sphi 0, %s16
    %s20 = sphi 0, %s17
    %s21 = sphi 0, %s18
    %s22 = sphi 0, %s19
    %s23 = sphi 0, %s20
    %s24 = sphi 0, %s21
    %s40 = sphi 0, %s42
    %s43 = sphi 0, %s40
    %s44 = sphi 0, %s43
    %s60 = sphi 0, %s44
    %s68 = sphi 0, %s70
    %s71 = sphi 0, %s68
    %s72 = sphi 0, %s71
    %s88 = sphi 0, %s72
    %s94 = sphi 0, %s96
    %s97 = sphi 0, %s94
    %s98 = sphi 0, %s97
    %s114 = sphi 0, %s98
    %s122 = sphi 0, %s124
    %s125 = sphi 0, %s122
    %s126 = sphi 0, %s125
    %s142 = sphi 0, %s126
  $region4: #{fwd.16} parent=0 // loop_header_branch
    %12 = sbr.rel (%p10) target = $region8
  $region5: #{fwd.16} parent=0 // loop_body
    %s14 = ssub.s32 %s9, 1
    %s15 = ssub.s32 %s9, 2
    %s25 = sadd.s32 1, %s18
    %p26 = scmp.ge.s32.totalorder %s25, 1
    %s27 = scalar_select %p26, 0, %s25
    %s28 = sadd.s32 1, %s17
    %s29 = scalar_select %p26, %s28, %s17
    %p30 = scmp.ge.s32.totalorder %s29, 1
    %s31 = scalar_select %p30, 0, %s29
    %s32 = sadd.s32 1, %s16
    %s33 = scalar_select %p30, %s32, %s16
    %p34 = scmp.ge.s32.totalorder %s33, 2
    %s35 = scalar_select %p34, 0, %s33
    %s36 = ssub.s32 %s16, %s35
    %s37 = ssub.s32 %s18, %s27
    %s38 = sor.u32 %s36, %s37
    %p39 = scmp.eq.s32.totalorder %s38, 0
    %s41 = sadd.s32 %s40, 1
    %s42 = scalar_select %p39, %s40, %s41
    %p45 = pneg %p39
    %p46 = scmp.eq.s32.totalorder %s9, 1
    %p47 = por %p45, %p46
    %p48 = scmp.ne.s32.totalorder %s40, %s43
    %p49 = scmp.eq.s32.totalorder %s9, 0
    %p50 = por %p48, %p49
    %p51 = scmp.ne.s32.totalorder %s40, %s43
    %p52 = scmp.eq.s32.totalorder %s14, 1
    %p53 = por %p51, %p52
    %p54 = scmp.ne.s32.totalorder %s43, %s44
    %p55 = scmp.eq.s32.totalorder %s14, 0
    %p56 = por %p54, %p55
    %p57 = scmp.ne.s32.totalorder %s43, %s44
    %p58 = scmp.eq.s32.totalorder %s15, 1
    %p59 = por %p57, %p58
    %p61 = scmp.ne.s32.totalorder %s44, %s60
    %p62 = scmp.eq.s32.totalorder %s15, 0
    %p63 = por %p61, %p62
    %s64 = ssub.s32 %s18, %s27
    %s65 = ssub.s32 %s17, %s31
    %s66 = sor.u32 %s64, %s65
    %p67 = scmp.eq.s32.totalorder %s66, 0
    %s69 = sadd.s32 %s68, 1
    %s70 = scalar_select %p67, %s68, %s69
    %p73 = pneg %p67
    %p74 = scmp.eq.s32.totalorder %s9, 1
    %p75 = por %p73, %p74
    %p76 = scmp.ne.s32.totalorder %s68, %s71
    %p77 = scmp.eq.s32.totalorder %s9, 0
    %p78 = por %p76, %p77
    %p79 = scmp.ne.s32.totalorder %s68, %s71
    %p80 = scmp.eq.s32.totalorder %s14, 1
    %p81 = por %p79, %p80
    %p82 = scmp.ne.s32.totalorder %s71, %s72
    %p83 = scmp.eq.s32.totalorder %s14, 0
    %p84 = por %p82, %p83
    %p85 = scmp.ne.s32.totalorder %s71, %s72
    %p86 = scmp.eq.s32.totalorder %s15, 1
    %p87 = por %p85, %p86
    %p89 = scmp.ne.s32.totalorder %s72, %s88
    %p90 = scmp.eq.s32.totalorder %s15, 0
    %p91 = por %p89, %p90
    %s92 = ssub.s32 %s17, %s31
    %p93 = scmp.eq.s32.totalorder %s92, 0
    %s95 = sadd.s32 %s94, 1
    %s96 = scalar_select %p93, %s94, %s95
    %p99 = pneg %p93
    %p100 = scmp.eq.s32.totalorder %s9, 1
    %p101 = por %p99, %p100
    %p102 = scmp.ne.s32.totalorder %s94, %s97
    %p103 = scmp.eq.s32.totalorder %s9, 0
    %p104 = por %p102, %p103
    %p105 = scmp.ne.s32.totalorder %s94, %s97
    %p106 = scmp.eq.s32.totalorder %s14, 1
    %p107 = por %p105, %p106
    %p108 = scmp.ne.s32.totalorder %s97, %s98
    %p109 = scmp.eq.s32.totalorder %s14, 0
    %p110 = por %p108, %p109
    %p111 = scmp.ne.s32.totalorder %s97, %s98
    %p112 = scmp.eq.s32.totalorder %s15, 1
    %p113 = por %p111, %p112
    %p115 = scmp.ne.s32.totalorder %s98, %s114
    %p116 = scmp.eq.s32.totalorder %s15, 0
    %p117 = por %p115, %p116
    %s118 = ssub.s32 %s16, %s35
    %s119 = ssub.s32 %s17, %s31
    %s120 = sor.u32 %s118, %s119
    %p121 = scmp.eq.s32.totalorder %s120, 0
    %s123 = sadd.s32 %s122, 1
    %s124 = scalar_select %p121, %s122, %s123
    %p127 = pneg %p121
    %p128 = scmp.eq.s32.totalorder %s9, 1
    %p129 = por %p127, %p128
    %p130 = scmp.ne.s32.totalorder %s122, %s125
    %p131 = scmp.eq.s32.totalorder %s9, 0
    %p132 = por %p130, %p131
    %p133 = scmp.ne.s32.totalorder %s122, %s125
    %p134 = scmp.eq.s32.totalorder %s14, 1
    %p135 = por %p133, %p134
    %p136 = scmp.ne.s32.totalorder %s125, %s126
    %p137 = scmp.eq.s32.totalorder %s14, 0
    %p138 = por %p136, %p137
    %p139 = scmp.ne.s32.totalorder %s125, %s126
    %p140 = scmp.eq.s32.totalorder %s15, 1
    %p141 = por %p139, %p140
    %p143 = scmp.ne.s32.totalorder %s126, %s142
    %p144 = scmp.eq.s32.totalorder %s15, 0
    %p145 = por %p143, %p144
    %p146 = scmp.le.s32.totalorder 1, %s9
    %p147 = scmp.lt.s32.totalorder %s9, 3
    %p148 = pnand %p146, %p147
    %p149 = pneg %p148
    // Predicated region
    $region9: #{fwd.16} parent=5 // pred_check
      _
    $region10: #{fwd.16} parent=5 // pred_check_branch
      %151 = sbr.rel (%p148) target = $region12
    $region11: #{fwd.16} parent=5 // pred_region
      %s152 = ssub.s32 %s9, 1
      // Predicated region
      $region13: #{fwd.16} parent=11 // pred_check
        %p153 = pneg %p84
      $region14: #{fwd.16} parent=11 // pred_check_branch
        %155 = sbr.rel (%p153) target = $region16
      $region15: #{fwd.16} parent=11 // pred_region
        %s156 = smul.u32 16, %s21
        %p157 = scmp.lt.s32.totalorder %s156, 15
        %s158 = scalar_select %p157, %s156, 15
        %p159 = scmp.lt.s32.totalorder %s20, 0
        %s160 = scalar_select %p159, %s20, 0
        %s161 = sadd.s32 %s160, %s158
        %s162 = smul.addr %s161, 4
        %s163 = scalar_lea.vmem %s1, %s162
        %s164 = smul.u32 16, %s21
      $region16: #{fwd.16} parent=11 // pred_fallthru
        _
      // Predicated region
      $region17: #{fwd.16} parent=11 // pred_check
        %p165 = pneg %p110
      $region18: #{fwd.16} parent=11 // pred_check_branch
        %167 = sbr.rel (%p165) target = $region20
      $region19: #{fwd.16} parent=11 // pred_region
        %p168 = scmp.lt.s32.totalorder %s20, 0
        %s169 = scalar_select %p168, %s20, 0
        %s170 = scalar_lea.vmem %s2, %s169
      $region20: #{fwd.16} parent=11 // pred_fallthru
        _
    $region12: #{fwd.16} parent=5 // pred_fallthru
      _
    %p171 = scmp.lt.s32.totalorder %s9, 2
    // Predicated region
    $region21: #{fwd.16} parent=5 // pred_check
      %p172 = pneg %p171
    $region22: #{fwd.16} parent=5 // pred_check_branch
      %174 = sbr.rel (%p172) target = $region24
    $region23: #{fwd.16} parent=5 // pred_region
      // Predicated region
      $region25: #{fwd.16} parent=23 // pred_check
        %p175 = pneg %p50
      $region26: #{fwd.16} parent=23 // pred_check_branch
        %177 = sbr.rel (%p175) target = $region28
      $region27: #{fwd.16} parent=23 // pred_region
        %s178 = smul.u32 64, %s16
        %p179 = scmp.lt.s32.totalorder %s178, 127
        %s180 = scalar_select %p179, %s178, 127
        %p181 = scmp.lt.s32.totalorder %s18, 0
        %s182 = scalar_select %p181, %s18, 0
        %s183 = sadd.s32 %s182, %s180
        %s184 = smul.addr %s183, 4
        %s185 = scalar_lea.vmem %s0, %s184
        %s186 = smul.u32 64, %s16
      $region28: #{fwd.16} parent=23 // pred_fallthru
        _
    $region24: #{fwd.16} parent=5 // pred_fallthru
      _
    %p187 = scmp.le.s32.totalorder 1, %s9
    %p188 = scmp.lt.s32.totalorder %s9, 3
    %p189 = pnand %p187, %p188
    %p190 = pneg %p189
    // Predicated region
    $region29: #{fwd.16} parent=5 // pred_check
      _
    $region30: #{fwd.16} parent=5 // pred_check_branch
      %192 = sbr.rel (%p189) target = $region32
    $region31: #{fwd.16} parent=5 // pred_region
      %s193 = ssub.s32 %s9, 1
      %s194 = smul.u32 64, %s19
      %p195 = scmp.lt.s32.totalorder %s194, 127
      %s196 = scalar_select %p195, %s194, 127
      %p197 = scmp.lt.s32.totalorder %s21, 0
      %s198 = scalar_select %p197, %s21, 0
      %s199 = sadd.s32 %s198, %s196
      %s200 = smul.addr %s199, 4
      %s201 = scalar_lea.vmem %s0, %s200
      %p202 = pneg %p56
      %p203 = pneg %p53
      %s204 = smul.u32 16, %s21
      %p205 = scmp.lt.s32.totalorder %s204, 15
      %s206 = scalar_select %p205, %s204, 15
      %p207 = scmp.lt.s32.totalorder %s20, 0
      %s208 = scalar_select %p207, %s20, 0
      %s209 = sadd.s32 %s208, %s206
      %s210 = smul.addr %s209, 4
      %s211 = scalar_lea.vmem %s1, %s210
      %p212 = pneg %p84
      %p213 = pneg %p81
      %p214 = scmp.lt.s32.totalorder %s20, 0
      %s215 = scalar_select %p214, %s20, 0
      %s216 = scalar_lea.vmem %s2, %s215
      %p217 = pneg %p110
      %p218 = pneg %p107
      %p219 = pneg %p138
      %p220 = pneg %p135
      %s221 = smul.u32 64, %s19
      %p222 = scmp.lt.s32.totalorder %s221, 127
      %s223 = scalar_select %p222, %s221, 127
      %p224 = scmp.lt.s32.totalorder %s20, 0
      %s225 = scalar_select %p224, %s20, 0
      %s226 = sadd.s32 %s225, %s223
      %s227 = smul.addr %s226, 4
      %s228 = scalar_lea.vmem %s3, %s227
      %s229 = smul.u32 64, %s19
      %p230 = scmp.lt.s32.totalorder %s229, 127
      %s231 = scalar_select %p230, %s229, 127
      %p232 = scmp.lt.s32.totalorder %s21, 0
      %s233 = scalar_select %p232, %s21, 0
      %s234 = sadd.s32 %s233, %s231
      %s235 = smul.addr %s234, 4
      %s236 = scalar_lea.vmem %s0, %s235
      %s237 = smul.u32 64, %s19
      %s238 = smul.u32 16, %s21
      %p239 = scmp.lt.s32.totalorder %s238, 15
      %s240 = scalar_select %p239, %s238, 15
      %p241 = scmp.lt.s32.totalorder %s20, 0
      %s242 = scalar_select %p241, %s20, 0
      %s243 = sadd.s32 %s242, %s240
      %s244 = smul.addr %s243, 4
      %s245 = scalar_lea.vmem %s1, %s244
      %s246 = smul.u32 16, %s21
      %p247 = scmp.lt.s32.totalorder %s20, 0
      %s248 = scalar_select %p247, %s20, 0
      %s249 = scalar_lea.vmem %s2, %s248
      %s250 = smul.u32 64, %s19
      %p251 = scmp.lt.s32.totalorder %s250, 127
      %s252 = scalar_select %p251, %s250, 127
      %p253 = scmp.lt.s32.totalorder %s20, 0
      %s254 = scalar_select %p253, %s20, 0
      %s255 = sadd.s32 %s254, %s252
      %s256 = smul.addr %s255, 4
      %s257 = scalar_lea.vmem %s3, %s256
      %s258 = smul.u32 64, %s19
      %p259 = scmp.eq.s32.totalorder %s21, 0
      // Predicated region
      $region33: #{fwd.16} parent=31 // pred_check
        %p260 = pneg %p259
      $region34: #{fwd.16} parent=31 // pred_check_branch
        %262 = sbr.rel (%p260) target = $region36
      $region35: #{fwd.16} parent=31 // pred_region
        %263 = vst [vmem:[#allocation2] sm:$0xff] 0.0
        %264 = vst [vmem:[#allocation2 + $0x8] sm:$0xff] 0.0
        %265 = vst [vmem:[#allocation2 + $0x10] sm:$0xff] 0.0
        %266 = vst [vmem:[#allocation2 + $0x18] sm:$0xff] 0.0
        %267 = vst [vmem:[#allocation2 + $0x20] sm:$0xff] 0.0
        %268 = vst [vmem:[#allocation2 + $0x28] sm:$0xff] 0.0
        %269 = vst [vmem:[#allocation2 + $0x30] sm:$0xff] 0.0
        %270 = vst [vmem:[#allocation2 + $0x38] sm:$0xff] 0.0
        %271 = vst [vmem:[#allocation2 + $0x40] sm:$0xff] 0.0
        %272 = vst [vmem:[#allocation2 + $0x48] sm:$0xff] 0.0
        %273 = vst [vmem:[#allocation2 + $0x50] sm:$0xff] 0.0
        %274 = vst [vmem:[#allocation2 + $0x58] sm:$0xff] 0.0
        %275 = vst [vmem:[#allocation2 + $0x60] sm:$0xff] 0.0
        %276 = vst [vmem:[#allocation2 + $0x68] sm:$0xff] 0.0
        %277 = vst [vmem:[#allocation2 + $0x70] sm:$0xff] 0.0
        %278 = vst [vmem:[#allocation2 + $0x78] sm:$0xff] 0.0
        %279 = vst [vmem:[#allocation2 + $0x80] sm:$0xff] 0.0
        %280 = vst [vmem:[#allocation2 + $0x88] sm:$0xff] 0.0
        %281 = vst [vmem:[#allocation2 + $0x90] sm:$0xff] 0.0
        %282 = vst [vmem:[#allocation2 + $0x98] sm:$0xff] 0.0
        %283 = vst [vmem:[#allocation2 + $0xa0] sm:$0xff] 0.0
        %284 = vst [vmem:[#allocation2 + $0xa8] sm:$0xff] 0.0
        %285 = vst [vmem:[#allocation2 + $0xb0] sm:$0xff] 0.0
        %286 = vst [vmem:[#allocation2 + $0xb8] sm:$0xff] 0.0
        %287 = vst [vmem:[#allocation2 + $0xc0] sm:$0xff] 0.0
        %288 = vst [vmem:[#allocation2 + $0xc8] sm:$0xff] 0.0
        %289 = vst [vmem:[#allocation2 + $0xd0] sm:$0xff] 0.0
        %290 = vst [vmem:[#allocation2 + $0xd8] sm:$0xff] 0.0
        %291 = vst [vmem:[#allocation2 + $0xe0] sm:$0xff] 0.0
        %292 = vst [vmem:[#allocation2 + $0xe8] sm:$0xff] 0.0
        %293 = vst [vmem:[#allocation2 + $0xf0] sm:$0xff] 0.0
        %294 = vst [vmem:[#allocation2 + $0xf8] sm:$0xff] 0.0
        %295 = vst [vmem:[#allocation2 + $0x100] sm:$0xff] 0.0
        %296 = vst [vmem:[#allocation2 + $0x108] sm:$0xff] 0.0
        %297 = vst [vmem:[#allocation2 + $0x110] sm:$0xff] 0.0
        %298 = vst [vmem:[#allocation2 + $0x118] sm:$0xff] 0.0
        %299 = vst [vmem:[#allocation2 + $0x120] sm:$0xff] 0.0
        %300 = vst [vmem:[#allocation2 + $0x128] sm:$0xff] 0.0
        %301 = vst [vmem:[#allocation2 + $0x130] sm:$0xff] 0.0
        %302 = vst [vmem:[#allocation2 + $0x138] sm:$0xff] 0.0
        %303 = vst [vmem:[#allocation2 + $0x140] sm:$0xff] 0.0
        %304 = vst [vmem:[#allocation2 + $0x148] sm:$0xff] 0.0
        %305 = vst [vmem:[#allocation2 + $0x150] sm:$0xff] 0.0
        %306 = vst [vmem:[#allocation2 + $0x158] sm:$0xff] 0.0
        %307 = vst [vmem:[#allocation2 + $0x160] sm:$0xff] 0.0
        %308 = vst [vmem:[#allocation2 + $0x168] sm:$0xff] 0.0
        %309 = vst [vmem:[#allocation2 + $0x170] sm:$0xff] 0.0
        %310 = vst [vmem:[#allocation2 + $0x178] sm:$0xff] 0.0
        %311 = vst [vmem:[#allocation2 + $0x180] sm:$0xff] 0.0
        %312 = vst [vmem:[#allocation2 + $0x188] sm:$0xff] 0.0
        %313 = vst [vmem:[#allocation2 + $0x190] sm:$0xff] 0.0
        %314 = vst [vmem:[#allocation2 + $0x198] sm:$0xff] 0.0
        %315 = vst [vmem:[#allocation2 + $0x1a0] sm:$0xff] 0.0
        %316 = vst [vmem:[#allocation2 + $0x1a8] sm:$0xff] 0.0
        %317 = vst [vmem:[#allocation2 + $0x1b0] sm:$0xff] 0.0
        %318 = vst [vmem:[#allocation2 + $0x1b8] sm:$0xff] 0.0
        %319 = vst [vmem:[#allocation2 + $0x1c0] sm:$0xff] 0.0
        %320 = vst [vmem:[#allocation2 + $0x1c8] sm:$0xff] 0.0
        %321 = vst [vmem:[#allocation2 + $0x1d0] sm:$0xff] 0.0
        %322 = vst [vmem:[#allocation2 + $0x1d8] sm:$0xff] 0.0
        %323 = vst [vmem:[#allocation2 + $0x1e0] sm:$0xff] 0.0
        %324 = vst [vmem:[#allocation2 + $0x1e8] sm:$0xff] 0.0
        %325 = vst [vmem:[#allocation2 + $0x1f0] sm:$0xff] 0.0
        %326 = vst [vmem:[#allocation2 + $0x1f8] sm:$0xff] 0.0
      $region36: #{fwd.16} parent=31 // pred_fallthru
        _
      %v327 = vld [vmem:[#allocation2] sm:$0xff]
      %v328 = vld [vmem:[#allocation2 + $0x8] sm:$0xff]
      %v329 = vld [vmem:[#allocation2 + $0x10] sm:$0xff]
      %v330 = vld [vmem:[#allocation2 + $0x18] sm:$0xff]
      %v331 = vld [vmem:[#allocation2 + $0x20] sm:$0xff]
      %v332 = vld [vmem:[#allocation2 + $0x28] sm:$0xff]
      %v333 = vld [vmem:[#allocation2 + $0x30] sm:$0xff]
      %v334 = vld [vmem:[#allocation2 + $0x38] sm:$0xff]
      %v335 = vld [vmem:[#allocation2 + $0x40] sm:$0xff]
      %v336 = vld [vmem:[#allocation2 + $0x48] sm:$0xff]
      %v337 = vld [vmem:[#allocation2 + $0x50] sm:$0xff]
      %v338 = vld [vmem:[#allocation2 + $0x58] sm:$0xff]
      %v339 = vld [vmem:[#allocation2 + $0x60] sm:$0xff]
      %v340 = vld [vmem:[#allocation2 + $0x68] sm:$0xff]
      %v341 = vld [vmem:[#allocation2 + $0x70] sm:$0xff]
      %v342 = vld [vmem:[#allocation2 + $0x78] sm:$0xff]
      %v343 = vld [vmem:[#allocation2 + $0x80] sm:$0xff]
      %v344 = vld [vmem:[#allocation2 + $0x88] sm:$0xff]
      %v345 = vld [vmem:[#allocation2 + $0x90] sm:$0xff]
      %v346 = vld [vmem:[#allocation2 + $0x98] sm:$0xff]
      %v347 = vld [vmem:[#allocation2 + $0xa0] sm:$0xff]
      %v348 = vld [vmem:[#allocation2 + $0xa8] sm:$0xff]
      %v349 = vld [vmem:[#allocation2 + $0xb0] sm:$0xff]
      %v350 = vld [vmem:[#allocation2 + $0xb8] sm:$0xff]
      %v351 = vld [vmem:[#allocation2 + $0xc0] sm:$0xff]
      %v352 = vld [vmem:[#allocation2 + $0xc8] sm:$0xff]
      %v353 = vld [vmem:[#allocation2 + $0xd0] sm:$0xff]
      %v354 = vld [vmem:[#allocation2 + $0xd8] sm:$0xff]
      %v355 = vld [vmem:[#allocation2 + $0xe0] sm:$0xff]
      %v356 = vld [vmem:[#allocation2 + $0xe8] sm:$0xff]
      %v357 = vld [vmem:[#allocation2 + $0xf0] sm:$0xff]
      %v358 = vld [vmem:[#allocation2 + $0xf8] sm:$0xff]
      %v359 = vld [vmem:[#allocation2 + $0x100] sm:$0xff]
      %v360 = vld [vmem:[#allocation2 + $0x108] sm:$0xff]
      %v361 = vld [vmem:[#allocation2 + $0x110] sm:$0xff]
      %v362 = vld [vmem:[#allocation2 + $0x118] sm:$0xff]
      %v363 = vld [vmem:[#allocation2 + $0x120] sm:$0xff]
      %v364 = vld [vmem:[#allocation2 + $0x128] sm:$0xff]
      %v365 = vld [vmem:[#allocation2 + $0x130] sm:$0xff]
      %v366 = vld [vmem:[#allocation2 + $0x138] sm:$0xff]
      %v367 = vld [vmem:[#allocation2 + $0x140] sm:$0xff]
      %v368 = vld [vmem:[#allocation2 + $0x148] sm:$0xff]
      %v369 = vld [vmem:[#allocation2 + $0x150] sm:$0xff]
      %v370 = vld [vmem:[#allocation2 + $0x158] sm:$0xff]
      %v371 = vld [vmem:[#allocation2 + $0x160] sm:$0xff]
      %v372 = vld [vmem:[#allocation2 + $0x168] sm:$0xff]
      %v373 = vld [vmem:[#allocation2 + $0x170] sm:$0xff]
      %v374 = vld [vmem:[#allocation2 + $0x178] sm:$0xff]
      %v375 = vld [vmem:[#allocation2 + $0x180] sm:$0xff]
      %v376 = vld [vmem:[#allocation2 + $0x188] sm:$0xff]
      %v377 = vld [vmem:[#allocation2 + $0x190] sm:$0xff]
      %v378 = vld [vmem:[#allocation2 + $0x198] sm:$0xff]
      %v379 = vld [vmem:[#allocation2 + $0x1a0] sm:$0xff]
      %v380 = vld [vmem:[#allocation2 + $0x1a8] sm:$0xff]
      %v381 = vld [vmem:[#allocation2 + $0x1b0] sm:$0xff]
      %v382 = vld [vmem:[#allocation2 + $0x1b8] sm:$0xff]
      %v383 = vld [vmem:[#allocation2 + $0x1c0] sm:$0xff]
      %v384 = vld [vmem:[#allocation2 + $0x1c8] sm:$0xff]
      %v385 = vld [vmem:[#allocation2 + $0x1d0] sm:$0xff]
      %v386 = vld [vmem:[#allocation2 + $0x1d8] sm:$0xff]
      %v387 = vld [vmem:[#allocation2 + $0x1e0] sm:$0xff]
      %v388 = vld [vmem:[#allocation2 + $0x1e8] sm:$0xff]
      %v389 = vld [vmem:[#allocation2 + $0x1f0] sm:$0xff]
      %v390 = vld [vmem:[#allocation2 + $0x1f8] sm:$0xff]
      %v391 = vld [vmem:[%s236] sm:$0xf]
      %v392 = vld [vmem:[%s236 + $0x4] sm:$0xf]
      %v393 = vld [vmem:[%s236 + $0x8] sm:$0xf]
      %v394 = vld [vmem:[%s236 + $0xc] sm:$0xf]
      %v395 = vld [vmem:[%s236 + $0x10] sm:$0xf]
      %v396 = vld [vmem:[%s236 + $0x14] sm:$0xf]
      %v397 = vld [vmem:[%s236 + $0x18] sm:$0xf]
      %v398 = vld [vmem:[%s236 + $0x1c] sm:$0xf]
      %v399 = vld [vmem:[%s236 + $0x20] sm:$0xf]
      %v400 = vld [vmem:[%s236 + $0x24] sm:$0xf]
      %v401 = vld [vmem:[%s236 + $0x28] sm:$0xf]
      %v402 = vld [vmem:[%s236 + $0x2c] sm:$0xf]
      %v403 = vld [vmem:[%s236 + $0x30] sm:$0xf]
      %v404 = vld [vmem:[%s236 + $0x34] sm:$0xf]
      %v405 = vld [vmem:[%s236 + $0x38] sm:$0xf]
      %v406 = vld [vmem:[%s236 + $0x3c] sm:$0xf]
      %v407 = vld [vmem:[%s236 + $0x40] sm:$0xf]
      %v408 = vld [vmem:[%s236 + $0x44] sm:$0xf]
      %v409 = vld [vmem:[%s236 + $0x48] sm:$0xf]
      %v410 = vld [vmem:[%s236 + $0x4c] sm:$0xf]
      %v411 = vld [vmem:[%s236 + $0x50] sm:$0xf]
      %v412 = vld [vmem:[%s236 + $0x54] sm:$0xf]
      %v413 = vld [vmem:[%s236 + $0x58] sm:$0xf]
      %v414 = vld [vmem:[%s236 + $0x5c] sm:$0xf]
      %v415 = vld [vmem:[%s236 + $0x60] sm:$0xf]
      %v416 = vld [vmem:[%s236 + $0x64] sm:$0xf]
      %v417 = vld [vmem:[%s236 + $0x68] sm:$0xf]
      %v418 = vld [vmem:[%s236 + $0x6c] sm:$0xf]
      %v419 = vld [vmem:[%s236 + $0x70] sm:$0xf]
      %v420 = vld [vmem:[%s236 + $0x74] sm:$0xf]
      %v421 = vld [vmem:[%s236 + $0x78] sm:$0xf]
      %v422 = vld [vmem:[%s236 + $0x7c] sm:$0xf]
      %v423 = vld [vmem:[%s236 + $0x80] sm:$0xf]
      %v424 = vld [vmem:[%s236 + $0x84] sm:$0xf]
      %v425 = vld [vmem:[%s236 + $0x88] sm:$0xf]
      %v426 = vld [vmem:[%s236 + $0x8c] sm:$0xf]
      %v427 = vld [vmem:[%s236 + $0x90] sm:$0xf]
      %v428 = vld [vmem:[%s236 + $0x94] sm:$0xf]
      %v429 = vld [vmem:[%s236 + $0x98] sm:$0xf]
      %v430 = vld [vmem:[%s236 + $0x9c] sm:$0xf]
      %v431 = vld [vmem:[%s236 + $0xa0] sm:$0xf]
      %v432 = vld [vmem:[%s236 + $0xa4] sm:$0xf]
      %v433 = vld [vmem:[%s236 + $0xa8] sm:$0xf]
      %v434 = vld [vmem:[%s236 + $0xac] sm:$0xf]
      %v435 = vld [vmem:[%s236 + $0xb0] sm:$0xf]
      %v436 = vld [vmem:[%s236 + $0xb4] sm:$0xf]
      %v437 = vld [vmem:[%s236 + $0xb8] sm:$0xf]
      %v438 = vld [vmem:[%s236 + $0xbc] sm:$0xf]
      %v439 = vld [vmem:[%s236 + $0xc0] sm:$0xf]
      %v440 = vld [vmem:[%s236 + $0xc4] sm:$0xf]
      %v441 = vld [vmem:[%s236 + $0xc8] sm:$0xf]
      %v442 = vld [vmem:[%s236 + $0xcc] sm:$0xf]
      %v443 = vld [vmem:[%s236 + $0xd0] sm:$0xf]
      %v444 = vld [vmem:[%s236 + $0xd4] sm:$0xf]
      %v445 = vld [vmem:[%s236 + $0xd8] sm:$0xf]
      %v446 = vld [vmem:[%s236 + $0xdc] sm:$0xf]
      %v447 = vld [vmem:[%s236 + $0xe0] sm:$0xf]
      %v448 = vld [vmem:[%s236 + $0xe4] sm:$0xf]
      %v449 = vld [vmem:[%s236 + $0xe8] sm:$0xf]
      %v450 = vld [vmem:[%s236 + $0xec] sm:$0xf]
      %v451 = vld [vmem:[%s236 + $0xf0] sm:$0xf]
      %v452 = vld [vmem:[%s236 + $0xf4] sm:$0xf]
      %v453 = vld [vmem:[%s236 + $0xf8] sm:$0xf]
      %v454 = vld [vmem:[%s236 + $0xfc] sm:$0xf]
      %v455 = vld [vmem:[%s245] sm:$0xf]
      %v456 = vld [vmem:[%s245 + $0x4] sm:$0xf]
      %v457 = vld [vmem:[%s245 + $0x8] sm:$0xf]
      %v458 = vld [vmem:[%s245 + $0xc] sm:$0xf]
      %v459 = vld [vmem:[%s245 + $0x10] sm:$0xf]
      %v460 = vld [vmem:[%s245 + $0x14] sm:$0xf]
      %v461 = vld [vmem:[%s245 + $0x18] sm:$0xf]
      %v462 = vld [vmem:[%s245 + $0x1c] sm:$0xf]
      %v463 = vld [vmem:[%s245 + $0x20] sm:$0xf]
      %v464 = vld [vmem:[%s245 + $0x24] sm:$0xf]
      %v465 = vld [vmem:[%s245 + $0x28] sm:$0xf]
      %v466 = vld [vmem:[%s245 + $0x2c] sm:$0xf]
      %v467 = vld [vmem:[%s245 + $0x30] sm:$0xf]
      %v468 = vld [vmem:[%s245 + $0x34] sm:$0xf]
      %v469 = vld [vmem:[%s245 + $0x38] sm:$0xf]
      %v470 = vld [vmem:[%s245 + $0x3c] sm:$0xf]
      %v535 = vunpack.c.l.b16 %v391
      %v536 = vunpack.c.l.b16 %v392
      %v537 = vunpack.c.l.b16 %v393
      %v538 = vunpack.c.l.b16 %v394
      %v539 = vunpack.c.l.b16 %v395
      %v540 = vunpack.c.l.b16 %v396
      %v541 = vunpack.c.l.b16 %v397
      %v542 = vunpack.c.l.b16 %v398
      %v543 = vunpack.c.l.b16 %v399
      %v544 = vunpack.c.l.b16 %v400
      %v545 = vunpack.c.l.b16 %v401
      %v546 = vunpack.c.l.b16 %v402
      %v547 = vunpack.c.l.b16 %v403
      %v548 = vunpack.c.l.b16 %v404
      %v549 = vunpack.c.l.b16 %v405
      %v550 = vunpack.c.l.b16 %v406
      %v551 = vunpack.c.l.b16 %v407
      %v552 = vunpack.c.l.b16 %v408
      %v553 = vunpack.c.l.b16 %v409
      %v554 = vunpack.c.l.b16 %v410
      %v555 = vunpack.c.l.b16 %v411
      %v556 = vunpack.c.l.b16 %v412
      %v557 = vunpack.c.l.b16 %v413
      %v558 = vunpack.c.l.b16 %v414
      %v559 = vunpack.c.l.b16 %v415
      %v560 = vunpack.c.l.b16 %v416
      %v561 = vunpack.c.l.b16 %v417
      %v562 = vunpack.c.l.b16 %v418
      %v563 = vunpack.c.l.b16 %v419
      %v564 = vunpack.c.l.b16 %v420
      %v565 = vunpack.c.l.b16 %v421
      %v566 = vunpack.c.l.b16 %v422
      %v567 = vunpack.c.l.b16 %v423
      %v568 = vunpack.c.l.b16 %v424
      %v569 = vunpack.c.l.b16 %v425
      %v570 = vunpack.c.l.b16 %v426
      %v571 = vunpack.c.l.b16 %v427
      %v572 = vunpack.c.l.b16 %v428
      %v573 = vunpack.c.l.b16 %v429
      %v574 = vunpack.c.l.b16 %v430
      %v575 = vunpack.c.l.b16 %v431
      %v576 = vunpack.c.l.b16 %v432
      %v577 = vunpack.c.l.b16 %v433
      %v578 = vunpack.c.l.b16 %v434
      %v579 = vunpack.c.l.b16 %v435
      %v580 = vunpack.c.l.b16 %v436
      %v581 = vunpack.c.l.b16 %v437
      %v582 = vunpack.c.l.b16 %v438
      %v583 = vunpack.c.l.b16 %v439
      %v584 = vunpack.c.l.b16 %v440
      %v585 = vunpack.c.l.b16 %v441
      %v586 = vunpack.c.l.b16 %v442
      %v587 = vunpack.c.l.b16 %v443
      %v588 = vunpack.c.l.b16 %v444
      %v589 = vunpack.c.l.b16 %v445
      %v590 = vunpack.c.l.b16 %v446
      %v591 = vunpack.c.l.b16 %v447
      %v592 = vunpack.c.l.b16 %v448
      %v593 = vunpack.c.l.b16 %v449
      %v594 = vunpack.c.l.b16 %v450
      %v595 = vunpack.c.l.b16 %v451
      %v596 = vunpack.c.l.b16 %v452
      %v597 = vunpack.c.l.b16 %v453
      %v598 = vunpack.c.l.b16 %v454
      %v599 = vpack.c.b16 %v536, %v535
      %v600 = vpack.c.b16 %v538, %v537
      %v601 = vpack.c.b16 %v540, %v539
      %v602 = vpack.c.b16 %v542, %v541
      %v603 = vpack.c.b16 %v544, %v543
      %v604 = vpack.c.b16 %v546, %v545
      %v605 = vpack.c.b16 %v548, %v547
      %v606 = vpack.c.b16 %v550, %v549
      %v607 = vpack.c.b16 %v552, %v551
      %v608 = vpack.c.b16 %v554, %v553
      %v609 = vpack.c.b16 %v556, %v555
      %v610 = vpack.c.b16 %v558, %v557
      %v611 = vpack.c.b16 %v560, %v559
      %v612 = vpack.c.b16 %v562, %v561
      %v613 = vpack.c.b16 %v564, %v563
      %v614 = vpack.c.b16 %v566, %v565
      %v615 = vpack.c.b16 %v568, %v567
      %v616 = vpack.c.b16 %v570, %v569
      %v617 = vpack.c.b16 %v572, %v571
      %v618 = vpack.c.b16 %v574, %v573
      %v619 = vpack.c.b16 %v576, %v575
      %v620 = vpack.c.b16 %v578, %v577
      %v621 = vpack.c.b16 %v580, %v579
      %v622 = vpack.c.b16 %v582, %v581
      %v623 = vpack.c.b16 %v584, %v583
      %v624 = vpack.c.b16 %v586, %v585
      %v625 = vpack.c.b16 %v588, %v587
      %v626 = vpack.c.b16 %v590, %v589
      %v627 = vpack.c.b16 %v592, %v591
      %v628 = vpack.c.b16 %v594, %v593
      %v629 = vpack.c.b16 %v596, %v595
      %v630 = vpack.c.b16 %v598, %v597
      %v679 = vunpack.c.l.b16 %v455
      %v680 = vunpack.c.l.b16 %v456
      %v681 = vunpack.c.l.b16 %v457
      %v682 = vunpack.c.l.b16 %v458
      %v683 = vunpack.c.l.b16 %v459
      %v684 = vunpack.c.l.b16 %v460
      %v685 = vunpack.c.l.b16 %v461
      %v686 = vunpack.c.l.b16 %v462
      %v687 = vunpack.c.l.b16 %v463
      %v688 = vunpack.c.l.b16 %v464
      %v689 = vunpack.c.l.b16 %v465
      %v690 = vunpack.c.l.b16 %v466
      %v691 = vunpack.c.l.b16 %v467
      %v692 = vunpack.c.l.b16 %v468
      %v693 = vunpack.c.l.b16 %v469
      %v694 = vunpack.c.l.b16 %v470
      %v695 = vpack.c.b16 %v680, %v679
      %v696 = vpack.c.b16 %v682, %v681
      %v697 = vpack.c.b16 %v684, %v683
      %v698 = vpack.c.b16 %v686, %v685
      %v699 = vpack.c.b16 %v688, %v687
      %v700 = vpack.c.b16 %v690, %v689
      %v701 = vpack.c.b16 %v692, %v691
      %v702 = vpack.c.b16 %v694, %v693
      %711 = vmatpush.bf16.msra.mxu0 %v702
      %712 = vmatpush.bf16.msra.mxu0 %v701
      %713 = vmatpush.bf16.msra.mxu0 %v700
      %714 = vmatpush.bf16.msra.mxu0 %v699
      %715 = vmatpush.bf16.msra.mxu0 %v698
      %716 = vmatpush.bf16.msra.mxu0 %v697
      %717 = vmatpush.bf16.msra.mxu0 %v696
      %718 = vmatpush.bf16.msra.mxu0 %v695
      %719 = vmatmul.bf16.gmra.mxu0 %v599
      %v720 = vpop.f32.mrf.mxu0
      %v721 = vadd.f32 0.0, %v720
      %v722 = vpop.f32.mrf.mxu0
      %v723 = vadd.f32 0.0, %v722
      %724 = vmatmul.bf16.gmra.mxu0 %v600
      %v725 = vpop.f32.mrf.mxu0
      %v726 = vadd.f32 0.0, %v725
      %v727 = vpop.f32.mrf.mxu0
      %v728 = vadd.f32 0.0, %v727
      %729 = vmatmul.bf16.gmra.mxu0 %v601
      %v730 = vpop.f32.mrf.mxu0
      %v731 = vadd.f32 0.0, %v730
      %v732 = vpop.f32.mrf.mxu0
      %v733 = vadd.f32 0.0, %v732
      %734 = vmatmul.bf16.gmra.mxu0 %v602
      %v735 = vpop.f32.mrf.mxu0
      %v736 = vadd.f32 0.0, %v735
      %v737 = vpop.f32.mrf.mxu0
      %v738 = vadd.f32 0.0, %v737
      %739 = vmatmul.bf16.gmra.mxu0 %v603
      %v740 = vpop.f32.mrf.mxu0
      %v741 = vadd.f32 0.0, %v740
      %v742 = vpop.f32.mrf.mxu0
      %v743 = vadd.f32 0.0, %v742
      %744 = vmatmul.bf16.gmra.mxu0 %v604
      %v745 = vpop.f32.mrf.mxu0
      %v746 = vadd.f32 0.0, %v745
      %v747 = vpop.f32.mrf.mxu0
      %v748 = vadd.f32 0.0, %v747
      %749 = vmatmul.bf16.gmra.mxu0 %v605
      %v750 = vpop.f32.mrf.mxu0
      %v751 = vadd.f32 0.0, %v750
      %v752 = vpop.f32.mrf.mxu0
      %v753 = vadd.f32 0.0, %v752
      %754 = vmatmul.bf16.gmra.mxu0 %v606
      %v755 = vpop.f32.mrf.mxu0
      %v756 = vadd.f32 0.0, %v755
      %v757 = vpop.f32.mrf.mxu0
      %v758 = vadd.f32 0.0, %v757
      %759 = vmatmul.bf16.gmra.mxu0 %v607
      %v760 = vpop.f32.mrf.mxu0
      %v761 = vadd.f32 0.0, %v760
      %v762 = vpop.f32.mrf.mxu0
      %v763 = vadd.f32 0.0, %v762
      %764 = vmatmul.bf16.gmra.mxu0 %v608
      %v765 = vpop.f32.mrf.mxu0
      %v766 = vadd.f32 0.0, %v765
      %v767 = vpop.f32.mrf.mxu0
      %v768 = vadd.f32 0.0, %v767
      %769 = vmatmul.bf16.gmra.mxu0 %v609
      %v770 = vpop.f32.mrf.mxu0
      %v771 = vadd.f32 0.0, %v770
      %v772 = vpop.f32.mrf.mxu0
      %v773 = vadd.f32 0.0, %v772
      %774 = vmatmul.bf16.gmra.mxu0 %v610
      %v775 = vpop.f32.mrf.mxu0
      %v776 = vadd.f32 0.0, %v775
      %v777 = vpop.f32.mrf.mxu0
      %v778 = vadd.f32 0.0, %v777
      %779 = vmatmul.bf16.gmra.mxu0 %v611
      %v780 = vpop.f32.mrf.mxu0
      %v781 = vadd.f32 0.0, %v780
      %v782 = vpop.f32.mrf.mxu0
      %v783 = vadd.f32 0.0, %v782
      %784 = vmatmul.bf16.gmra.mxu0 %v612
      %v785 = vpop.f32.mrf.mxu0
      %v786 = vadd.f32 0.0, %v785
      %v787 = vpop.f32.mrf.mxu0
      %v788 = vadd.f32 0.0, %v787
      %789 = vmatmul.bf16.gmra.mxu0 %v613
      %v790 = vpop.f32.mrf.mxu0
      %v791 = vadd.f32 0.0, %v790
      %v792 = vpop.f32.mrf.mxu0
      %v793 = vadd.f32 0.0, %v792
      %794 = vmatmul.bf16.gmra.mxu0 %v614
      %v795 = vpop.f32.mrf.mxu0
      %v796 = vadd.f32 0.0, %v795
      %v797 = vpop.f32.mrf.mxu0
      %v798 = vadd.f32 0.0, %v797
      %799 = vmatmul.bf16.gmra.mxu0 %v615
      %v800 = vpop.f32.mrf.mxu0
      %v801 = vadd.f32 0.0, %v800
      %v802 = vpop.f32.mrf.mxu0
      %v803 = vadd.f32 0.0, %v802
      %804 = vmatmul.bf16.gmra.mxu0 %v616
      %v805 = vpop.f32.mrf.mxu0
      %v806 = vadd.f32 0.0, %v805
      %v807 = vpop.f32.mrf.mxu0
      %v808 = vadd.f32 0.0, %v807
      %809 = vmatmul.bf16.gmra.mxu0 %v617
      %v810 = vpop.f32.mrf.mxu0
      %v811 = vadd.f32 0.0, %v810
      %v812 = vpop.f32.mrf.mxu0
      %v813 = vadd.f32 0.0, %v812
      %814 = vmatmul.bf16.gmra.mxu0 %v618
      %v815 = vpop.f32.mrf.mxu0
      %v816 = vadd.f32 0.0, %v815
      %v817 = vpop.f32.mrf.mxu0
      %v818 = vadd.f32 0.0, %v817
      %819 = vmatmul.bf16.gmra.mxu0 %v619
      %v820 = vpop.f32.mrf.mxu0
      %v821 = vadd.f32 0.0, %v820
      %v822 = vpop.f32.mrf.mxu0
      %v823 = vadd.f32 0.0, %v822
      %824 = vmatmul.bf16.gmra.mxu0 %v620
      %v825 = vpop.f32.mrf.mxu0
      %v826 = vadd.f32 0.0, %v825
      %v827 = vpop.f32.mrf.mxu0
      %v828 = vadd.f32 0.0, %v827
      %829 = vmatmul.bf16.gmra.mxu0 %v621
      %v830 = vpop.f32.mrf.mxu0
      %v831 = vadd.f32 0.0, %v830
      %v832 = vpop.f32.mrf.mxu0
      %v833 = vadd.f32 0.0, %v832
      %834 = vmatmul.bf16.gmra.mxu0 %v622
      %v835 = vpop.f32.mrf.mxu0
      %v836 = vadd.f32 0.0, %v835
      %v837 = vpop.f32.mrf.mxu0
      %v838 = vadd.f32 0.0, %v837
      %839 = vmatmul.bf16.gmra.mxu0 %v623
      %v840 = vpop.f32.mrf.mxu0
      %v841 = vadd.f32 0.0, %v840
      %v842 = vpop.f32.mrf.mxu0
      %v843 = vadd.f32 0.0, %v842
      %844 = vmatmul.bf16.gmra.mxu0 %v624
      %v845 = vpop.f32.mrf.mxu0
      %v846 = vadd.f32 0.0, %v845
      %v847 = vpop.f32.mrf.mxu0
      %v848 = vadd.f32 0.0, %v847
      %849 = vmatmul.bf16.gmra.mxu0 %v625
      %v850 = vpop.f32.mrf.mxu0
      %v851 = vadd.f32 0.0, %v850
      %v852 = vpop.f32.mrf.mxu0
      %v853 = vadd.f32 0.0, %v852
      %854 = vmatmul.bf16.gmra.mxu0 %v626
      %v855 = vpop.f32.mrf.mxu0
      %v856 = vadd.f32 0.0, %v855
      %v857 = vpop.f32.mrf.mxu0
      %v858 = vadd.f32 0.0, %v857
      %859 = vmatmul.bf16.gmra.mxu0 %v627
      %v860 = vpop.f32.mrf.mxu0
      %v861 = vadd.f32 0.0, %v860
      %v862 = vpop.f32.mrf.mxu0
      %v863 = vadd.f32 0.0, %v862
      %864 = vmatmul.bf16.gmra.mxu0 %v628
      %v865 = vpop.f32.mrf.mxu0
      %v866 = vadd.f32 0.0, %v865
      %v867 = vpop.f32.mrf.mxu0
      %v868 = vadd.f32 0.0, %v867
      %869 = vmatmul.bf16.gmra.mxu0 %v629
      %v870 = vpop.f32.mrf.mxu0
      %v871 = vadd.f32 0.0, %v870
      %v872 = vpop.f32.mrf.mxu0
      %v873 = vadd.f32 0.0, %v872
      %874 = vmatmul.bf16.gmra.mxu0 %v630
      %v875 = vpop.f32.mrf.mxu0
      %v876 = vadd.f32 0.0, %v875
      %v877 = vpop.f32.mrf.mxu0
      %v878 = vadd.f32 0.0, %v877
      %879 = vdwg.mxu0
      %v880 = vadd.f32 %v327, %v721
      %v881 = vadd.f32 %v328, %v723
      %v882 = vadd.f32 %v329, %v726
      %v883 = vadd.f32 %v330, %v728
      %v884 = vadd.f32 %v331, %v731
      %v885 = vadd.f32 %v332, %v733
      %v886 = vadd.f32 %v333, %v736
      %v887 = vadd.f32 %v334, %v738
      %v888 = vadd.f32 %v335, %v741
      %v889 = vadd.f32 %v336, %v743
      %v890 = vadd.f32 %v337, %v746
      %v891 = vadd.f32 %v338, %v748
      %v892 = vadd.f32 %v339, %v751
      %v893 = vadd.f32 %v340, %v753
      %v894 = vadd.f32 %v341, %v756
      %v895 = vadd.f32 %v342, %v758
      %v896 = vadd.f32 %v343, %v761
      %v897 = vadd.f32 %v344, %v763
      %v898 = vadd.f32 %v345, %v766
      %v899 = vadd.f32 %v346, %v768
      %v900 = vadd.f32 %v347, %v771
      %v901 = vadd.f32 %v348, %v773
      %v902 = vadd.f32 %v349, %v776
      %v903 = vadd.f32 %v350, %v778
      %v904 = vadd.f32 %v351, %v781
      %v905 = vadd.f32 %v352, %v783
      %v906 = vadd.f32 %v353, %v786
      %v907 = vadd.f32 %v354, %v788
      %v908 = vadd.f32 %v355, %v791
      %v909 = vadd.f32 %v356, %v793
      %v910 = vadd.f32 %v357, %v796
      %v911 = vadd.f32 %v358, %v798
      %v912 = vadd.f32 %v359, %v801
      %v913 = vadd.f32 %v360, %v803
      %v914 = vadd.f32 %v361, %v806
      %v915 = vadd.f32 %v362, %v808
      %v916 = vadd.f32 %v363, %v811
      %v917 = vadd.f32 %v364, %v813
      %v918 = vadd.f32 %v365, %v816
      %v919 = vadd.f32 %v366, %v818
      %v920 = vadd.f32 %v367, %v821
      %v921 = vadd.f32 %v368, %v823
      %v922 = vadd.f32 %v369, %v826
      %v923 = vadd.f32 %v370, %v828
      %v924 = vadd.f32 %v371, %v831
      %v925 = vadd.f32 %v372, %v833
      %v926 = vadd.f32 %v373, %v836
      %v927 = vadd.f32 %v374, %v838
      %v928 = vadd.f32 %v375, %v841
      %v929 = vadd.f32 %v376, %v843
      %v930 = vadd.f32 %v377, %v846
      %v931 = vadd.f32 %v378, %v848
      %v932 = vadd.f32 %v379, %v851
      %v933 = vadd.f32 %v380, %v853
      %v934 = vadd.f32 %v381, %v856
      %v935 = vadd.f32 %v382, %v858
      %v936 = vadd.f32 %v383, %v861
      %v937 = vadd.f32 %v384, %v863
      %v938 = vadd.f32 %v385, %v866
      %v939 = vadd.f32 %v386, %v868
      %v940 = vadd.f32 %v387, %v871
      %v941 = vadd.f32 %v388, %v873
      %v942 = vadd.f32 %v389, %v876
      %v943 = vadd.f32 %v390, %v878
      %944 = vst [vmem:[#allocation2] sm:$0xff] %v880
      %945 = vst [vmem:[#allocation2 + $0x8] sm:$0xff] %v881
      %946 = vst [vmem:[#allocation2 + $0x10] sm:$0xff] %v882
      %947 = vst [vmem:[#allocation2 + $0x18] sm:$0xff] %v883
      %948 = vst [vmem:[#allocation2 + $0x20] sm:$0xff] %v884
      %949 = vst [vmem:[#allocation2 + $0x28] sm:$0xff] %v885
      %950 = vst [vmem:[#allocation2 + $0x30] sm:$0xff] %v886
      %951 = vst [vmem:[#allocation2 + $0x38] sm:$0xff] %v887
      %952 = vst [vmem:[#allocation2 + $0x40] sm:$0xff] %v888
      %953 = vst [vmem:[#allocation2 + $0x48] sm:$0xff] %v889
      %954 = vst [vmem:[#allocation2 + $0x50] sm:$0xff] %v890
      %955 = vst [vmem:[#allocation2 + $0x58] sm:$0xff] %v891
      %956 = vst [vmem:[#allocation2 + $0x60] sm:$0xff] %v892
      %957 = vst [vmem:[#allocation2 + $0x68] sm:$0xff] %v893
      %958 = vst [vmem:[#allocation2 + $0x70] sm:$0xff] %v894
      %959 = vst [vmem:[#allocation2 + $0x78] sm:$0xff] %v895
      %960 = vst [vmem:[#allocation2 + $0x80] sm:$0xff] %v896
      %961 = vst [vmem:[#allocation2 + $0x88] sm:$0xff] %v897
      %962 = vst [vmem:[#allocation2 + $0x90] sm:$0xff] %v898
      %963 = vst [vmem:[#allocation2 + $0x98] sm:$0xff] %v899
      %964 = vst [vmem:[#allocation2 + $0xa0] sm:$0xff] %v900
      %965 = vst [vmem:[#allocation2 + $0xa8] sm:$0xff] %v901
      %966 = vst [vmem:[#allocation2 + $0xb0] sm:$0xff] %v902
      %967 = vst [vmem:[#allocation2 + $0xb8] sm:$0xff] %v903
      %968 = vst [vmem:[#allocation2 + $0xc0] sm:$0xff] %v904
      %969 = vst [vmem:[#allocation2 + $0xc8] sm:$0xff] %v905
      %970 = vst [vmem:[#allocation2 + $0xd0] sm:$0xff] %v906
      %971 = vst [vmem:[#allocation2 + $0xd8] sm:$0xff] %v907
      %972 = vst [vmem:[#allocation2 + $0xe0] sm:$0xff] %v908
      %973 = vst [vmem:[#allocation2 + $0xe8] sm:$0xff] %v909
      %974 = vst [vmem:[#allocation2 + $0xf0] sm:$0xff] %v910
      %975 = vst [vmem:[#allocation2 + $0xf8] sm:$0xff] %v911
      %976 = vst [vmem:[#allocation2 + $0x100] sm:$0xff] %v912
      %977 = vst [vmem:[#allocation2 + $0x108] sm:$0xff] %v913
      %978 = vst [vmem:[#allocation2 + $0x110] sm:$0xff] %v914
      %979 = vst [vmem:[#allocation2 + $0x118] sm:$0xff] %v915
      %980 = vst [vmem:[#allocation2 + $0x120] sm:$0xff] %v916
      %981 = vst [vmem:[#allocation2 + $0x128] sm:$0xff] %v917
      %982 = vst [vmem:[#allocation2 + $0x130] sm:$0xff] %v918
      %983 = vst [vmem:[#allocation2 + $0x138] sm:$0xff] %v919
      %984 = vst [vmem:[#allocation2 + $0x140] sm:$0xff] %v920
      %985 = vst [vmem:[#allocation2 + $0x148] sm:$0xff] %v921
      %986 = vst [vmem:[#allocation2 + $0x150] sm:$0xff] %v922
      %987 = vst [vmem:[#allocation2 + $0x158] sm:$0xff] %v923
      %988 = vst [vmem:[#allocation2 + $0x160] sm:$0xff] %v924
      %989 = vst [vmem:[#allocation2 + $0x168] sm:$0xff] %v925
      %990 = vst [vmem:[#allocation2 + $0x170] sm:$0xff] %v926
      %991 = vst [vmem:[#allocation2 + $0x178] sm:$0xff] %v927
      %992 = vst [vmem:[#allocation2 + $0x180] sm:$0xff] %v928
      %993 = vst [vmem:[#allocation2 + $0x188] sm:$0xff] %v929
      %994 = vst [vmem:[#allocation2 + $0x190] sm:$0xff] %v930
      %995 = vst [vmem:[#allocation2 + $0x198] sm:$0xff] %v931
      %996 = vst [vmem:[#allocation2 + $0x1a0] sm:$0xff] %v932
      %997 = vst [vmem:[#allocation2 + $0x1a8] sm:$0xff] %v933
      %998 = vst [vmem:[#allocation2 + $0x1b0] sm:$0xff] %v934
      %999 = vst [vmem:[#allocation2 + $0x1b8] sm:$0xff] %v935
      %1000 = vst [vmem:[#allocation2 + $0x1c0] sm:$0xff] %v936
      %1001 = vst [vmem:[#allocation2 + $0x1c8] sm:$0xff] %v937
      %1002 = vst [vmem:[#allocation2 + $0x1d0] sm:$0xff] %v938
      %1003 = vst [vmem:[#allocation2 + $0x1d8] sm:$0xff] %v939
      %1004 = vst [vmem:[#allocation2 + $0x1e0] sm:$0xff] %v940
      %1005 = vst [vmem:[#allocation2 + $0x1e8] sm:$0xff] %v941
      %1006 = vst [vmem:[#allocation2 + $0x1f0] sm:$0xff] %v942
      %1007 = vst [vmem:[#allocation2 + $0x1f8] sm:$0xff] %v943
      // Predicated region
      $region37: #{fwd.16} parent=31 // pred_check
        %p1008 = pneg %p259
      $region38: #{fwd.16} parent=31 // pred_check_branch
        %1010 = sbr.rel (%p1008) target = $region40
      $region39: #{fwd.16} parent=31 // pred_region
        %v1011 = vld [vmem:[#allocation2] sm:$0xff]
        %v1012 = vld [vmem:[#allocation2 + $0x8] sm:$0xff]
        %v1013 = vld [vmem:[#allocation2 + $0x10] sm:$0xff]
        %v1014 = vld [vmem:[#allocation2 + $0x18] sm:$0xff]
        %v1015 = vld [vmem:[#allocation2 + $0x20] sm:$0xff]
        %v1016 = vld [vmem:[#allocation2 + $0x28] sm:$0xff]
        %v1017 = vld [vmem:[#allocation2 + $0x30] sm:$0xff]
        %v1018 = vld [vmem:[#allocation2 + $0x38] sm:$0xff]
        %v1019 = vld [vmem:[#allocation2 + $0x40] sm:$0xff]
        %v1020 = vld [vmem:[#allocation2 + $0x48] sm:$0xff]
        %v1021 = vld [vmem:[#allocation2 + $0x50] sm:$0xff]
        %v1022 = vld [vmem:[#allocation2 + $0x58] sm:$0xff]
        %v1023 = vld [vmem:[#allocation2 + $0x60] sm:$0xff]
        %v1024 = vld [vmem:[#allocation2 + $0x68] sm:$0xff]
        %v1025 = vld [vmem:[#allocation2 + $0x70] sm:$0xff]
        %v1026 = vld [vmem:[#allocation2 + $0x78] sm:$0xff]
        %v1027 = vld [vmem:[#allocation2 + $0x80] sm:$0xff]
        %v1028 = vld [vmem:[#allocation2 + $0x88] sm:$0xff]
        %v1029 = vld [vmem:[#allocation2 + $0x90] sm:$0xff]
        %v1030 = vld [vmem:[#allocation2 + $0x98] sm:$0xff]
        %v1031 = vld [vmem:[#allocation2 + $0xa0] sm:$0xff]
        %v1032 = vld [vmem:[#allocation2 + $0xa8] sm:$0xff]
        %v1033 = vld [vmem:[#allocation2 + $0xb0] sm:$0xff]
        %v1034 = vld [vmem:[#allocation2 + $0xb8] sm:$0xff]
        %v1035 = vld [vmem:[#allocation2 + $0xc0] sm:$0xff]
        %v1036 = vld [vmem:[#allocation2 + $0xc8] sm:$0xff]
        %v1037 = vld [vmem:[#allocation2 + $0xd0] sm:$0xff]
        %v1038 = vld [vmem:[#allocation2 + $0xd8] sm:$0xff]
        %v1039 = vld [vmem:[#allocation2 + $0xe0] sm:$0xff]
        %v1040 = vld [vmem:[#allocation2 + $0xe8] sm:$0xff]
        %v1041 = vld [vmem:[#allocation2 + $0xf0] sm:$0xff]
        %v1042 = vld [vmem:[#allocation2 + $0xf8] sm:$0xff]
        %v1043 = vld [vmem:[#allocation2 + $0x100] sm:$0xff]
        %v1044 = vld [vmem:[#allocation2 + $0x108] sm:$0xff]
        %v1045 = vld [vmem:[#allocation2 + $0x110] sm:$0xff]
        %v1046 = vld [vmem:[#allocation2 + $0x118] sm:$0xff]
        %v1047 = vld [vmem:[#allocation2 + $0x120] sm:$0xff]
        %v1048 = vld [vmem:[#allocation2 + $0x128] sm:$0xff]
        %v1049 = vld [vmem:[#allocation2 + $0x130] sm:$0xff]
        %v1050 = vld [vmem:[#allocation2 + $0x138] sm:$0xff]
        %v1051 = vld [vmem:[#allocation2 + $0x140] sm:$0xff]
        %v1052 = vld [vmem:[#allocation2 + $0x148] sm:$0xff]
        %v1053 = vld [vmem:[#allocation2 + $0x150] sm:$0xff]
        %v1054 = vld [vmem:[#allocation2 + $0x158] sm:$0xff]
        %v1055 = vld [vmem:[#allocation2 + $0x160] sm:$0xff]
        %v1056 = vld [vmem:[#allocation2 + $0x168] sm:$0xff]
        %v1057 = vld [vmem:[#allocation2 + $0x170] sm:$0xff]
        %v1058 = vld [vmem:[#allocation2 + $0x178] sm:$0xff]
        %v1059 = vld [vmem:[#allocation2 + $0x180] sm:$0xff]
        %v1060 = vld [vmem:[#allocation2 + $0x188] sm:$0xff]
        %v1061 = vld [vmem:[#allocation2 + $0x190] sm:$0xff]
        %v1062 = vld [vmem:[#allocation2 + $0x198] sm:$0xff]
        %v1063 = vld [vmem:[#allocation2 + $0x1a0] sm:$0xff]
        %v1064 = vld [vmem:[#allocation2 + $0x1a8] sm:$0xff]
        %v1065 = vld [vmem:[#allocation2 + $0x1b0] sm:$0xff]
        %v1066 = vld [vmem:[#allocation2 + $0x1b8] sm:$0xff]
        %v1067 = vld [vmem:[#allocation2 + $0x1c0] sm:$0xff]
        %v1068 = vld [vmem:[#allocation2 + $0x1c8] sm:$0xff]
        %v1069 = vld [vmem:[#allocation2 + $0x1d0] sm:$0xff]
        %v1070 = vld [vmem:[#allocation2 + $0x1d8] sm:$0xff]
        %v1071 = vld [vmem:[#allocation2 + $0x1e0] sm:$0xff]
        %v1072 = vld [vmem:[#allocation2 + $0x1e8] sm:$0xff]
        %v1073 = vld [vmem:[#allocation2 + $0x1f0] sm:$0xff]
        %v1074 = vld [vmem:[#allocation2 + $0x1f8] sm:$0xff]
        %v1075 = vld [vmem:[%s249] sm:$0x1]
        %v1077 = vperm.slane %v1075, 0
        %v1079 = vadd.f32 %v1011, %v1077
        %v1080 = vadd.f32 %v1012, %v1077
        %v1081 = vadd.f32 %v1013, %v1077
        %v1082 = vadd.f32 %v1014, %v1077
        %v1083 = vadd.f32 %v1015, %v1077
        %v1084 = vadd.f32 %v1016, %v1077
        %v1085 = vadd.f32 %v1017, %v1077
        %v1086 = vadd.f32 %v1018, %v1077
        %v1087 = vadd.f32 %v1019, %v1077
        %v1088 = vadd.f32 %v1020, %v1077
        %v1089 = vadd.f32 %v1021, %v1077
        %v1090 = vadd.f32 %v1022, %v1077
        %v1091 = vadd.f32 %v1023, %v1077
        %v1092 = vadd.f32 %v1024, %v1077
        %v1093 = vadd.f32 %v1025, %v1077
        %v1094 = vadd.f32 %v1026, %v1077
        %v1095 = vadd.f32 %v1027, %v1077
        %v1096 = vadd.f32 %v1028, %v1077
        %v1097 = vadd.f32 %v1029, %v1077
        %v1098 = vadd.f32 %v1030, %v1077
        %v1099 = vadd.f32 %v1031, %v1077
        %v1100 = vadd.f32 %v1032, %v1077
        %v1101 = vadd.f32 %v1033, %v1077
        %v1102 = vadd.f32 %v1034, %v1077
        %v1103 = vadd.f32 %v1035, %v1077
        %v1104 = vadd.f32 %v1036, %v1077
        %v1105 = vadd.f32 %v1037, %v1077
        %v1106 = vadd.f32 %v1038, %v1077
        %v1107 = vadd.f32 %v1039, %v1077
        %v1108 = vadd.f32 %v1040, %v1077
        %v1109 = vadd.f32 %v1041, %v1077
        %v1110 = vadd.f32 %v1042, %v1077
        %v1111 = vadd.f32 %v1043, %v1077
        %v1112 = vadd.f32 %v1044, %v1077
        %v1113 = vadd.f32 %v1045, %v1077
        %v1114 = vadd.f32 %v1046, %v1077
        %v1115 = vadd.f32 %v1047, %v1077
        %v1116 = vadd.f32 %v1048, %v1077
        %v1117 = vadd.f32 %v1049, %v1077
        %v1118 = vadd.f32 %v1050, %v1077
        %v1119 = vadd.f32 %v1051, %v1077
        %v1120 = vadd.f32 %v1052, %v1077
        %v1121 = vadd.f32 %v1053, %v1077
        %v1122 = vadd.f32 %v1054, %v1077
        %v1123 = vadd.f32 %v1055, %v1077
        %v1124 = vadd.f32 %v1056, %v1077
        %v1125 = vadd.f32 %v1057, %v1077
        %v1126 = vadd.f32 %v1058, %v1077
        %v1127 = vadd.f32 %v1059, %v1077
        %v1128 = vadd.f32 %v1060, %v1077
        %v1129 = vadd.f32 %v1061, %v1077
        %v1130 = vadd.f32 %v1062, %v1077
        %v1131 = vadd.f32 %v1063, %v1077
        %v1132 = vadd.f32 %v1064, %v1077
        %v1133 = vadd.f32 %v1065, %v1077
        %v1134 = vadd.f32 %v1066, %v1077
        %v1135 = vadd.f32 %v1067, %v1077
        %v1136 = vadd.f32 %v1068, %v1077
        %v1137 = vadd.f32 %v1069, %v1077
        %v1138 = vadd.f32 %v1070, %v1077
        %v1139 = vadd.f32 %v1071, %v1077
        %v1140 = vadd.f32 %v1072, %v1077
        %v1141 = vadd.f32 %v1073, %v1077
        %v1142 = vadd.f32 %v1074, %v1077
        %v1143 = vmax.f32 %v1079, 0.0
        %v1144 = vmax.f32 %v1080, 0.0
        %v1145 = vmax.f32 %v1081, 0.0
        %v1146 = vmax.f32 %v1082, 0.0
        %v1147 = vmax.f32 %v1083, 0.0
        %v1148 = vmax.f32 %v1084, 0.0
        %v1149 = vmax.f32 %v1085, 0.0
        %v1150 = vmax.f32 %v1086, 0.0
        %v1151 = vmax.f32 %v1087, 0.0
        %v1152 = vmax.f32 %v1088, 0.0
        %v1153 = vmax.f32 %v1089, 0.0
        %v1154 = vmax.f32 %v1090, 0.0
        %v1155 = vmax.f32 %v1091, 0.0
        %v1156 = vmax.f32 %v1092, 0.0
        %v1157 = vmax.f32 %v1093, 0.0
        %v1158 = vmax.f32 %v1094, 0.0
        %v1159 = vmax.f32 %v1095, 0.0
        %v1160 = vmax.f32 %v1096, 0.0
        %v1161 = vmax.f32 %v1097, 0.0
        %v1162 = vmax.f32 %v1098, 0.0
        %v1163 = vmax.f32 %v1099, 0.0
        %v1164 = vmax.f32 %v1100, 0.0
        %v1165 = vmax.f32 %v1101, 0.0
        %v1166 = vmax.f32 %v1102, 0.0
        %v1167 = vmax.f32 %v1103, 0.0
        %v1168 = vmax.f32 %v1104, 0.0
        %v1169 = vmax.f32 %v1105, 0.0
        %v1170 = vmax.f32 %v1106, 0.0
        %v1171 = vmax.f32 %v1107, 0.0
        %v1172 = vmax.f32 %v1108, 0.0
        %v1173 = vmax.f32 %v1109, 0.0
        %v1174 = vmax.f32 %v1110, 0.0
        %v1175 = vmax.f32 %v1111, 0.0
        %v1176 = vmax.f32 %v1112, 0.0
        %v1177 = vmax.f32 %v1113, 0.0
        %v1178 = vmax.f32 %v1114, 0.0
        %v1179 = vmax.f32 %v1115, 0.0
        %v1180 = vmax.f32 %v1116, 0.0
        %v1181 = vmax.f32 %v1117, 0.0
        %v1182 = vmax.f32 %v1118, 0.0
        %v1183 = vmax.f32 %v1119, 0.0
        %v1184 = vmax.f32 %v1120, 0.0
        %v1185 = vmax.f32 %v1121, 0.0
        %v1186 = vmax.f32 %v1122, 0.0
        %v1187 = vmax.f32 %v1123, 0.0
        %v1188 = vmax.f32 %v1124, 0.0
        %v1189 = vmax.f32 %v1125, 0.0
        %v1190 = vmax.f32 %v1126, 0.0
        %v1191 = vmax.f32 %v1127, 0.0
        %v1192 = vmax.f32 %v1128, 0.0
        %v1193 = vmax.f32 %v1129, 0.0
        %v1194 = vmax.f32 %v1130, 0.0
        %v1195 = vmax.f32 %v1131, 0.0
        %v1196 = vmax.f32 %v1132, 0.0
        %v1197 = vmax.f32 %v1133, 0.0
        %v1198 = vmax.f32 %v1134, 0.0
        %v1199 = vmax.f32 %v1135, 0.0
        %v1200 = vmax.f32 %v1136, 0.0
        %v1201 = vmax.f32 %v1137, 0.0
        %v1202 = vmax.f32 %v1138, 0.0
        %v1203 = vmax.f32 %v1139, 0.0
        %v1204 = vmax.f32 %v1140, 0.0
        %v1205 = vmax.f32 %v1141, 0.0
        %v1206 = vmax.f32 %v1142, 0.0
        %v1207 = vpack.c.bf16 %v1143, %v1143
        %v1208 = vpack.c.bf16 %v1144, %v1144
        %v1209 = vpack.c.bf16 %v1145, %v1145
        %v1210 = vpack.c.bf16 %v1146, %v1146
        %v1211 = vpack.c.bf16 %v1147, %v1147
        %v1212 = vpack.c.bf16 %v1148, %v1148
        %v1213 = vpack.c.bf16 %v1149, %v1149
        %v1214 = vpack.c.bf16 %v1150, %v1150
        %v1215 = vpack.c.bf16 %v1151, %v1151
        %v1216 = vpack.c.bf16 %v1152, %v1152
        %v1217 = vpack.c.bf16 %v1153, %v1153
        %v1218 = vpack.c.bf16 %v1154, %v1154
        %v1219 = vpack.c.bf16 %v1155, %v1155
        %v1220 = vpack.c.bf16 %v1156, %v1156
        %v1221 = vpack.c.bf16 %v1157, %v1157
        %v1222 = vpack.c.bf16 %v1158, %v1158
        %v1223 = vpack.c.bf16 %v1159, %v1159
        %v1224 = vpack.c.bf16 %v1160, %v1160
        %v1225 = vpack.c.bf16 %v1161, %v1161
        %v1226 = vpack.c.bf16 %v1162, %v1162
        %v1227 = vpack.c.bf16 %v1163, %v1163
        %v1228 = vpack.c.bf16 %v1164, %v1164
        %v1229 = vpack.c.bf16 %v1165, %v1165
        %v1230 = vpack.c.bf16 %v1166, %v1166
        %v1231 = vpack.c.bf16 %v1167, %v1167
        %v1232 = vpack.c.bf16 %v1168, %v1168
        %v1233 = vpack.c.bf16 %v1169, %v1169
        %v1234 = vpack.c.bf16 %v1170, %v1170
        %v1235 = vpack.c.bf16 %v1171, %v1171
        %v1236 = vpack.c.bf16 %v1172, %v1172
        %v1237 = vpack.c.bf16 %v1173, %v1173
        %v1238 = vpack.c.bf16 %v1174, %v1174
        %v1239 = vpack.c.bf16 %v1175, %v1175
        %v1240 = vpack.c.bf16 %v1176, %v1176
        %v1241 = vpack.c.bf16 %v1177, %v1177
        %v1242 = vpack.c.bf16 %v1178, %v1178
        %v1243 = vpack.c.bf16 %v1179, %v1179
        %v1244 = vpack.c.bf16 %v1180, %v1180
        %v1245 = vpack.c.bf16 %v1181, %v1181
        %v1246 = vpack.c.bf16 %v1182, %v1182
        %v1247 = vpack.c.bf16 %v1183, %v1183
        %v1248 = vpack.c.bf16 %v1184, %v1184
        %v1249 = vpack.c.bf16 %v1185, %v1185
        %v1250 = vpack.c.bf16 %v1186, %v1186
        %v1251 = vpack.c.bf16 %v1187, %v1187
        %v1252 = vpack.c.bf16 %v1188, %v1188
        %v1253 = vpack.c.bf16 %v1189, %v1189
        %v1254 = vpack.c.bf16 %v1190, %v1190
        %v1255 = vpack.c.bf16 %v1191, %v1191
        %v1256 = vpack.c.bf16 %v1192, %v1192
        %v1257 = vpack.c.bf16 %v1193, %v1193
        %v1258 = vpack.c.bf16 %v1194, %v1194
        %v1259 = vpack.c.bf16 %v1195, %v1195
        %v1260 = vpack.c.bf16 %v1196, %v1196
        %v1261 = vpack.c.bf16 %v1197, %v1197
        %v1262 = vpack.c.bf16 %v1198, %v1198
        %v1263 = vpack.c.bf16 %v1199, %v1199
        %v1264 = vpack.c.bf16 %v1200, %v1200
        %v1265 = vpack.c.bf16 %v1201, %v1201
        %v1266 = vpack.c.bf16 %v1202, %v1202
        %v1267 = vpack.c.bf16 %v1203, %v1203
        %v1268 = vpack.c.bf16 %v1204, %v1204
        %v1269 = vpack.c.bf16 %v1205, %v1205
        %v1270 = vpack.c.bf16 %v1206, %v1206
        %1271 = vst [vmem:[%s257] sm:$0xf] %v1207
        %1272 = vst [vmem:[%s257 + $0x4] sm:$0xf] %v1208
        %1273 = vst [vmem:[%s257 + $0x8] sm:$0xf] %v1209
        %1274 = vst [vmem:[%s257 + $0xc] sm:$0xf] %v1210
        %1275 = vst [vmem:[%s257 + $0x10] sm:$0xf] %v1211
        %1276 = vst [vmem:[%s257 + $0x14] sm:$0xf] %v1212
        %1277 = vst [vmem:[%s257 + $0x18] sm:$0xf] %v1213
        %1278 = vst [vmem:[%s257 + $0x1c] sm:$0xf] %v1214
        %1279 = vst [vmem:[%s257 + $0x20] sm:$0xf] %v1215
        %1280 = vst [vmem:[%s257 + $0x24] sm:$0xf] %v1216
        %1281 = vst [vmem:[%s257 + $0x28] sm:$0xf] %v1217
        %1282 = vst [vmem:[%s257 + $0x2c] sm:$0xf] %v1218
        %1283 = vst [vmem:[%s257 + $0x30] sm:$0xf] %v1219
        %1284 = vst [vmem:[%s257 + $0x34] sm:$0xf] %v1220
        %1285 = vst [vmem:[%s257 + $0x38] sm:$0xf] %v1221
        %1286 = vst [vmem:[%s257 + $0x3c] sm:$0xf] %v1222
        %1287 = vst [vmem:[%s257 + $0x40] sm:$0xf] %v1223
        %1288 = vst [vmem:[%s257 + $0x44] sm:$0xf] %v1224
        %1289 = vst [vmem:[%s257 + $0x48] sm:$0xf] %v1225
        %1290 = vst [vmem:[%s257 + $0x4c] sm:$0xf] %v1226
        %1291 = vst [vmem:[%s257 + $0x50] sm:$0xf] %v1227
        %1292 = vst [vmem:[%s257 + $0x54] sm:$0xf] %v1228
        %1293 = vst [vmem:[%s257 + $0x58] sm:$0xf] %v1229
        %1294 = vst [vmem:[%s257 + $0x5c] sm:$0xf] %v1230
        %1295 = vst [vmem:[%s257 + $0x60] sm:$0xf] %v1231
        %1296 = vst [vmem:[%s257 + $0x64] sm:$0xf] %v1232
        %1297 = vst [vmem:[%s257 + $0x68] sm:$0xf] %v1233
        %1298 = vst [vmem:[%s257 + $0x6c] sm:$0xf] %v1234
        %1299 = vst [vmem:[%s257 + $0x70] sm:$0xf] %v1235
        %1300 = vst [vmem:[%s257 + $0x74] sm:$0xf] %v1236
        %1301 = vst [vmem:[%s257 + $0x78] sm:$0xf] %v1237
        %1302 = vst [vmem:[%s257 + $0x7c] sm:$0xf] %v1238
        %1303 = vst [vmem:[%s257 + $0x80] sm:$0xf] %v1239
        %1304 = vst [vmem:[%s257 + $0x84] sm:$0xf] %v1240
        %1305 = vst [vmem:[%s257 + $0x88] sm:$0xf] %v1241
        %1306 = vst [vmem:[%s257 + $0x8c] sm:$0xf] %v1242
        %1307 = vst [vmem:[%s257 + $0x90] sm:$0xf] %v1243
        %1308 = vst [vmem:[%s257 + $0x94] sm:$0xf] %v1244
        %1309 = vst [vmem:[%s257 + $0x98] sm:$0xf] %v1245
        %1310 = vst [vmem:[%s257 + $0x9c] sm:$0xf] %v1246
        %1311 = vst [vmem:[%s257 + $0xa0] sm:$0xf] %v1247
        %1312 = vst [vmem:[%s257 + $0xa4] sm:$0xf] %v1248
        %1313 = vst [vmem:[%s257 + $0xa8] sm:$0xf] %v1249
        %1314 = vst [vmem:[%s257 + $0xac] sm:$0xf] %v1250
        %1315 = vst [vmem:[%s257 + $0xb0] sm:$0xf] %v1251
        %1316 = vst [vmem:[%s257 + $0xb4] sm:$0xf] %v1252
        %1317 = vst [vmem:[%s257 + $0xb8] sm:$0xf] %v1253
        %1318 = vst [vmem:[%s257 + $0xbc] sm:$0xf] %v1254
        %1319 = vst [vmem:[%s257 + $0xc0] sm:$0xf] %v1255
        %1320 = vst [vmem:[%s257 + $0xc4] sm:$0xf] %v1256
        %1321 = vst [vmem:[%s257 + $0xc8] sm:$0xf] %v1257
        %1322 = vst [vmem:[%s257 + $0xcc] sm:$0xf] %v1258
        %1323 = vst [vmem:[%s257 + $0xd0] sm:$0xf] %v1259
        %1324 = vst [vmem:[%s257 + $0xd4] sm:$0xf] %v1260
        %1325 = vst [vmem:[%s257 + $0xd8] sm:$0xf] %v1261
        %1326 = vst [vmem:[%s257 + $0xdc] sm:$0xf] %v1262
        %1327 = vst [vmem:[%s257 + $0xe0] sm:$0xf] %v1263
        %1328 = vst [vmem:[%s257 + $0xe4] sm:$0xf] %v1264
        %1329 = vst [vmem:[%s257 + $0xe8] sm:$0xf] %v1265
        %1330 = vst [vmem:[%s257 + $0xec] sm:$0xf] %v1266
        %1331 = vst [vmem:[%s257 + $0xf0] sm:$0xf] %v1267
        %1332 = vst [vmem:[%s257 + $0xf4] sm:$0xf] %v1268
        %1333 = vst [vmem:[%s257 + $0xf8] sm:$0xf] %v1269
        %1334 = vst [vmem:[%s257 + $0xfc] sm:$0xf] %v1270
      $region40: #{fwd.16} parent=31 // pred_fallthru
        _
      %s1335 = smul.u32 64, %s19
      %p1336 = scmp.lt.s32.totalorder %s1335, 127
      %s1337 = scalar_select %p1336, %s1335, 127
      %p1338 = scmp.lt.s32.totalorder %s20, 0
      %s1339 = scalar_select %p1338, %s20, 0
      %s1340 = sadd.s32 %s1339, %s1337
      %s1341 = smul.addr %s1340, 4
      %s1342 = scalar_lea.vmem %s3, %s1341
      // Predicated region
      $region41: #{fwd.16} parent=31 // pred_check
        %p1343 = pneg %p135
      $region42: #{fwd.16} parent=31 // pred_check_branch
        %1345 = sbr.rel (%p1343) target = $region44
      $region43: #{fwd.16} parent=31 // pred_region
        %s1346 = smul.u32 64, %s19
      $region44: #{fwd.16} parent=31 // pred_fallthru
        _
    $region32: #{fwd.16} parent=5 // pred_fallthru
      _
    %p1347 = scmp.le.s32.totalorder 2, %s9
    // Predicated region
    $region45: #{fwd.16} parent=5 // pred_check
      %p1348 = pneg %p1347
    $region46: #{fwd.16} parent=5 // pred_check_branch
      %1350 = sbr.rel (%p1348) target = $region48
    $region47: #{fwd.16} parent=5 // pred_region
      %s1351 = ssub.s32 %s9, 2
      // Predicated region
      $region49: #{fwd.16} parent=47 // pred_check
        %p1352 = pneg %p141
      $region50: #{fwd.16} parent=47 // pred_check_branch
        %1354 = sbr.rel (%p1352) target = $region52
      $region51: #{fwd.16} parent=47 // pred_region
        %s1355 = smul.u32 64, %s22
        %p1356 = scmp.lt.s32.totalorder %s1355, 127
        %s1357 = scalar_select %p1356, %s1355, 127
        %p1358 = scmp.lt.s32.totalorder %s23, 0
        %s1359 = scalar_select %p1358, %s23, 0
        %s1360 = sadd.s32 %s1359, %s1357
        %s1361 = smul.addr %s1360, 4
        %s1362 = scalar_lea.vmem %s3, %s1361
      $region52: #{fwd.16} parent=47 // pred_fallthru
        _
    $region48: #{fwd.16} parent=5 // pred_fallthru
      _
  $region6: #{fwd.16} parent=0 // loop_footer
    %s13 = sadd.s32 1, %s9
  $region7: #{fwd.16} parent=0 // loop_footer_branch
    %8 = sbr.rel target = $region3
  $region8: #{fwd.16} parent=0 // loop_exit
    _

// kernel: fwd.17
$region0: #{fwd.17}
  #allocation0 [shape = 'u32[]', space=smem, size = 0x4, offset = 0x4, fixed_abs, tag = 'smem constant byte address 0x4 - core index']
  #allocation1 [shape = 'u32[72,128]{1,0:T(1,128)}', space=vmem, size = 0x9000, scoped, tag = 'internal scratch']
  #allocation2 [shape = 'f32[512,128]{1,0:T(8,128)}', space=vmem, size = 0x40000, scoped, tag = 'scratch operand']
  %s0 = inlined_call_operand.vmem [shape: bf16[1024,128], index: 0, kind: input, shape index: {}]
  %s1 = inlined_call_operand.vmem [shape: bf16[128,128], index: 1, kind: input, shape index: {}]
  %s2 = inlined_call_operand.vmem [shape: f32[1,128], index: 2, kind: input, shape index: {}]
  %s3 = inlined_call_operand.vmem [shape: f32[1024,128], index: 3, kind: output, shape index: {}]
  %s4 = sld [smem:[#allocation0]]
  $region53: #{fwd.17} parent=0
    _
  %s6 = ssub.s32 1, %s4
  %s7 = scalar_select 0, %s6, %s4
  loop: start=0, step=1, limit=4
  $region2: #{fwd.17} parent=0 // loop_pre_header
    _
  $region3: #{fwd.17} parent=0 // loop_header
    %s9 = sphi 0, %s13
    %p10 = scmp.ge.s32.totalorder %s9, 4
    %s16 = sphi 0, %s35
    %s17 = sphi 0, %s31
    %s18 = sphi 0, %s27
    %s19 = sphi 0, %s16
    %s20 = sphi 0, %s17
    %s21 = sphi 0, %s18
    %s22 = sphi 0, %s19
    %s23 = sphi 0, %s20
    %s24 = sphi 0, %s21
    %s40 = sphi 0, %s42
    %s43 = sphi 0, %s40
    %s44 = sphi 0, %s43
    %s60 = sphi 0, %s44
    %s68 = sphi 0, %s70
    %s71 = sphi 0, %s68
    %s72 = sphi 0, %s71
    %s88 = sphi 0, %s72
    %s94 = sphi 0, %s96
    %s97 = sphi 0, %s94
    %s98 = sphi 0, %s97
    %s114 = sphi 0, %s98
    %s122 = sphi 0, %s124
    %s125 = sphi 0, %s122
    %s126 = sphi 0, %s125
    %s142 = sphi 0, %s126
  $region4: #{fwd.17} parent=0 // loop_header_branch
    %12 = sbr.rel (%p10) target = $region8
  $region5: #{fwd.17} parent=0 // loop_body
    %s14 = ssub.s32 %s9, 1
    %s15 = ssub.s32 %s9, 2
    %s25 = sadd.s32 1, %s18
    %p26 = scmp.ge.s32.totalorder %s25, 1
    %s27 = scalar_select %p26, 0, %s25
    %s28 = sadd.s32 1, %s17
    %s29 = scalar_select %p26, %s28, %s17
    %p30 = scmp.ge.s32.totalorder %s29, 1
    %s31 = scalar_select %p30, 0, %s29
    %s32 = sadd.s32 1, %s16
    %s33 = scalar_select %p30, %s32, %s16
    %p34 = scmp.ge.s32.totalorder %s33, 2
    %s35 = scalar_select %p34, 0, %s33
    %s36 = ssub.s32 %s16, %s35
    %s37 = ssub.s32 %s18, %s27
    %s38 = sor.u32 %s36, %s37
    %p39 = scmp.eq.s32.totalorder %s38, 0
    %s41 = sadd.s32 %s40, 1
    %s42 = scalar_select %p39, %s40, %s41
    %p45 = pneg %p39
    %p46 = scmp.eq.s32.totalorder %s9, 1
    %p47 = por %p45, %p46
    %p48 = scmp.ne.s32.totalorder %s40, %s43
    %p49 = scmp.eq.s32.totalorder %s9, 0
    %p50 = por %p48, %p49
    %p51 = scmp.ne.s32.totalorder %s40, %s43
    %p52 = scmp.eq.s32.totalorder %s14, 1
    %p53 = por %p51, %p52
    %p54 = scmp.ne.s32.totalorder %s43, %s44
    %p55 = scmp.eq.s32.totalorder %s14, 0
    %p56 = por %p54, %p55
    %p57 = scmp.ne.s32.totalorder %s43, %s44
    %p58 = scmp.eq.s32.totalorder %s15, 1
    %p59 = por %p57, %p58
    %p61 = scmp.ne.s32.totalorder %s44, %s60
    %p62 = scmp.eq.s32.totalorder %s15, 0
    %p63 = por %p61, %p62
    %s64 = ssub.s32 %s18, %s27
    %s65 = ssub.s32 %s17, %s31
    %s66 = sor.u32 %s64, %s65
    %p67 = scmp.eq.s32.totalorder %s66, 0
    %s69 = sadd.s32 %s68, 1
    %s70 = scalar_select %p67, %s68, %s69
    %p73 = pneg %p67
    %p74 = scmp.eq.s32.totalorder %s9, 1
    %p75 = por %p73, %p74
    %p76 = scmp.ne.s32.totalorder %s68, %s71
    %p77 = scmp.eq.s32.totalorder %s9, 0
    %p78 = por %p76, %p77
    %p79 = scmp.ne.s32.totalorder %s68, %s71
    %p80 = scmp.eq.s32.totalorder %s14, 1
    %p81 = por %p79, %p80
    %p82 = scmp.ne.s32.totalorder %s71, %s72
    %p83 = scmp.eq.s32.totalorder %s14, 0
    %p84 = por %p82, %p83
    %p85 = scmp.ne.s32.totalorder %s71, %s72
    %p86 = scmp.eq.s32.totalorder %s15, 1
    %p87 = por %p85, %p86
    %p89 = scmp.ne.s32.totalorder %s72, %s88
    %p90 = scmp.eq.s32.totalorder %s15, 0
    %p91 = por %p89, %p90
    %s92 = ssub.s32 %s17, %s31
    %p93 = scmp.eq.s32.totalorder %s92, 0
    %s95 = sadd.s32 %s94, 1
    %s96 = scalar_select %p93, %s94, %s95
    %p99 = pneg %p93
    %p100 = scmp.eq.s32.totalorder %s9, 1
    %p101 = por %p99, %p100
    %p102 = scmp.ne.s32.totalorder %s94, %s97
    %p103 = scmp.eq.s32.totalorder %s9, 0
    %p104 = por %p102, %p103
    %p105 = scmp.ne.s32.totalorder %s94, %s97
    %p106 = scmp.eq.s32.totalorder %s14, 1
    %p107 = por %p105, %p106
    %p108 = scmp.ne.s32.totalorder %s97, %s98
    %p109 = scmp.eq.s32.totalorder %s14, 0
    %p110 = por %p108, %p109
    %p111 = scmp.ne.s32.totalorder %s97, %s98
    %p112 = scmp.eq.s32.totalorder %s15, 1
    %p113 = por %p111, %p112
    %p115 = scmp.ne.s32.totalorder %s98, %s114
    %p116 = scmp.eq.s32.totalorder %s15, 0
    %p117 = por %p115, %p116
    %s118 = ssub.s32 %s16, %s35
    %s119 = ssub.s32 %s17, %s31
    %s120 = sor.u32 %s118, %s119
    %p121 = scmp.eq.s32.totalorder %s120, 0
    %s123 = sadd.s32 %s122, 1
    %s124 = scalar_select %p121, %s122, %s123
    %p127 = pneg %p121
    %p128 = scmp.eq.s32.totalorder %s9, 1
    %p129 = por %p127, %p128
    %p130 = scmp.ne.s32.totalorder %s122, %s125
    %p131 = scmp.eq.s32.totalorder %s9, 0
    %p132 = por %p130, %p131
    %p133 = scmp.ne.s32.totalorder %s122, %s125
    %p134 = scmp.eq.s32.totalorder %s14, 1
    %p135 = por %p133, %p134
    %p136 = scmp.ne.s32.totalorder %s125, %s126
    %p137 = scmp.eq.s32.totalorder %s14, 0
    %p138 = por %p136, %p137
    %p139 = scmp.ne.s32.totalorder %s125, %s126
    %p140 = scmp.eq.s32.totalorder %s15, 1
    %p141 = por %p139, %p140
    %p143 = scmp.ne.s32.totalorder %s126, %s142
    %p144 = scmp.eq.s32.totalorder %s15, 0
    %p145 = por %p143, %p144
    %p146 = scmp.le.s32.totalorder 1, %s9
    %p147 = scmp.lt.s32.totalorder %s9, 3
    %p148 = pnand %p146, %p147
    %p149 = pneg %p148
    // Predicated region
    $region9: #{fwd.17} parent=5 // pred_check
      _
    $region10: #{fwd.17} parent=5 // pred_check_branch
      %151 = sbr.rel (%p148) target = $region12
    $region11: #{fwd.17} parent=5 // pred_region
      %s152 = ssub.s32 %s9, 1
      // Predicated region
      $region13: #{fwd.17} parent=11 // pred_check
        %p153 = pneg %p84
      $region14: #{fwd.17} parent=11 // pred_check_branch
        %155 = sbr.rel (%p153) target = $region16
      $region15: #{fwd.17} parent=11 // pred_region
        %s156 = smul.u32 16, %s21
        %p157 = scmp.lt.s32.totalorder %s156, 15
        %s158 = scalar_select %p157, %s156, 15
        %p159 = scmp.lt.s32.totalorder %s20, 0
        %s160 = scalar_select %p159, %s20, 0
        %s161 = sadd.s32 %s160, %s158
        %s162 = smul.addr %s161, 4
        %s163 = scalar_lea.vmem %s1, %s162
        %s164 = smul.u32 16, %s21
      $region16: #{fwd.17} parent=11 // pred_fallthru
        _
      // Predicated region
      $region17: #{fwd.17} parent=11 // pred_check
        %p165 = pneg %p110
      $region18: #{fwd.17} parent=11 // pred_check_branch
        %167 = sbr.rel (%p165) target = $region20
      $region19: #{fwd.17} parent=11 // pred_region
        %p168 = scmp.lt.s32.totalorder %s20, 0
        %s169 = scalar_select %p168, %s20, 0
        %s170 = scalar_lea.vmem %s2, %s169
      $region20: #{fwd.17} parent=11 // pred_fallthru
        _
    $region12: #{fwd.17} parent=5 // pred_fallthru
      _
    %p171 = scmp.lt.s32.totalorder %s9, 2
    // Predicated region
    $region21: #{fwd.17} parent=5 // pred_check
      %p172 = pneg %p171
    $region22: #{fwd.17} parent=5 // pred_check_branch
      %174 = sbr.rel (%p172) target = $region24
    $region23: #{fwd.17} parent=5 // pred_region
      // Predicated region
      $region25: #{fwd.17} parent=23 // pred_check
        %p175 = pneg %p50
      $region26: #{fwd.17} parent=23 // pred_check_branch
        %177 = sbr.rel (%p175) target = $region28
      $region27: #{fwd.17} parent=23 // pred_region
        %s178 = smul.u32 64, %s16
        %p179 = scmp.lt.s32.totalorder %s178, 127
        %s180 = scalar_select %p179, %s178, 127
        %p181 = scmp.lt.s32.totalorder %s18, 0
        %s182 = scalar_select %p181, %s18, 0
        %s183 = sadd.s32 %s182, %s180
        %s184 = smul.addr %s183, 4
        %s185 = scalar_lea.vmem %s0, %s184
        %s186 = smul.u32 64, %s16
      $region28: #{fwd.17} parent=23 // pred_fallthru
        _
    $region24: #{fwd.17} parent=5 // pred_fallthru
      _
    %p187 = scmp.le.s32.totalorder 1, %s9
    %p188 = scmp.lt.s32.totalorder %s9, 3
    %p189 = pnand %p187, %p188
    %p190 = pneg %p189
    // Predicated region
    $region29: #{fwd.17} parent=5 // pred_check
      _
    $region30: #{fwd.17} parent=5 // pred_check_branch
      %192 = sbr.rel (%p189) target = $region32
    $region31: #{fwd.17} parent=5 // pred_region
      %s193 = ssub.s32 %s9, 1
      %s194 = smul.u32 64, %s19
      %p195 = scmp.lt.s32.totalorder %s194, 127
      %s196 = scalar_select %p195, %s194, 127
      %p197 = scmp.lt.s32.totalorder %s21, 0
      %s198 = scalar_select %p197, %s21, 0
      %s199 = sadd.s32 %s198, %s196
      %s200 = smul.addr %s199, 4
      %s201 = scalar_lea.vmem %s0, %s200
      %p202 = pneg %p56
      %p203 = pneg %p53
      %s204 = smul.u32 16, %s21
      %p205 = scmp.lt.s32.totalorder %s204, 15
      %s206 = scalar_select %p205, %s204, 15
      %p207 = scmp.lt.s32.totalorder %s20, 0
      %s208 = scalar_select %p207, %s20, 0
      %s209 = sadd.s32 %s208, %s206
      %s210 = smul.addr %s209, 4
      %s211 = scalar_lea.vmem %s1, %s210
      %p212 = pneg %p84
      %p213 = pneg %p81
      %p214 = scmp.lt.s32.totalorder %s20, 0
      %s215 = scalar_select %p214, %s20, 0
      %s216 = scalar_lea.vmem %s2, %s215
      %p217 = pneg %p110
      %p218 = pneg %p107
      %p219 = pneg %p138
      %p220 = pneg %p135
      %s221 = smul.u32 64, %s19
      %p222 = scmp.lt.s32.totalorder %s221, 127
      %s223 = scalar_select %p222, %s221, 127
      %p224 = scmp.lt.s32.totalorder %s20, 0
      %s225 = scalar_select %p224, %s20, 0
      %s226 = sadd.s32 %s225, %s223
      %s227 = smul.addr %s226, 8
      %s228 = scalar_lea.vmem %s3, %s227
      %s229 = smul.u32 64, %s19
      %p230 = scmp.lt.s32.totalorder %s229, 127
      %s231 = scalar_select %p230, %s229, 127
      %p232 = scmp.lt.s32.totalorder %s21, 0
      %s233 = scalar_select %p232, %s21, 0
      %s234 = sadd.s32 %s233, %s231
      %s235 = smul.addr %s234, 4
      %s236 = scalar_lea.vmem %s0, %s235
      %s237 = smul.u32 64, %s19
      %s238 = smul.u32 16, %s21
      %p239 = scmp.lt.s32.totalorder %s238, 15
      %s240 = scalar_select %p239, %s238, 15
      %p241 = scmp.lt.s32.totalorder %s20, 0
      %s242 = scalar_select %p241, %s20, 0
      %s243 = sadd.s32 %s242, %s240
      %s244 = smul.addr %s243, 4
      %s245 = scalar_lea.vmem %s1, %s244
      %s246 = smul.u32 16, %s21
      %p247 = scmp.lt.s32.totalorder %s20, 0
      %s248 = scalar_select %p247, %s20, 0
      %s249 = scalar_lea.vmem %s2, %s248
      %s250 = smul.u32 64, %s19
      %p251 = scmp.lt.s32.totalorder %s250, 127
      %s252 = scalar_select %p251, %s250, 127
      %p253 = scmp.lt.s32.totalorder %s20, 0
      %s254 = scalar_select %p253, %s20, 0
      %s255 = sadd.s32 %s254, %s252
      %s256 = smul.addr %s255, 8
      %s257 = scalar_lea.vmem %s3, %s256
      %s258 = smul.u32 64, %s19
      %p259 = scmp.eq.s32.totalorder %s21, 0
      // Predicated region
      $region33: #{fwd.17} parent=31 // pred_check
        %p260 = pneg %p259
      $region34: #{fwd.17} parent=31 // pred_check_branch
        %262 = sbr.rel (%p260) target = $region36
      $region35: #{fwd.17} parent=31 // pred_region
        %263 = vst [vmem:[#allocation2] sm:$0xff] 0.0
        %264 = vst [vmem:[#allocation2 + $0x8] sm:$0xff] 0.0
        %265 = vst [vmem:[#allocation2 + $0x10] sm:$0xff] 0.0
        %266 = vst [vmem:[#allocation2 + $0x18] sm:$0xff] 0.0
        %267 = vst [vmem:[#allocation2 + $0x20] sm:$0xff] 0.0
        %268 = vst [vmem:[#allocation2 + $0x28] sm:$0xff] 0.0
        %269 = vst [vmem:[#allocation2 + $0x30] sm:$0xff] 0.0
        %270 = vst [vmem:[#allocation2 + $0x38] sm:$0xff] 0.0
        %271 = vst [vmem:[#allocation2 + $0x40] sm:$0xff] 0.0
        %272 = vst [vmem:[#allocation2 + $0x48] sm:$0xff] 0.0
        %273 = vst [vmem:[#allocation2 + $0x50] sm:$0xff] 0.0
        %274 = vst [vmem:[#allocation2 + $0x58] sm:$0xff] 0.0
        %275 = vst [vmem:[#allocation2 + $0x60] sm:$0xff] 0.0
        %276 = vst [vmem:[#allocation2 + $0x68] sm:$0xff] 0.0
        %277 = vst [vmem:[#allocation2 + $0x70] sm:$0xff] 0.0
        %278 = vst [vmem:[#allocation2 + $0x78] sm:$0xff] 0.0
        %279 = vst [vmem:[#allocation2 + $0x80] sm:$0xff] 0.0
        %280 = vst [vmem:[#allocation2 + $0x88] sm:$0xff] 0.0
        %281 = vst [vmem:[#allocation2 + $0x90] sm:$0xff] 0.0
        %282 = vst [vmem:[#allocation2 + $0x98] sm:$0xff] 0.0
        %283 = vst [vmem:[#allocation2 + $0xa0] sm:$0xff] 0.0
        %284 = vst [vmem:[#allocation2 + $0xa8] sm:$0xff] 0.0
        %285 = vst [vmem:[#allocation2 + $0xb0] sm:$0xff] 0.0
        %286 = vst [vmem:[#allocation2 + $0xb8] sm:$0xff] 0.0
        %287 = vst [vmem:[#allocation2 + $0xc0] sm:$0xff] 0.0
        %288 = vst [vmem:[#allocation2 + $0xc8] sm:$0xff] 0.0
        %289 = vst [vmem:[#allocation2 + $0xd0] sm:$0xff] 0.0
        %290 = vst [vmem:[#allocation2 + $0xd8] sm:$0xff] 0.0
        %291 = vst [vmem:[#allocation2 + $0xe0] sm:$0xff] 0.0
        %292 = vst [vmem:[#allocation2 + $0xe8] sm:$0xff] 0.0
        %293 = vst [vmem:[#allocation2 + $0xf0] sm:$0xff] 0.0
        %294 = vst [vmem:[#allocation2 + $0xf8] sm:$0xff] 0.0
        %295 = vst [vmem:[#allocation2 + $0x100] sm:$0xff] 0.0
        %296 = vst [vmem:[#allocation2 + $0x108] sm:$0xff] 0.0
        %297 = vst [vmem:[#allocation2 + $0x110] sm:$0xff] 0.0
        %298 = vst [vmem:[#allocation2 + $0x118] sm:$0xff] 0.0
        %299 = vst [vmem:[#allocation2 + $0x120] sm:$0xff] 0.0
        %300 = vst [vmem:[#allocation2 + $0x128] sm:$0xff] 0.0
        %301 = vst [vmem:[#allocation2 + $0x130] sm:$0xff] 0.0
        %302 = vst [vmem:[#allocation2 + $0x138] sm:$0xff] 0.0
        %303 = vst [vmem:[#allocation2 + $0x140] sm:$0xff] 0.0
        %304 = vst [vmem:[#allocation2 + $0x148] sm:$0xff] 0.0
        %305 = vst [vmem:[#allocation2 + $0x150] sm:$0xff] 0.0
        %306 = vst [vmem:[#allocation2 + $0x158] sm:$0xff] 0.0
        %307 = vst [vmem:[#allocation2 + $0x160] sm:$0xff] 0.0
        %308 = vst [vmem:[#allocation2 + $0x168] sm:$0xff] 0.0
        %309 = vst [vmem:[#allocation2 + $0x170] sm:$0xff] 0.0
        %310 = vst [vmem:[#allocation2 + $0x178] sm:$0xff] 0.0
        %311 = vst [vmem:[#allocation2 + $0x180] sm:$0xff] 0.0
        %312 = vst [vmem:[#allocation2 + $0x188] sm:$0xff] 0.0
        %313 = vst [vmem:[#allocation2 + $0x190] sm:$0xff] 0.0
        %314 = vst [vmem:[#allocation2 + $0x198] sm:$0xff] 0.0
        %315 = vst [vmem:[#allocation2 + $0x1a0] sm:$0xff] 0.0
        %316 = vst [vmem:[#allocation2 + $0x1a8] sm:$0xff] 0.0
        %317 = vst [vmem:[#allocation2 + $0x1b0] sm:$0xff] 0.0
        %318 = vst [vmem:[#allocation2 + $0x1b8] sm:$0xff] 0.0
        %319 = vst [vmem:[#allocation2 + $0x1c0] sm:$0xff] 0.0
        %320 = vst [vmem:[#allocation2 + $0x1c8] sm:$0xff] 0.0
        %321 = vst [vmem:[#allocation2 + $0x1d0] sm:$0xff] 0.0
        %322 = vst [vmem:[#allocation2 + $0x1d8] sm:$0xff] 0.0
        %323 = vst [vmem:[#allocation2 + $0x1e0] sm:$0xff] 0.0
        %324 = vst [vmem:[#allocation2 + $0x1e8] sm:$0xff] 0.0
        %325 = vst [vmem:[#allocation2 + $0x1f0] sm:$0xff] 0.0
        %326 = vst [vmem:[#allocation2 + $0x1f8] sm:$0xff] 0.0
      $region36: #{fwd.17} parent=31 // pred_fallthru
        _
      %v327 = vld [vmem:[#allocation2] sm:$0xff]
      %v328 = vld [vmem:[#allocation2 + $0x8] sm:$0xff]
      %v329 = vld [vmem:[#allocation2 + $0x10] sm:$0xff]
      %v330 = vld [vmem:[#allocation2 + $0x18] sm:$0xff]
      %v331 = vld [vmem:[#allocation2 + $0x20] sm:$0xff]
      %v332 = vld [vmem:[#allocation2 + $0x28] sm:$0xff]
      %v333 = vld [vmem:[#allocation2 + $0x30] sm:$0xff]
      %v334 = vld [vmem:[#allocation2 + $0x38] sm:$0xff]
      %v335 = vld [vmem:[#allocation2 + $0x40] sm:$0xff]
      %v336 = vld [vmem:[#allocation2 + $0x48] sm:$0xff]
      %v337 = vld [vmem:[#allocation2 + $0x50] sm:$0xff]
      %v338 = vld [vmem:[#allocation2 + $0x58] sm:$0xff]
      %v339 = vld [vmem:[#allocation2 + $0x60] sm:$0xff]
      %v340 = vld [vmem:[#allocation2 + $0x68] sm:$0xff]
      %v341 = vld [vmem:[#allocation2 + $0x70] sm:$0xff]
      %v342 = vld [vmem:[#allocation2 + $0x78] sm:$0xff]
      %v343 = vld [vmem:[#allocation2 + $0x80] sm:$0xff]
      %v344 = vld [vmem:[#allocation2 + $0x88] sm:$0xff]
      %v345 = vld [vmem:[#allocation2 + $0x90] sm:$0xff]
      %v346 = vld [vmem:[#allocation2 + $0x98] sm:$0xff]
      %v347 = vld [vmem:[#allocation2 + $0xa0] sm:$0xff]
      %v348 = vld [vmem:[#allocation2 + $0xa8] sm:$0xff]
      %v349 = vld [vmem:[#allocation2 + $0xb0] sm:$0xff]
      %v350 = vld [vmem:[#allocation2 + $0xb8] sm:$0xff]
      %v351 = vld [vmem:[#allocation2 + $0xc0] sm:$0xff]
      %v352 = vld [vmem:[#allocation2 + $0xc8] sm:$0xff]
      %v353 = vld [vmem:[#allocation2 + $0xd0] sm:$0xff]
      %v354 = vld [vmem:[#allocation2 + $0xd8] sm:$0xff]
      %v355 = vld [vmem:[#allocation2 + $0xe0] sm:$0xff]
      %v356 = vld [vmem:[#allocation2 + $0xe8] sm:$0xff]
      %v357 = vld [vmem:[#allocation2 + $0xf0] sm:$0xff]
      %v358 = vld [vmem:[#allocation2 + $0xf8] sm:$0xff]
      %v359 = vld [vmem:[#allocation2 + $0x100] sm:$0xff]
      %v360 = vld [vmem:[#allocation2 + $0x108] sm:$0xff]
      %v361 = vld [vmem:[#allocation2 + $0x110] sm:$0xff]
      %v362 = vld [vmem:[#allocation2 + $0x118] sm:$0xff]
      %v363 = vld [vmem:[#allocation2 + $0x120] sm:$0xff]
      %v364 = vld [vmem:[#allocation2 + $0x128] sm:$0xff]
      %v365 = vld [vmem:[#allocation2 + $0x130] sm:$0xff]
      %v366 = vld [vmem:[#allocation2 + $0x138] sm:$0xff]
      %v367 = vld [vmem:[#allocation2 + $0x140] sm:$0xff]
      %v368 = vld [vmem:[#allocation2 + $0x148] sm:$0xff]
      %v369 = vld [vmem:[#allocation2 + $0x150] sm:$0xff]
      %v370 = vld [vmem:[#allocation2 + $0x158] sm:$0xff]
      %v371 = vld [vmem:[#allocation2 + $0x160] sm:$0xff]
      %v372 = vld [vmem:[#allocation2 + $0x168] sm:$0xff]
      %v373 = vld [vmem:[#allocation2 + $0x170] sm:$0xff]
      %v374 = vld [vmem:[#allocation2 + $0x178] sm:$0xff]
      %v375 = vld [vmem:[#allocation2 + $0x180] sm:$0xff]
      %v376 = vld [vmem:[#allocation2 + $0x188] sm:$0xff]
      %v377 = vld [vmem:[#allocation2 + $0x190] sm:$0xff]
      %v378 = vld [vmem:[#allocation2 + $0x198] sm:$0xff]
      %v379 = vld [vmem:[#allocation2 + $0x1a0] sm:$0xff]
      %v380 = vld [vmem:[#allocation2 + $0x1a8] sm:$0xff]
      %v381 = vld [vmem:[#allocation2 + $0x1b0] sm:$0xff]
      %v382 = vld [vmem:[#allocation2 + $0x1b8] sm:$0xff]
      %v383 = vld [vmem:[#allocation2 + $0x1c0] sm:$0xff]
      %v384 = vld [vmem:[#allocation2 + $0x1c8] sm:$0xff]
      %v385 = vld [vmem:[#allocation2 + $0x1d0] sm:$0xff]
      %v386 = vld [vmem:[#allocation2 + $0x1d8] sm:$0xff]
      %v387 = vld [vmem:[#allocation2 + $0x1e0] sm:$0xff]
      %v388 = vld [vmem:[#allocation2 + $0x1e8] sm:$0xff]
      %v389 = vld [vmem:[#allocation2 + $0x1f0] sm:$0xff]
      %v390 = vld [vmem:[#allocation2 + $0x1f8] sm:$0xff]
      %v391 = vld [vmem:[%s236] sm:$0xf]
      %v392 = vld [vmem:[%s236 + $0x4] sm:$0xf]
      %v393 = vld [vmem:[%s236 + $0x8] sm:$0xf]
      %v394 = vld [vmem:[%s236 + $0xc] sm:$0xf]
      %v395 = vld [vmem:[%s236 + $0x10] sm:$0xf]
      %v396 = vld [vmem:[%s236 + $0x14] sm:$0xf]
      %v397 = vld [vmem:[%s236 + $0x18] sm:$0xf]
      %v398 = vld [vmem:[%s236 + $0x1c] sm:$0xf]
      %v399 = vld [vmem:[%s236 + $0x20] sm:$0xf]
      %v400 = vld [vmem:[%s236 + $0x24] sm:$0xf]
      %v401 = vld [vmem:[%s236 + $0x28] sm:$0xf]
      %v402 = vld [vmem:[%s236 + $0x2c] sm:$0xf]
      %v403 = vld [vmem:[%s236 + $0x30] sm:$0xf]
      %v404 = vld [vmem:[%s236 + $0x34] sm:$0xf]
      %v405 = vld [vmem:[%s236 + $0x38] sm:$0xf]
      %v406 = vld [vmem:[%s236 + $0x3c] sm:$0xf]
      %v407 = vld [vmem:[%s236 + $0x40] sm:$0xf]
      %v408 = vld [vmem:[%s236 + $0x44] sm:$0xf]
      %v409 = vld [vmem:[%s236 + $0x48] sm:$0xf]
      %v410 = vld [vmem:[%s236 + $0x4c] sm:$0xf]
      %v411 = vld [vmem:[%s236 + $0x50] sm:$0xf]
      %v412 = vld [vmem:[%s236 + $0x54] sm:$0xf]
      %v413 = vld [vmem:[%s236 + $0x58] sm:$0xf]
      %v414 = vld [vmem:[%s236 + $0x5c] sm:$0xf]
      %v415 = vld [vmem:[%s236 + $0x60] sm:$0xf]
      %v416 = vld [vmem:[%s236 + $0x64] sm:$0xf]
      %v417 = vld [vmem:[%s236 + $0x68] sm:$0xf]
      %v418 = vld [vmem:[%s236 + $0x6c] sm:$0xf]
      %v419 = vld [vmem:[%s236 + $0x70] sm:$0xf]
      %v420 = vld [vmem:[%s236 + $0x74] sm:$0xf]
      %v421 = vld [vmem:[%s236 + $0x78] sm:$0xf]
      %v422 = vld [vmem:[%s236 + $0x7c] sm:$0xf]
      %v423 = vld [vmem:[%s236 + $0x80] sm:$0xf]
      %v424 = vld [vmem:[%s236 + $0x84] sm:$0xf]
      %v425 = vld [vmem:[%s236 + $0x88] sm:$0xf]
      %v426 = vld [vmem:[%s236 + $0x8c] sm:$0xf]
      %v427 = vld [vmem:[%s236 + $0x90] sm:$0xf]
      %v428 = vld [vmem:[%s236 + $0x94] sm:$0xf]
      %v429 = vld [vmem:[%s236 + $0x98] sm:$0xf]
      %v430 = vld [vmem:[%s236 + $0x9c] sm:$0xf]
      %v431 = vld [vmem:[%s236 + $0xa0] sm:$0xf]
      %v432 = vld [vmem:[%s236 + $0xa4] sm:$0xf]
      %v433 = vld [vmem:[%s236 + $0xa8] sm:$0xf]
      %v434 = vld [vmem:[%s236 + $0xac] sm:$0xf]
      %v435 = vld [vmem:[%s236 + $0xb0] sm:$0xf]
      %v436 = vld [vmem:[%s236 + $0xb4] sm:$0xf]
      %v437 = vld [vmem:[%s236 + $0xb8] sm:$0xf]
      %v438 = vld [vmem:[%s236 + $0xbc] sm:$0xf]
      %v439 = vld [vmem:[%s236 + $0xc0] sm:$0xf]
      %v440 = vld [vmem:[%s236 + $0xc4] sm:$0xf]
      %v441 = vld [vmem:[%s236 + $0xc8] sm:$0xf]
      %v442 = vld [vmem:[%s236 + $0xcc] sm:$0xf]
      %v443 = vld [vmem:[%s236 + $0xd0] sm:$0xf]
      %v444 = vld [vmem:[%s236 + $0xd4] sm:$0xf]
      %v445 = vld [vmem:[%s236 + $0xd8] sm:$0xf]
      %v446 = vld [vmem:[%s236 + $0xdc] sm:$0xf]
      %v447 = vld [vmem:[%s236 + $0xe0] sm:$0xf]
      %v448 = vld [vmem:[%s236 + $0xe4] sm:$0xf]
      %v449 = vld [vmem:[%s236 + $0xe8] sm:$0xf]
      %v450 = vld [vmem:[%s236 + $0xec] sm:$0xf]
      %v451 = vld [vmem:[%s236 + $0xf0] sm:$0xf]
      %v452 = vld [vmem:[%s236 + $0xf4] sm:$0xf]
      %v453 = vld [vmem:[%s236 + $0xf8] sm:$0xf]
      %v454 = vld [vmem:[%s236 + $0xfc] sm:$0xf]
      %v455 = vld [vmem:[%s245] sm:$0xf]
      %v456 = vld [vmem:[%s245 + $0x4] sm:$0xf]
      %v457 = vld [vmem:[%s245 + $0x8] sm:$0xf]
      %v458 = vld [vmem:[%s245 + $0xc] sm:$0xf]
      %v459 = vld [vmem:[%s245 + $0x10] sm:$0xf]
      %v460 = vld [vmem:[%s245 + $0x14] sm:$0xf]
      %v461 = vld [vmem:[%s245 + $0x18] sm:$0xf]
      %v462 = vld [vmem:[%s245 + $0x1c] sm:$0xf]
      %v463 = vld [vmem:[%s245 + $0x20] sm:$0xf]
      %v464 = vld [vmem:[%s245 + $0x24] sm:$0xf]
      %v465 = vld [vmem:[%s245 + $0x28] sm:$0xf]
      %v466 = vld [vmem:[%s245 + $0x2c] sm:$0xf]
      %v467 = vld [vmem:[%s245 + $0x30] sm:$0xf]
      %v468 = vld [vmem:[%s245 + $0x34] sm:$0xf]
      %v469 = vld [vmem:[%s245 + $0x38] sm:$0xf]
      %v470 = vld [vmem:[%s245 + $0x3c] sm:$0xf]
      %v535 = vunpack.c.l.b16 %v391
      %v536 = vunpack.c.l.b16 %v392
      %v537 = vunpack.c.l.b16 %v393
      %v538 = vunpack.c.l.b16 %v394
      %v539 = vunpack.c.l.b16 %v395
      %v540 = vunpack.c.l.b16 %v396
      %v541 = vunpack.c.l.b16 %v397
      %v542 = vunpack.c.l.b16 %v398
      %v543 = vunpack.c.l.b16 %v399
      %v544 = vunpack.c.l.b16 %v400
      %v545 = vunpack.c.l.b16 %v401
      %v546 = vunpack.c.l.b16 %v402
      %v547 = vunpack.c.l.b16 %v403
      %v548 = vunpack.c.l.b16 %v404
      %v549 = vunpack.c.l.b16 %v405
      %v550 = vunpack.c.l.b16 %v406
      %v551 = vunpack.c.l.b16 %v407
      %v552 = vunpack.c.l.b16 %v408
      %v553 = vunpack.c.l.b16 %v409
      %v554 = vunpack.c.l.b16 %v410
      %v555 = vunpack.c.l.b16 %v411
      %v556 = vunpack.c.l.b16 %v412
      %v557 = vunpack.c.l.b16 %v413
      %v558 = vunpack.c.l.b16 %v414
      %v559 = vunpack.c.l.b16 %v415
      %v560 = vunpack.c.l.b16 %v416
      %v561 = vunpack.c.l.b16 %v417
      %v562 = vunpack.c.l.b16 %v418
      %v563 = vunpack.c.l.b16 %v419
      %v564 = vunpack.c.l.b16 %v420
      %v565 = vunpack.c.l.b16 %v421
      %v566 = vunpack.c.l.b16 %v422
      %v567 = vunpack.c.l.b16 %v423
      %v568 = vunpack.c.l.b16 %v424
      %v569 = vunpack.c.l.b16 %v425
      %v570 = vunpack.c.l.b16 %v426
      %v571 = vunpack.c.l.b16 %v427
      %v572 = vunpack.c.l.b16 %v428
      %v573 = vunpack.c.l.b16 %v429
      %v574 = vunpack.c.l.b16 %v430
      %v575 = vunpack.c.l.b16 %v431
      %v576 = vunpack.c.l.b16 %v432
      %v577 = vunpack.c.l.b16 %v433
      %v578 = vunpack.c.l.b16 %v434
      %v579 = vunpack.c.l.b16 %v435
      %v580 = vunpack.c.l.b16 %v436
      %v581 = vunpack.c.l.b16 %v437
      %v582 = vunpack.c.l.b16 %v438
      %v583 = vunpack.c.l.b16 %v439
      %v584 = vunpack.c.l.b16 %v440
      %v585 = vunpack.c.l.b16 %v441
      %v586 = vunpack.c.l.b16 %v442
      %v587 = vunpack.c.l.b16 %v443
      %v588 = vunpack.c.l.b16 %v444
      %v589 = vunpack.c.l.b16 %v445
      %v590 = vunpack.c.l.b16 %v446
      %v591 = vunpack.c.l.b16 %v447
      %v592 = vunpack.c.l.b16 %v448
      %v593 = vunpack.c.l.b16 %v449
      %v594 = vunpack.c.l.b16 %v450
      %v595 = vunpack.c.l.b16 %v451
      %v596 = vunpack.c.l.b16 %v452
      %v597 = vunpack.c.l.b16 %v453
      %v598 = vunpack.c.l.b16 %v454
      %v599 = vpack.c.b16 %v536, %v535
      %v600 = vpack.c.b16 %v538, %v537
      %v601 = vpack.c.b16 %v540, %v539
      %v602 = vpack.c.b16 %v542, %v541
      %v603 = vpack.c.b16 %v544, %v543
      %v604 = vpack.c.b16 %v546, %v545
      %v605 = vpack.c.b16 %v548, %v547
      %v606 = vpack.c.b16 %v550, %v549
      %v607 = vpack.c.b16 %v552, %v551
      %v608 = vpack.c.b16 %v554, %v553
      %v609 = vpack.c.b16 %v556, %v555
      %v610 = vpack.c.b16 %v558, %v557
      %v611 = vpack.c.b16 %v560, %v559
      %v612 = vpack.c.b16 %v562, %v561
      %v613 = vpack.c.b16 %v564, %v563
      %v614 = vpack.c.b16 %v566, %v565
      %v615 = vpack.c.b16 %v568, %v567
      %v616 = vpack.c.b16 %v570, %v569
      %v617 = vpack.c.b16 %v572, %v571
      %v618 = vpack.c.b16 %v574, %v573
      %v619 = vpack.c.b16 %v576, %v575
      %v620 = vpack.c.b16 %v578, %v577
      %v621 = vpack.c.b16 %v580, %v579
      %v622 = vpack.c.b16 %v582, %v581
      %v623 = vpack.c.b16 %v584, %v583
      %v624 = vpack.c.b16 %v586, %v585
      %v625 = vpack.c.b16 %v588, %v587
      %v626 = vpack.c.b16 %v590, %v589
      %v627 = vpack.c.b16 %v592, %v591
      %v628 = vpack.c.b16 %v594, %v593
      %v629 = vpack.c.b16 %v596, %v595
      %v630 = vpack.c.b16 %v598, %v597
      %v679 = vunpack.c.l.b16 %v455
      %v680 = vunpack.c.l.b16 %v456
      %v681 = vunpack.c.l.b16 %v457
      %v682 = vunpack.c.l.b16 %v458
      %v683 = vunpack.c.l.b16 %v459
      %v684 = vunpack.c.l.b16 %v460
      %v685 = vunpack.c.l.b16 %v461
      %v686 = vunpack.c.l.b16 %v462
      %v687 = vunpack.c.l.b16 %v463
      %v688 = vunpack.c.l.b16 %v464
      %v689 = vunpack.c.l.b16 %v465
      %v690 = vunpack.c.l.b16 %v466
      %v691 = vunpack.c.l.b16 %v467
      %v692 = vunpack.c.l.b16 %v468
      %v693 = vunpack.c.l.b16 %v469
      %v694 = vunpack.c.l.b16 %v470
      %v695 = vpack.c.b16 %v680, %v679
      %v696 = vpack.c.b16 %v682, %v681
      %v697 = vpack.c.b16 %v684, %v683
      %v698 = vpack.c.b16 %v686, %v685
      %v699 = vpack.c.b16 %v688, %v687
      %v700 = vpack.c.b16 %v690, %v689
      %v701 = vpack.c.b16 %v692, %v691
      %v702 = vpack.c.b16 %v694, %v693
      %711 = vmatpush.bf16.msra.mxu0 %v702
      %712 = vmatpush.bf16.msra.mxu0 %v701
      %713 = vmatpush.bf16.msra.mxu0 %v700
      %714 = vmatpush.bf16.msra.mxu0 %v699
      %715 = vmatpush.bf16.msra.mxu0 %v698
      %716 = vmatpush.bf16.msra.mxu0 %v697
      %717 = vmatpush.bf16.msra.mxu0 %v696
      %718 = vmatpush.bf16.msra.mxu0 %v695
      %719 = vmatmul.bf16.gmra.mxu0 %v599
      %v720 = vpop.f32.mrf.mxu0
      %v721 = vadd.f32 0.0, %v720
      %v722 = vpop.f32.mrf.mxu0
      %v723 = vadd.f32 0.0, %v722
      %724 = vmatmul.bf16.gmra.mxu0 %v600
      %v725 = vpop.f32.mrf.mxu0
      %v726 = vadd.f32 0.0, %v725
      %v727 = vpop.f32.mrf.mxu0
      %v728 = vadd.f32 0.0, %v727
      %729 = vmatmul.bf16.gmra.mxu0 %v601
      %v730 = vpop.f32.mrf.mxu0
      %v731 = vadd.f32 0.0, %v730
      %v732 = vpop.f32.mrf.mxu0
      %v733 = vadd.f32 0.0, %v732
      %734 = vmatmul.bf16.gmra.mxu0 %v602
      %v735 = vpop.f32.mrf.mxu0
      %v736 = vadd.f32 0.0, %v735
      %v737 = vpop.f32.mrf.mxu0
      %v738 = vadd.f32 0.0, %v737
      %739 = vmatmul.bf16.gmra.mxu0 %v603
      %v740 = vpop.f32.mrf.mxu0
      %v741 = vadd.f32 0.0, %v740
      %v742 = vpop.f32.mrf.mxu0
      %v743 = vadd.f32 0.0, %v742
      %744 = vmatmul.bf16.gmra.mxu0 %v604
      %v745 = vpop.f32.mrf.mxu0
      %v746 = vadd.f32 0.0, %v745
      %v747 = vpop.f32.mrf.mxu0
      %v748 = vadd.f32 0.0, %v747
      %749 = vmatmul.bf16.gmra.mxu0 %v605
      %v750 = vpop.f32.mrf.mxu0
      %v751 = vadd.f32 0.0, %v750
      %v752 = vpop.f32.mrf.mxu0
      %v753 = vadd.f32 0.0, %v752
      %754 = vmatmul.bf16.gmra.mxu0 %v606
      %v755 = vpop.f32.mrf.mxu0
      %v756 = vadd.f32 0.0, %v755
      %v757 = vpop.f32.mrf.mxu0
      %v758 = vadd.f32 0.0, %v757
      %759 = vmatmul.bf16.gmra.mxu0 %v607
      %v760 = vpop.f32.mrf.mxu0
      %v761 = vadd.f32 0.0, %v760
      %v762 = vpop.f32.mrf.mxu0
      %v763 = vadd.f32 0.0, %v762
      %764 = vmatmul.bf16.gmra.mxu0 %v608
      %v765 = vpop.f32.mrf.mxu0
      %v766 = vadd.f32 0.0, %v765
      %v767 = vpop.f32.mrf.mxu0
      %v768 = vadd.f32 0.0, %v767
      %769 = vmatmul.bf16.gmra.mxu0 %v609
      %v770 = vpop.f32.mrf.mxu0
      %v771 = vadd.f32 0.0, %v770
      %v772 = vpop.f32.mrf.mxu0
      %v773 = vadd.f32 0.0, %v772
      %774 = vmatmul.bf16.gmra.mxu0 %v610
      %v775 = vpop.f32.mrf.mxu0
      %v776 = vadd.f32 0.0, %v775
      %v777 = vpop.f32.mrf.mxu0
      %v778 = vadd.f32 0.0, %v777
      %779 = vmatmul.bf16.gmra.mxu0 %v611
      %v780 = vpop.f32.mrf.mxu0
      %v781 = vadd.f32 0.0, %v780
      %v782 = vpop.f32.mrf.mxu0
      %v783 = vadd.f32 0.0, %v782
      %784 = vmatmul.bf16.gmra.mxu0 %v612
      %v785 = vpop.f32.mrf.mxu0
      %v786 = vadd.f32 0.0, %v785
      %v787 = vpop.f32.mrf.mxu0
      %v788 = vadd.f32 0.0, %v787
      %789 = vmatmul.bf16.gmra.mxu0 %v613
      %v790 = vpop.f32.mrf.mxu0
      %v791 = vadd.f32 0.0, %v790
      %v792 = vpop.f32.mrf.mxu0
      %v793 = vadd.f32 0.0, %v792
      %794 = vmatmul.bf16.gmra.mxu0 %v614
      %v795 = vpop.f32.mrf.mxu0
      %v796 = vadd.f32 0.0, %v795
      %v797 = vpop.f32.mrf.mxu0
      %v798 = vadd.f32 0.0, %v797
      %799 = vmatmul.bf16.gmra.mxu0 %v615
      %v800 = vpop.f32.mrf.mxu0
      %v801 = vadd.f32 0.0, %v800
      %v802 = vpop.f32.mrf.mxu0
      %v803 = vadd.f32 0.0, %v802
      %804 = vmatmul.bf16.gmra.mxu0 %v616
      %v805 = vpop.f32.mrf.mxu0
      %v806 = vadd.f32 0.0, %v805
      %v807 = vpop.f32.mrf.mxu0
      %v808 = vadd.f32 0.0, %v807
      %809 = vmatmul.bf16.gmra.mxu0 %v617
      %v810 = vpop.f32.mrf.mxu0
      %v811 = vadd.f32 0.0, %v810
      %v812 = vpop.f32.mrf.mxu0
      %v813 = vadd.f32 0.0, %v812
      %814 = vmatmul.bf16.gmra.mxu0 %v618
      %v815 = vpop.f32.mrf.mxu0
      %v816 = vadd.f32 0.0, %v815
      %v817 = vpop.f32.mrf.mxu0
      %v818 = vadd.f32 0.0, %v817
      %819 = vmatmul.bf16.gmra.mxu0 %v619
      %v820 = vpop.f32.mrf.mxu0
      %v821 = vadd.f32 0.0, %v820
      %v822 = vpop.f32.mrf.mxu0
      %v823 = vadd.f32 0.0, %v822
      %824 = vmatmul.bf16.gmra.mxu0 %v620
      %v825 = vpop.f32.mrf.mxu0
      %v826 = vadd.f32 0.0, %v825
      %v827 = vpop.f32.mrf.mxu0
      %v828 = vadd.f32 0.0, %v827
      %829 = vmatmul.bf16.gmra.mxu0 %v621
      %v830 = vpop.f32.mrf.mxu0
      %v831 = vadd.f32 0.0, %v830
      %v832 = vpop.f32.mrf.mxu0
      %v833 = vadd.f32 0.0, %v832
      %834 = vmatmul.bf16.gmra.mxu0 %v622
      %v835 = vpop.f32.mrf.mxu0
      %v836 = vadd.f32 0.0, %v835
      %v837 = vpop.f32.mrf.mxu0
      %v838 = vadd.f32 0.0, %v837
      %839 = vmatmul.bf16.gmra.mxu0 %v623
      %v840 = vpop.f32.mrf.mxu0
      %v841 = vadd.f32 0.0, %v840
      %v842 = vpop.f32.mrf.mxu0
      %v843 = vadd.f32 0.0, %v842
      %844 = vmatmul.bf16.gmra.mxu0 %v624
      %v845 = vpop.f32.mrf.mxu0
      %v846 = vadd.f32 0.0, %v845
      %v847 = vpop.f32.mrf.mxu0
      %v848 = vadd.f32 0.0, %v847
      %849 = vmatmul.bf16.gmra.mxu0 %v625
      %v850 = vpop.f32.mrf.mxu0
      %v851 = vadd.f32 0.0, %v850
      %v852 = vpop.f32.mrf.mxu0
      %v853 = vadd.f32 0.0, %v852
      %854 = vmatmul.bf16.gmra.mxu0 %v626
      %v855 = vpop.f32.mrf.mxu0
      %v856 = vadd.f32 0.0, %v855
      %v857 = vpop.f32.mrf.mxu0
      %v858 = vadd.f32 0.0, %v857
      %859 = vmatmul.bf16.gmra.mxu0 %v627
      %v860 = vpop.f32.mrf.mxu0
      %v861 = vadd.f32 0.0, %v860
      %v862 = vpop.f32.mrf.mxu0
      %v863 = vadd.f32 0.0, %v862
      %864 = vmatmul.bf16.gmra.mxu0 %v628
      %v865 = vpop.f32.mrf.mxu0
      %v866 = vadd.f32 0.0, %v865
      %v867 = vpop.f32.mrf.mxu0
      %v868 = vadd.f32 0.0, %v867
      %869 = vmatmul.bf16.gmra.mxu0 %v629
      %v870 = vpop.f32.mrf.mxu0
      %v871 = vadd.f32 0.0, %v870
      %v872 = vpop.f32.mrf.mxu0
      %v873 = vadd.f32 0.0, %v872
      %874 = vmatmul.bf16.gmra.mxu0 %v630
      %v875 = vpop.f32.mrf.mxu0
      %v876 = vadd.f32 0.0, %v875
      %v877 = vpop.f32.mrf.mxu0
      %v878 = vadd.f32 0.0, %v877
      %879 = vdwg.mxu0
      %v880 = vadd.f32 %v327, %v721
      %v881 = vadd.f32 %v328, %v723
      %v882 = vadd.f32 %v329, %v726
      %v883 = vadd.f32 %v330, %v728
      %v884 = vadd.f32 %v331, %v731
      %v885 = vadd.f32 %v332, %v733
      %v886 = vadd.f32 %v333, %v736
      %v887 = vadd.f32 %v334, %v738
      %v888 = vadd.f32 %v335, %v741
      %v889 = vadd.f32 %v336, %v743
      %v890 = vadd.f32 %v337, %v746
      %v891 = vadd.f32 %v338, %v748
      %v892 = vadd.f32 %v339, %v751
      %v893 = vadd.f32 %v340, %v753
      %v894 = vadd.f32 %v341, %v756
      %v895 = vadd.f32 %v342, %v758
      %v896 = vadd.f32 %v343, %v761
      %v897 = vadd.f32 %v344, %v763
      %v898 = vadd.f32 %v345, %v766
      %v899 = vadd.f32 %v346, %v768
      %v900 = vadd.f32 %v347, %v771
      %v901 = vadd.f32 %v348, %v773
      %v902 = vadd.f32 %v349, %v776
      %v903 = vadd.f32 %v350, %v778
      %v904 = vadd.f32 %v351, %v781
      %v905 = vadd.f32 %v352, %v783
      %v906 = vadd.f32 %v353, %v786
      %v907 = vadd.f32 %v354, %v788
      %v908 = vadd.f32 %v355, %v791
      %v909 = vadd.f32 %v356, %v793
      %v910 = vadd.f32 %v357, %v796
      %v911 = vadd.f32 %v358, %v798
      %v912 = vadd.f32 %v359, %v801
      %v913 = vadd.f32 %v360, %v803
      %v914 = vadd.f32 %v361, %v806
      %v915 = vadd.f32 %v362, %v808
      %v916 = vadd.f32 %v363, %v811
      %v917 = vadd.f32 %v364, %v813
      %v918 = vadd.f32 %v365, %v816
      %v919 = vadd.f32 %v366, %v818
      %v920 = vadd.f32 %v367, %v821
      %v921 = vadd.f32 %v368, %v823
      %v922 = vadd.f32 %v369, %v826
      %v923 = vadd.f32 %v370, %v828
      %v924 = vadd.f32 %v371, %v831
      %v925 = vadd.f32 %v372, %v833
      %v926 = vadd.f32 %v373, %v836
      %v927 = vadd.f32 %v374, %v838
      %v928 = vadd.f32 %v375, %v841
      %v929 = vadd.f32 %v376, %v843
      %v930 = vadd.f32 %v377, %v846
      %v931 = vadd.f32 %v378, %v848
      %v932 = vadd.f32 %v379, %v851
      %v933 = vadd.f32 %v380, %v853
      %v934 = vadd.f32 %v381, %v856
      %v935 = vadd.f32 %v382, %v858
      %v936 = vadd.f32 %v383, %v861
      %v937 = vadd.f32 %v384, %v863
      %v938 = vadd.f32 %v385, %v866
      %v939 = vadd.f32 %v386, %v868
      %v940 = vadd.f32 %v387, %v871
      %v941 = vadd.f32 %v388, %v873
      %v942 = vadd.f32 %v389, %v876
      %v943 = vadd.f32 %v390, %v878
      %944 = vst [vmem:[#allocation2] sm:$0xff] %v880
      %945 = vst [vmem:[#allocation2 + $0x8] sm:$0xff] %v881
      %946 = vst [vmem:[#allocation2 + $0x10] sm:$0xff] %v882
      %947 = vst [vmem:[#allocation2 + $0x18] sm:$0xff] %v883
      %948 = vst [vmem:[#allocation2 + $0x20] sm:$0xff] %v884
      %949 = vst [vmem:[#allocation2 + $0x28] sm:$0xff] %v885
      %950 = vst [vmem:[#allocation2 + $0x30] sm:$0xff] %v886
      %951 = vst [vmem:[#allocation2 + $0x38] sm:$0xff] %v887
      %952 = vst [vmem:[#allocation2 + $0x40] sm:$0xff] %v888
      %953 = vst [vmem:[#allocation2 + $0x48] sm:$0xff] %v889
      %954 = vst [vmem:[#allocation2 + $0x50] sm:$0xff] %v890
      %955 = vst [vmem:[#allocation2 + $0x58] sm:$0xff] %v891
      %956 = vst [vmem:[#allocation2 + $0x60] sm:$0xff] %v892
      %957 = vst [vmem:[#allocation2 + $0x68] sm:$0xff] %v893
      %958 = vst [vmem:[#allocation2 + $0x70] sm:$0xff] %v894
      %959 = vst [vmem:[#allocation2 + $0x78] sm:$0xff] %v895
      %960 = vst [vmem:[#allocation2 + $0x80] sm:$0xff] %v896
      %961 = vst [vmem:[#allocation2 + $0x88] sm:$0xff] %v897
      %962 = vst [vmem:[#allocation2 + $0x90] sm:$0xff] %v898
      %963 = vst [vmem:[#allocation2 + $0x98] sm:$0xff] %v899
      %964 = vst [vmem:[#allocation2 + $0xa0] sm:$0xff] %v900
      %965 = vst [vmem:[#allocation2 + $0xa8] sm:$0xff] %v901
      %966 = vst [vmem:[#allocation2 + $0xb0] sm:$0xff] %v902
      %967 = vst [vmem:[#allocation2 + $0xb8] sm:$0xff] %v903
      %968 = vst [vmem:[#allocation2 + $0xc0] sm:$0xff] %v904
      %969 = vst [vmem:[#allocation2 + $0xc8] sm:$0xff] %v905
      %970 = vst [vmem:[#allocation2 + $0xd0] sm:$0xff] %v906
      %971 = vst [vmem:[#allocation2 + $0xd8] sm:$0xff] %v907
      %972 = vst [vmem:[#allocation2 + $0xe0] sm:$0xff] %v908
      %973 = vst [vmem:[#allocation2 + $0xe8] sm:$0xff] %v909
      %974 = vst [vmem:[#allocation2 + $0xf0] sm:$0xff] %v910
      %975 = vst [vmem:[#allocation2 + $0xf8] sm:$0xff] %v911
      %976 = vst [vmem:[#allocation2 + $0x100] sm:$0xff] %v912
      %977 = vst [vmem:[#allocation2 + $0x108] sm:$0xff] %v913
      %978 = vst [vmem:[#allocation2 + $0x110] sm:$0xff] %v914
      %979 = vst [vmem:[#allocation2 + $0x118] sm:$0xff] %v915
      %980 = vst [vmem:[#allocation2 + $0x120] sm:$0xff] %v916
      %981 = vst [vmem:[#allocation2 + $0x128] sm:$0xff] %v917
      %982 = vst [vmem:[#allocation2 + $0x130] sm:$0xff] %v918
      %983 = vst [vmem:[#allocation2 + $0x138] sm:$0xff] %v919
      %984 = vst [vmem:[#allocation2 + $0x140] sm:$0xff] %v920
      %985 = vst [vmem:[#allocation2 + $0x148] sm:$0xff] %v921
      %986 = vst [vmem:[#allocation2 + $0x150] sm:$0xff] %v922
      %987 = vst [vmem:[#allocation2 + $0x158] sm:$0xff] %v923
      %988 = vst [vmem:[#allocation2 + $0x160] sm:$0xff] %v924
      %989 = vst [vmem:[#allocation2 + $0x168] sm:$0xff] %v925
      %990 = vst [vmem:[#allocation2 + $0x170] sm:$0xff] %v926
      %991 = vst [vmem:[#allocation2 + $0x178] sm:$0xff] %v927
      %992 = vst [vmem:[#allocation2 + $0x180] sm:$0xff] %v928
      %993 = vst [vmem:[#allocation2 + $0x188] sm:$0xff] %v929
      %994 = vst [vmem:[#allocation2 + $0x190] sm:$0xff] %v930
      %995 = vst [vmem:[#allocation2 + $0x198] sm:$0xff] %v931
      %996 = vst [vmem:[#allocation2 + $0x1a0] sm:$0xff] %v932
      %997 = vst [vmem:[#allocation2 + $0x1a8] sm:$0xff] %v933
      %998 = vst [vmem:[#allocation2 + $0x1b0] sm:$0xff] %v934
      %999 = vst [vmem:[#allocation2 + $0x1b8] sm:$0xff] %v935
      %1000 = vst [vmem:[#allocation2 + $0x1c0] sm:$0xff] %v936
      %1001 = vst [vmem:[#allocation2 + $0x1c8] sm:$0xff] %v937
      %1002 = vst [vmem:[#allocation2 + $0x1d0] sm:$0xff] %v938
      %1003 = vst [vmem:[#allocation2 + $0x1d8] sm:$0xff] %v939
      %1004 = vst [vmem:[#allocation2 + $0x1e0] sm:$0xff] %v940
      %1005 = vst [vmem:[#allocation2 + $0x1e8] sm:$0xff] %v941
      %1006 = vst [vmem:[#allocation2 + $0x1f0] sm:$0xff] %v942
      %1007 = vst [vmem:[#allocation2 + $0x1f8] sm:$0xff] %v943
      // Predicated region
      $region37: #{fwd.17} parent=31 // pred_check
        %p1008 = pneg %p259
      $region38: #{fwd.17} parent=31 // pred_check_branch
        %1010 = sbr.rel (%p1008) target = $region40
      $region39: #{fwd.17} parent=31 // pred_region
        %v1011 = vld [vmem:[#allocation2] sm:$0xff]
        %v1012 = vld [vmem:[#allocation2 + $0x8] sm:$0xff]
        %v1013 = vld [vmem:[#allocation2 + $0x10] sm:$0xff]
        %v1014 = vld [vmem:[#allocation2 + $0x18] sm:$0xff]
        %v1015 = vld [vmem:[#allocation2 + $0x20] sm:$0xff]
        %v1016 = vld [vmem:[#allocation2 + $0x28] sm:$0xff]
        %v1017 = vld [vmem:[#allocation2 + $0x30] sm:$0xff]
        %v1018 = vld [vmem:[#allocation2 + $0x38] sm:$0xff]
        %v1019 = vld [vmem:[#allocation2 + $0x40] sm:$0xff]
        %v1020 = vld [vmem:[#allocation2 + $0x48] sm:$0xff]
        %v1021 = vld [vmem:[#allocation2 + $0x50] sm:$0xff]
        %v1022 = vld [vmem:[#allocation2 + $0x58] sm:$0xff]
        %v1023 = vld [vmem:[#allocation2 + $0x60] sm:$0xff]
        %v1024 = vld [vmem:[#allocation2 + $0x68] sm:$0xff]
        %v1025 = vld [vmem:[#allocation2 + $0x70] sm:$0xff]
        %v1026 = vld [vmem:[#allocation2 + $0x78] sm:$0xff]
        %v1027 = vld [vmem:[#allocation2 + $0x80] sm:$0xff]
        %v1028 = vld [vmem:[#allocation2 + $0x88] sm:$0xff]
        %v1029 = vld [vmem:[#allocation2 + $0x90] sm:$0xff]
        %v1030 = vld [vmem:[#allocation2 + $0x98] sm:$0xff]
        %v1031 = vld [vmem:[#allocation2 + $0xa0] sm:$0xff]
        %v1032 = vld [vmem:[#allocation2 + $0xa8] sm:$0xff]
        %v1033 = vld [vmem:[#allocation2 + $0xb0] sm:$0xff]
        %v1034 = vld [vmem:[#allocation2 + $0xb8] sm:$0xff]
        %v1035 = vld [vmem:[#allocation2 + $0xc0] sm:$0xff]
        %v1036 = vld [vmem:[#allocation2 + $0xc8] sm:$0xff]
        %v1037 = vld [vmem:[#allocation2 + $0xd0] sm:$0xff]
        %v1038 = vld [vmem:[#allocation2 + $0xd8] sm:$0xff]
        %v1039 = vld [vmem:[#allocation2 + $0xe0] sm:$0xff]
        %v1040 = vld [vmem:[#allocation2 + $0xe8] sm:$0xff]
        %v1041 = vld [vmem:[#allocation2 + $0xf0] sm:$0xff]
        %v1042 = vld [vmem:[#allocation2 + $0xf8] sm:$0xff]
        %v1043 = vld [vmem:[#allocation2 + $0x100] sm:$0xff]
        %v1044 = vld [vmem:[#allocation2 + $0x108] sm:$0xff]
        %v1045 = vld [vmem:[#allocation2 + $0x110] sm:$0xff]
        %v1046 = vld [vmem:[#allocation2 + $0x118] sm:$0xff]
        %v1047 = vld [vmem:[#allocation2 + $0x120] sm:$0xff]
        %v1048 = vld [vmem:[#allocation2 + $0x128] sm:$0xff]
        %v1049 = vld [vmem:[#allocation2 + $0x130] sm:$0xff]
        %v1050 = vld [vmem:[#allocation2 + $0x138] sm:$0xff]
        %v1051 = vld [vmem:[#allocation2 + $0x140] sm:$0xff]
        %v1052 = vld [vmem:[#allocation2 + $0x148] sm:$0xff]
        %v1053 = vld [vmem:[#allocation2 + $0x150] sm:$0xff]
        %v1054 = vld [vmem:[#allocation2 + $0x158] sm:$0xff]
        %v1055 = vld [vmem:[#allocation2 + $0x160] sm:$0xff]
        %v1056 = vld [vmem:[#allocation2 + $0x168] sm:$0xff]
        %v1057 = vld [vmem:[#allocation2 + $0x170] sm:$0xff]
        %v1058 = vld [vmem:[#allocation2 + $0x178] sm:$0xff]
        %v1059 = vld [vmem:[#allocation2 + $0x180] sm:$0xff]
        %v1060 = vld [vmem:[#allocation2 + $0x188] sm:$0xff]
        %v1061 = vld [vmem:[#allocation2 + $0x190] sm:$0xff]
        %v1062 = vld [vmem:[#allocation2 + $0x198] sm:$0xff]
        %v1063 = vld [vmem:[#allocation2 + $0x1a0] sm:$0xff]
        %v1064 = vld [vmem:[#allocation2 + $0x1a8] sm:$0xff]
        %v1065 = vld [vmem:[#allocation2 + $0x1b0] sm:$0xff]
        %v1066 = vld [vmem:[#allocation2 + $0x1b8] sm:$0xff]
        %v1067 = vld [vmem:[#allocation2 + $0x1c0] sm:$0xff]
        %v1068 = vld [vmem:[#allocation2 + $0x1c8] sm:$0xff]
        %v1069 = vld [vmem:[#allocation2 + $0x1d0] sm:$0xff]
        %v1070 = vld [vmem:[#allocation2 + $0x1d8] sm:$0xff]
        %v1071 = vld [vmem:[#allocation2 + $0x1e0] sm:$0xff]
        %v1072 = vld [vmem:[#allocation2 + $0x1e8] sm:$0xff]
        %v1073 = vld [vmem:[#allocation2 + $0x1f0] sm:$0xff]
        %v1074 = vld [vmem:[#allocation2 + $0x1f8] sm:$0xff]
        %v1075 = vld [vmem:[%s249] sm:$0x1]
        %v1077 = vperm.slane %v1075, 0
        %v1079 = vadd.f32 %v1011, %v1077
        %v1080 = vadd.f32 %v1012, %v1077
        %v1081 = vadd.f32 %v1013, %v1077
        %v1082 = vadd.f32 %v1014, %v1077
        %v1083 = vadd.f32 %v1015, %v1077
        %v1084 = vadd.f32 %v1016, %v1077
        %v1085 = vadd.f32 %v1017, %v1077
        %v1086 = vadd.f32 %v1018, %v1077
        %v1087 = vadd.f32 %v1019, %v1077
        %v1088 = vadd.f32 %v1020, %v1077
        %v1089 = vadd.f32 %v1021, %v1077
        %v1090 = vadd.f32 %v1022, %v1077
        %v1091 = vadd.f32 %v1023, %v1077
        %v1092 = vadd.f32 %v1024, %v1077
        %v1093 = vadd.f32 %v1025, %v1077
        %v1094 = vadd.f32 %v1026, %v1077
        %v1095 = vadd.f32 %v1027, %v1077
        %v1096 = vadd.f32 %v1028, %v1077
        %v1097 = vadd.f32 %v1029, %v1077
        %v1098 = vadd.f32 %v1030, %v1077
        %v1099 = vadd.f32 %v1031, %v1077
        %v1100 = vadd.f32 %v1032, %v1077
        %v1101 = vadd.f32 %v1033, %v1077
        %v1102 = vadd.f32 %v1034, %v1077
        %v1103 = vadd.f32 %v1035, %v1077
        %v1104 = vadd.f32 %v1036, %v1077
        %v1105 = vadd.f32 %v1037, %v1077
        %v1106 = vadd.f32 %v1038, %v1077
        %v1107 = vadd.f32 %v1039, %v1077
        %v1108 = vadd.f32 %v1040, %v1077
        %v1109 = vadd.f32 %v1041, %v1077
        %v1110 = vadd.f32 %v1042, %v1077
        %v1111 = vadd.f32 %v1043, %v1077
        %v1112 = vadd.f32 %v1044, %v1077
        %v1113 = vadd.f32 %v1045, %v1077
        %v1114 = vadd.f32 %v1046, %v1077
        %v1115 = vadd.f32 %v1047, %v1077
        %v1116 = vadd.f32 %v1048, %v1077
        %v1117 = vadd.f32 %v1049, %v1077
        %v1118 = vadd.f32 %v1050, %v1077
        %v1119 = vadd.f32 %v1051, %v1077
        %v1120 = vadd.f32 %v1052, %v1077
        %v1121 = vadd.f32 %v1053, %v1077
        %v1122 = vadd.f32 %v1054, %v1077
        %v1123 = vadd.f32 %v1055, %v1077
        %v1124 = vadd.f32 %v1056, %v1077
        %v1125 = vadd.f32 %v1057, %v1077
        %v1126 = vadd.f32 %v1058, %v1077
        %v1127 = vadd.f32 %v1059, %v1077
        %v1128 = vadd.f32 %v1060, %v1077
        %v1129 = vadd.f32 %v1061, %v1077
        %v1130 = vadd.f32 %v1062, %v1077
        %v1131 = vadd.f32 %v1063, %v1077
        %v1132 = vadd.f32 %v1064, %v1077
        %v1133 = vadd.f32 %v1065, %v1077
        %v1134 = vadd.f32 %v1066, %v1077
        %v1135 = vadd.f32 %v1067, %v1077
        %v1136 = vadd.f32 %v1068, %v1077
        %v1137 = vadd.f32 %v1069, %v1077
        %v1138 = vadd.f32 %v1070, %v1077
        %v1139 = vadd.f32 %v1071, %v1077
        %v1140 = vadd.f32 %v1072, %v1077
        %v1141 = vadd.f32 %v1073, %v1077
        %v1142 = vadd.f32 %v1074, %v1077
        %1143 = vst [vmem:[%s257] sm:$0xff] %v1079
        %1144 = vst [vmem:[%s257 + $0x8] sm:$0xff] %v1080
        %1145 = vst [vmem:[%s257 + $0x10] sm:$0xff] %v1081
        %1146 = vst [vmem:[%s257 + $0x18] sm:$0xff] %v1082
        %1147 = vst [vmem:[%s257 + $0x20] sm:$0xff] %v1083
        %1148 = vst [vmem:[%s257 + $0x28] sm:$0xff] %v1084
        %1149 = vst [vmem:[%s257 + $0x30] sm:$0xff] %v1085
        %1150 = vst [vmem:[%s257 + $0x38] sm:$0xff] %v1086
        %1151 = vst [vmem:[%s257 + $0x40] sm:$0xff] %v1087
        %1152 = vst [vmem:[%s257 + $0x48] sm:$0xff] %v1088
        %1153 = vst [vmem:[%s257 + $0x50] sm:$0xff] %v1089
        %1154 = vst [vmem:[%s257 + $0x58] sm:$0xff] %v1090
        %1155 = vst [vmem:[%s257 + $0x60] sm:$0xff] %v1091
        %1156 = vst [vmem:[%s257 + $0x68] sm:$0xff] %v1092
        %1157 = vst [vmem:[%s257 + $0x70] sm:$0xff] %v1093
        %1158 = vst [vmem:[%s257 + $0x78] sm:$0xff] %v1094
        %1159 = vst [vmem:[%s257 + $0x80] sm:$0xff] %v1095
        %1160 = vst [vmem:[%s257 + $0x88] sm:$0xff] %v1096
        %1161 = vst [vmem:[%s257 + $0x90] sm:$0xff] %v1097
        %1162 = vst [vmem:[%s257 + $0x98] sm:$0xff] %v1098
        %1163 = vst [vmem:[%s257 + $0xa0] sm:$0xff] %v1099
        %1164 = vst [vmem:[%s257 + $0xa8] sm:$0xff] %v1100
        %1165 = vst [vmem:[%s257 + $0xb0] sm:$0xff] %v1101
        %1166 = vst [vmem:[%s257 + $0xb8] sm:$0xff] %v1102
        %1167 = vst [vmem:[%s257 + $0xc0] sm:$0xff] %v1103
        %1168 = vst [vmem:[%s257 + $0xc8] sm:$0xff] %v1104
        %1169 = vst [vmem:[%s257 + $0xd0] sm:$0xff] %v1105
        %1170 = vst [vmem:[%s257 + $0xd8] sm:$0xff] %v1106
        %1171 = vst [vmem:[%s257 + $0xe0] sm:$0xff] %v1107
        %1172 = vst [vmem:[%s257 + $0xe8] sm:$0xff] %v1108
        %1173 = vst [vmem:[%s257 + $0xf0] sm:$0xff] %v1109
        %1174 = vst [vmem:[%s257 + $0xf8] sm:$0xff] %v1110
        %1175 = vst [vmem:[%s257 + $0x100] sm:$0xff] %v1111
        %1176 = vst [vmem:[%s257 + $0x108] sm:$0xff] %v1112
        %1177 = vst [vmem:[%s257 + $0x110] sm:$0xff] %v1113
        %1178 = vst [vmem:[%s257 + $0x118] sm:$0xff] %v1114
        %1179 = vst [vmem:[%s257 + $0x120] sm:$0xff] %v1115
        %1180 = vst [vmem:[%s257 + $0x128] sm:$0xff] %v1116
        %1181 = vst [vmem:[%s257 + $0x130] sm:$0xff] %v1117
        %1182 = vst [vmem:[%s257 + $0x138] sm:$0xff] %v1118
        %1183 = vst [vmem:[%s257 + $0x140] sm:$0xff] %v1119
        %1184 = vst [vmem:[%s257 + $0x148] sm:$0xff] %v1120
        %1185 = vst [vmem:[%s257 + $0x150] sm:$0xff] %v1121
        %1186 = vst [vmem:[%s257 + $0x158] sm:$0xff] %v1122
        %1187 = vst [vmem:[%s257 + $0x160] sm:$0xff] %v1123
        %1188 = vst [vmem:[%s257 + $0x168] sm:$0xff] %v1124
        %1189 = vst [vmem:[%s257 + $0x170] sm:$0xff] %v1125
        %1190 = vst [vmem:[%s257 + $0x178] sm:$0xff] %v1126
        %1191 = vst [vmem:[%s257 + $0x180] sm:$0xff] %v1127
        %1192 = vst [vmem:[%s257 + $0x188] sm:$0xff] %v1128
        %1193 = vst [vmem:[%s257 + $0x190] sm:$0xff] %v1129
        %1194 = vst [vmem:[%s257 + $0x198] sm:$0xff] %v1130
        %1195 = vst [vmem:[%s257 + $0x1a0] sm:$0xff] %v1131
        %1196 = vst [vmem:[%s257 + $0x1a8] sm:$0xff] %v1132
        %1197 = vst [vmem:[%s257 + $0x1b0] sm:$0xff] %v1133
        %1198 = vst [vmem:[%s257 + $0x1b8] sm:$0xff] %v1134
        %1199 = vst [vmem:[%s257 + $0x1c0] sm:$0xff] %v1135
        %1200 = vst [vmem:[%s257 + $0x1c8] sm:$0xff] %v1136
        %1201 = vst [vmem:[%s257 + $0x1d0] sm:$0xff] %v1137
        %1202 = vst [vmem:[%s257 + $0x1d8] sm:$0xff] %v1138
        %1203 = vst [vmem:[%s257 + $0x1e0] sm:$0xff] %v1139
        %1204 = vst [vmem:[%s257 + $0x1e8] sm:$0xff] %v1140
        %1205 = vst [vmem:[%s257 + $0x1f0] sm:$0xff] %v1141
        %1206 = vst [vmem:[%s257 + $0x1f8] sm:$0xff] %v1142
      $region40: #{fwd.17} parent=31 // pred_fallthru
        _
      %s1207 = smul.u32 64, %s19
      %p1208 = scmp.lt.s32.totalorder %s1207, 127
      %s1209 = scalar_select %p1208, %s1207, 127
      %p1210 = scmp.lt.s32.totalorder %s20, 0
      %s1211 = scalar_select %p1210, %s20, 0
      %s1212 = sadd.s32 %s1211, %s1209
      %s1213 = smul.addr %s1212, 8
      %s1214 = scalar_lea.vmem %s3, %s1213
      // Predicated region
      $region41: #{fwd.17} parent=31 // pred_check
        %p1215 = pneg %p135
      $region42: #{fwd.17} parent=31 // pred_check_branch
        %1217 = sbr.rel (%p1215) target = $region44
      $region43: #{fwd.17} parent=31 // pred_region
        %s1218 = smul.u32 64, %s19
      $region44: #{fwd.17} parent=31 // pred_fallthru
        _
    $region32: #{fwd.17} parent=5 // pred_fallthru
      _
    %p1219 = scmp.le.s32.totalorder 2, %s9
    // Predicated region
    $region45: #{fwd.17} parent=5 // pred_check
      %p1220 = pneg %p1219
    $region46: #{fwd.17} parent=5 // pred_check_branch
      %1222 = sbr.rel (%p1220) target = $region48
    $region47: #{fwd.17} parent=5 // pred_region
      %s1223 = ssub.s32 %s9, 2
      // Predicated region
      $region49: #{fwd.17} parent=47 // pred_check
        %p1224 = pneg %p141
      $region50: #{fwd.17} parent=47 // pred_check_branch
        %1226 = sbr.rel (%p1224) target = $region52
      $region51: #{fwd.17} parent=47 // pred_region
        %s1227 = smul.u32 64, %s22
        %p1228 = scmp.lt.s32.totalorder %s1227, 127
        %s1229 = scalar_select %p1228, %s1227, 127
        %p1230 = scmp.lt.s32.totalorder %s23, 0
        %s1231 = scalar_select %p1230, %s23, 0
        %s1232 = sadd.s32 %s1231, %s1229
        %s1233 = smul.addr %s1232, 8
        %s1234 = scalar_lea.vmem %s3, %s1233
      $region52: #{fwd.17} parent=47 // pred_fallthru
        _
    $region48: #{fwd.17} parent=5 // pred_fallthru
      _
  $region6: #{fwd.17} parent=0 // loop_footer
    %s13 = sadd.s32 1, %s9
  $region7: #{fwd.17} parent=0 // loop_footer_branch
    %8 = sbr.rel target = $region3
  $region8: #{fwd.17} parent=0 // loop_exit
    _

</llo_original>
